<compile_context>
chip_gen: v7x
topology: tpu7x:2x2x1
jax: 0.10.0
libtpu: 0.0.40
codegen_flags: <defaults>
</compile_context>

<pallas_src>
import functools

import jax
import jax.numpy as jnp
from jax import lax
from jax.experimental import pallas as pl
from jax.experimental.pallas import tpu as pltpu


# ----------------------------------------------------------------------------
# Fused kernel: M-tiled conv-matmul backbone stand-in (+ReLU+GAP accumulate)
# with a projector + BN + Barlow-Twins loss epilogue on the last tile.
# TODO(synk): full torchvision ResNet-18/50 block stack (strided 7x7 conv, BN,
#             maxpool, residual stages) is not reproduced; a conv3x3+ReLU+GAP
#             feature extractor stands in for `self.backbone`.
# ----------------------------------------------------------------------------
def make_fused_kernel(n_per_view, tile_n, hw, lambd, batch_size, eps=1e-5):
    inv_bs = 1.0 / float(batch_size)
    inv_hw = 1.0 / float(hw)

    def _bn_per_view(x, gamma=None, beta=None):
        # BatchNorm1d (training mode: batch stats, biased variance, eps=1e-5),
        # computed independently for each of the two stacked views.
        # NOTE: n_per_view must stay a multiple of 8 (f32 sublanes) so this
        # reshape is layout-free.
        # TODO(synk): for non-sublane-aligned batches, rewrite as two masked
        #             reductions on the [2N, F] layout instead of reshaping.
        f = x.shape[-1]
        xv = x.reshape(2, n_per_view, f)
        mean = jnp.mean(xv, axis=1, keepdims=True)
        var = jnp.mean((xv - mean) ** 2, axis=1, keepdims=True)
        xn = ((xv - mean) * lax.rsqrt(var + eps)).reshape(2 * n_per_view, f)
        if gamma is not None:
            xn = xn * gamma + beta
        return xn

    def kernel(patches_ref, wconv_ref, w1_ref, g1_ref, b1_ref,
               w2_ref, g2_ref, b2_ref, w3_ref, loss_ref, feat_ref):
        i = pl.program_id(0)

        # --- backbone stand-in, tile i: conv3x3(SAME) as one im2col MXU matmul
        #     (K = 36, lane-masked; zero lanes are never DMA'd from HBM),
        #     fused ReLU + per-sample GAP-sum into the persistent f32 scratch.
        h = jnp.dot(patches_ref[...], wconv_ref[...],
                    preferred_element_type=jnp.float32)        # [tile_n*hw, Cout]
        h = jnp.maximum(h, 0.0)
        cout = h.shape[-1]
        hs = jnp.sum(h.reshape(tile_n, hw, cout), axis=1)       # [tile_n, Cout] f32
        start = pl.multiple_of(i * tile_n, tile_n)               # sublane-aligned
        feat_ref[pl.ds(start, tile_n), :] = hs

        # --- epilogue on the last tile: projector MLP, per-view BN,
        #     cross-correlation and Barlow-Twins loss (all in VMEM/SMEM).
        @pl.when(i == pl.num_programs(0) - 1)
        def _():
            feat = feat_ref[...] * inv_hw                        # [2N, Cout] f32

            # Linear -> BN -> ReLU -> Linear -> BN -> ReLU -> Linear (no bias);
            # bf16 MXU operands, f32 accumulation and f32 BN math.
            h1 = jnp.dot(feat.astype(jnp.bfloat16), w1_ref[...],
                         preferred_element_type=jnp.float32)
            h1 = jnp.maximum(_bn_per_view(h1, g1_ref[...], b1_ref[...]), 0.0)
            h2 = jnp.dot(h1.astype(jnp.bfloat16), w2_ref[...],
                         preferred_element_type=jnp.float32)
            h2 = jnp.maximum(_bn_per_view(h2, g2_ref[...], b2_ref[...]), 0.0)
            z = jnp.dot(h2.astype(jnp.bfloat16), w3_ref[...],
                        preferred_element_type=jnp.float32)      # [2N, D] f32

            # Affine-free BatchNorm1d, then c = bn(z1).T @ bn(z2) / batch_size.
            zn = _bn_per_view(z)
            # Fold 1/batch_size into the small [N, D] operand (saves a [D, D] pass).
            z1n = zn[:n_per_view, :] * inv_bs
            z2n = zn[n_per_view:, :]
            # Transposed-LHS contraction (dim 0 of both operands), f32 accumulate.
            c = lax.dot_general(z1n, z2n, (((0,), (0,)), ((), ())),
                                preferred_element_type=jnp.float32)  # [D, D]
            # TODO(synk): torch.distributed.all_reduce(c) is an identity on a
            #             single device; no cross-device sum is performed here.

            d = c.shape[0]
            row = lax.broadcasted_iota(jnp.int32, (d, d), 0)
            col = lax.broadcasted_iota(jnp.int32, (d, d), 1)
            per_elem = jnp.where(row == col, (c - 1.0) ** 2, float(lambd) * c * c)
            loss_ref[0, 0] = jnp.sum(per_elem)                   # scalar -> SMEM
            # TODO(synk): at real scale (D=8192) tile c in (Di, Dj) blocks and
            #             fuse the loss reduction per block so the [D, D]
            #             correlation matrix is never materialized.

    return kernel


# ----------------------------------------------------------------------------
# Wrapper (layout plumbing only: NCHW->NHWC, bf16 cast, SAME pad, im2col)
# ----------------------------------------------------------------------------
def barlow_twins_forward(y1_nchw, y2_nchw, params, *, batch_size, lambd):
    conv_w = params["conv_w"]                       # [KH, KW, Cin, Cout] (HWIO)
    KH, KW, Cin, Cout = conv_w.shape
    N, _, H, W = y1_nchw.shape
    hw = H * W
    K = KH * KW * Cin                               # 36; stays unpadded in HBM

    # Stack both views; cast to bf16 BEFORE slicing/concat; keep K=36 unpadded
    # so the patches DMA carries only real data (no 3.5x zero lanes).
    # TODO(synk): move this im2col into the kernel (DMA the SAME-padded NHWC
    #             input and build the K-concat in a VMEM scratch) to eliminate
    #             the remaining wrapper HBM intermediates entirely.
    y = jnp.concatenate([y1_nchw, y2_nchw], axis=0)               # [2N, Cin, H, W]
    x = jnp.transpose(y, (0, 2, 3, 1)).astype(jnp.bfloat16)       # NHWC bf16
    x = jnp.pad(x, ((0, 0), (1, 1), (1, 1), (0, 0)))              # SAME pad
    cols = [x[:, kh:kh + H, kw:kw + W, :]
            for kh in range(KH) for kw in range(KW)]
    patches = jnp.concatenate(cols, axis=-1).reshape(2 * N * hw, K)  # [2N*HW, 36]

    wconv = conv_w.reshape(K, Cout).astype(jnp.bfloat16)          # [36, Cout]
    w1 = params["w1"].astype(jnp.bfloat16)
    w2 = params["w2"].astype(jnp.bfloat16)
    w3 = params["w3"].astype(jnp.bfloat16)
    g1, b1 = params["g1"], params["b1"]
    g2, b2 = params["g2"], params["b2"]
    F, H1 = params["w1"].shape
    H2 = params["w2"].shape[1]
    D = params["w3"].shape[1]

    # M-tiled grid over whole samples: 8 samples per tile keeps the per-sample
    # GAP scratch stores sublane-aligned (f32), lets BlockSpec double-buffer
    # the patches DMA under the conv matmul, and caps the live f32 conv
    # intermediate at one tile.
    nt = 2 * N
    tile_n = 8
    assert nt % tile_n == 0 and N % 8 == 0, "per-view batch must be a multiple of 8"
    n_tiles = nt // tile_n
    tile_rows = tile_n * hw

    def _const_spec(shape):
        return pl.BlockSpec(shape, lambda i: (0, 0))              # VMEM-resident

    # TODO(synk): at real Barlow-Twins sizes (projector 8192-8192-8192, batch
    #             ~1-2K) the whole-weight VMEM specs must become K/N tiled
    #             grids with f32 accumulator scratch and explicit
    #             vmem_limit_bytes (half-size tiles on v7x's 64 MiB VMEM), and
    #             feature widths should be 256-multiples for the v6e/v7x MXU.
    loss = pl.pallas_call(
        make_fused_kernel(N, tile_n, hw, lambd, batch_size),
        out_shape=jax.ShapeDtypeStruct((1, 1), jnp.float32),
        grid=(n_tiles,),
        in_specs=[
            pl.BlockSpec((tile_rows, K), lambda i: (i, 0)),       # patches: M-tiled
            _const_spec((K, Cout)),                               # conv weight
            _const_spec((F, H1)), _const_spec((1, H1)), _const_spec((1, H1)),
            _const_spec((H1, H2)), _const_spec((1, H2)), _const_spec((1, H2)),
            _const_spec((H2, D)),
        ],
        out_specs=pl.BlockSpec(memory_space=pltpu.MemorySpace.SMEM),
        scratch_shapes=[pltpu.VMEM((nt, Cout), jnp.float32)],     # per-sample GAP sums
        # The grid axis carries the GAP accumulation + last-step epilogue.
        # TODO(synk): for v7x, split the conv tiles on a leading 'parallel'
        #             axis and combine per-core partial GAP sums via CMEM so
        #             both TensorCores do work.
        compiler_params=pltpu.CompilerParams(
            dimension_semantics=("arbitrary",)),
    )(patches, wconv, w1, g1, b1, w2, g2, b2, w3)
    return loss[0, 0]


def init_params(key, cin, num_features, h1, h2, d):
    k0, k1, k2, k3 = jax.random.split(key, 4)
    return {
        "conv_w": jax.random.normal(k0, (3, 3, cin, num_features), jnp.float32) * 0.1,
        "w1": jax.random.normal(k1, (num_features, h1), jnp.float32) * 0.1,
        "g1": jnp.ones((1, h1), jnp.float32),    # BatchNorm1d default gamma
        "b1": jnp.zeros((1, h1), jnp.float32),   # BatchNorm1d default beta
        "w2": jax.random.normal(k2, (h1, h2), jnp.float32) * 0.1,
        "g2": jnp.ones((1, h2), jnp.float32),
        "b2": jnp.zeros((1, h2), jnp.float32),
        "w3": jax.random.normal(k3, (h2, d), jnp.float32) * 0.1,
    }


if __name__ == "__main__":
    # Small shapes consistent with the module's forward: two augmented views
    # y1, y2 of shape [batch, channels, H, W], backbone -> num_features,
    # projector "128-128-128" (lane-dense feature dims).
    N, CIN, H, W = 8, 4, 16, 16
    NUM_FEATURES, H1, H2, D = 128, 128, 128, 128
    BATCH_SIZE = N          # args.batch_size
    LAMBD = 0.0051          # args.lambd (Barlow Twins default)

    key = jax.random.PRNGKey(0)
    kp, k1, k2 = jax.random.split(key, 3)
    params = init_params(kp, CIN, NUM_FEATURES, H1, H2, D)
    y1 = jax.random.normal(k1, (N, CIN, H, W), jnp.float32)
    y2 = jax.random.normal(k2, (N, CIN, H, W), jnp.float32)

    fwd = jax.jit(functools.partial(barlow_twins_forward,
                                    batch_size=BATCH_SIZE, lambd=LAMBD))
    loss = fwd(y1, y2, params)
    jax.block_until_ready(loss)
    assert loss.shape == () and bool(jnp.isfinite(loss))
    print("KERNEL_OK")
</pallas_src>

<mosaic_0001>
module attributes {stable_mosaic.version = 11 : i64} {
  func.func @kernel(%arg0: i32, %arg1: memref<2048x36xbf16, #tpu.memory_space<vmem>>, %arg2: memref<36x128xbf16, #tpu.memory_space<vmem>>, %arg3: memref<128x128xbf16, #tpu.memory_space<vmem>>, %arg4: memref<1x128xf32, #tpu.memory_space<vmem>>, %arg5: memref<1x128xf32, #tpu.memory_space<vmem>>, %arg6: memref<128x128xbf16, #tpu.memory_space<vmem>>, %arg7: memref<1x128xf32, #tpu.memory_space<vmem>>, %arg8: memref<1x128xf32, #tpu.memory_space<vmem>>, %arg9: memref<128x128xbf16, #tpu.memory_space<vmem>>, %arg10: memref<1x1xf32, #tpu.memory_space<smem>>, %arg11: memref<16x128xf32, #tpu.memory_space<vmem>>) attributes {dimension_semantics = [#tpu.dimension_semantics<arbitrary>], iteration_bounds = array<i64: 2>, scalar_prefetch = 0 : i64, scratch_operands = 1 : i64, tpu.core_type = #tpu.core_type<tc>, window_params = [{transform_indices = @transform_0, window_bounds = array<i64: 2048, 36>}, {pipeline_mode = #tpu.pipeline_mode<synchronous>, transform_indices = @transform_1, window_bounds = array<i64: 36, 128>}, {pipeline_mode = #tpu.pipeline_mode<synchronous>, transform_indices = @transform_2, window_bounds = array<i64: 128, 128>}, {pipeline_mode = #tpu.pipeline_mode<synchronous>, transform_indices = @transform_3, window_bounds = array<i64: 1, 128>}, {pipeline_mode = #tpu.pipeline_mode<synchronous>, transform_indices = @transform_4, window_bounds = array<i64: 1, 128>}, {pipeline_mode = #tpu.pipeline_mode<synchronous>, transform_indices = @transform_5, window_bounds = array<i64: 128, 128>}, {pipeline_mode = #tpu.pipeline_mode<synchronous>, transform_indices = @transform_6, window_bounds = array<i64: 1, 128>}, {pipeline_mode = #tpu.pipeline_mode<synchronous>, transform_indices = @transform_7, window_bounds = array<i64: 1, 128>}, {pipeline_mode = #tpu.pipeline_mode<synchronous>, transform_indices = @transform_8, window_bounds = array<i64: 128, 128>}, {transform_indices = @transform_9, window_bounds = array<i64: 1, 1>}]} {
    %c0 = arith.constant 0 : index
    %c0_0 = arith.constant 0 : index
    %0 = vector.load %arg1[%c0, %c0_0] : memref<2048x36xbf16, #tpu.memory_space<vmem>>, vector<2048x36xbf16>
    %c0_1 = arith.constant 0 : index
    %c0_2 = arith.constant 0 : index
    %1 = vector.load %arg2[%c0_1, %c0_2] : memref<36x128xbf16, #tpu.memory_space<vmem>>, vector<36x128xbf16>
    %cst = arith.constant dense<0.000000e+00> : vector<2048x128xf32>
    %2 = tpu.matmul %0, %1, %cst {dimension_numbers = #tpu.dot_dimension_numbers<[1], [0], [0], [1], [0, 0, 1, 1], [], []>} : vector<2048x36xbf16>, vector<36x128xbf16>, vector<2048x128xf32> -> vector<2048x128xf32>
    %cst_3 = arith.constant 0.000000e+00 : f32
    %3 = vector.broadcast %cst_3 : f32 to vector<2048x128xf32>
    %4 = arith.maximumf %2, %3 : vector<2048x128xf32>
    %5 = vector.shape_cast %4 : vector<2048x128xf32> to vector<8x256x128xf32>
    %cst_4 = arith.constant dense<0.000000e+00> : vector<8x128xf32>
    %6 = vector.multi_reduction <add>, %5, %cst_4 [1] : vector<8x256x128xf32> to vector<8x128xf32>
    %c8_i32 = arith.constant 8 : i32
    %7 = arith.muli %arg0, %c8_i32 : i32
    %8 = tpu.assume_multiple %7, 8 : i32
    %9 = arith.index_cast %8 : i32 to index
    %c0_5 = arith.constant 0 : index
    %10 = vector.load %arg11[%9, %c0_5] : memref<16x128xf32, #tpu.memory_space<vmem>>, vector<8x128xf32>
    tpu.vector_store %arg11[%9, %c0_5], %6 {strides = array<i32>} : memref<16x128xf32, #tpu.memory_space<vmem>>, vector<8x128xf32>,
    %c1_i32 = arith.constant 1 : i32
    %11 = arith.cmpi eq, %arg0, %c1_i32 : i32
    %12 = arith.extui %11 : i1 to i32
    %c0_i32 = arith.constant 0 : i32
    %13 = arith.cmpi ne, %12, %c0_i32 : i32
    scf.if %13 {
      %c0_6 = arith.constant 0 : index
      %c0_7 = arith.constant 0 : index
      %14 = vector.load %arg11[%c0_6, %c0_7] : memref<16x128xf32, #tpu.memory_space<vmem>>, vector<16x128xf32>
      %cst_8 = arith.constant 3.906250e-03 : f32
      %15 = vector.broadcast %cst_8 : f32 to vector<16x128xf32>
      %16 = arith.mulf %14, %15 : vector<16x128xf32>
      %17 = arith.truncf %16 : vector<16x128xf32> to vector<16x128xbf16>
      %c0_9 = arith.constant 0 : index
      %c0_10 = arith.constant 0 : index
      %18 = vector.load %arg3[%c0_9, %c0_10] : memref<128x128xbf16, #tpu.memory_space<vmem>>, vector<128x128xbf16>
      %cst_11 = arith.constant dense<0.000000e+00> : vector<16x128xf32>
      %19 = tpu.matmul %17, %18, %cst_11 {dimension_numbers = #tpu.dot_dimension_numbers<[1], [0], [0], [1], [0, 0, 1, 1], [], []>} : vector<16x128xbf16>, vector<128x128xbf16>, vector<16x128xf32> -> vector<16x128xf32>
      %c0_12 = arith.constant 0 : index
      %c0_13 = arith.constant 0 : index
      %20 = vector.load %arg4[%c0_12, %c0_13] : memref<1x128xf32, #tpu.memory_space<vmem>>, vector<1x128xf32>
      %c0_14 = arith.constant 0 : index
      %c0_15 = arith.constant 0 : index
      %21 = vector.load %arg5[%c0_14, %c0_15] : memref<1x128xf32, #tpu.memory_space<vmem>>, vector<1x128xf32>
      %22 = vector.shape_cast %19 : vector<16x128xf32> to vector<2x8x128xf32>
      %cst_16 = arith.constant dense<0.000000e+00> : vector<2x128xf32>
      %23 = vector.multi_reduction <add>, %22, %cst_16 [1] : vector<2x8x128xf32> to vector<2x128xf32>
      %24 = vector.shape_cast %23 : vector<2x128xf32> to vector<2x1x128xf32>
      %cst_17 = arith.constant 8.000000e+00 : f32
      %25 = vector.broadcast %cst_17 : f32 to vector<2x1x128xf32>
      %26 = arith.divf %24, %25 : vector<2x1x128xf32>
      %27 = vector.broadcast %26 : vector<2x1x128xf32> to vector<2x8x128xf32>
      %28 = arith.subf %22, %27 : vector<2x8x128xf32>
      %29 = arith.mulf %28, %28 : vector<2x8x128xf32>
      %cst_18 = arith.constant dense<0.000000e+00> : vector<2x128xf32>
      %30 = vector.multi_reduction <add>, %29, %cst_18 [1] : vector<2x8x128xf32> to vector<2x128xf32>
      %31 = vector.shape_cast %30 : vector<2x128xf32> to vector<2x1x128xf32>
      %cst_19 = arith.constant 8.000000e+00 : f32
      %32 = vector.broadcast %cst_19 : f32 to vector<2x1x128xf32>
      %33 = arith.divf %31, %32 : vector<2x1x128xf32>
      %34 = vector.broadcast %26 : vector<2x1x128xf32> to vector<2x8x128xf32>
      %35 = arith.subf %22, %34 : vector<2x8x128xf32>
      %cst_20 = arith.constant 9.99999974E-6 : f32
      %36 = vector.broadcast %cst_20 : f32 to vector<2x1x128xf32>
      %37 = arith.addf %33, %36 : vector<2x1x128xf32>
      %38 = math.rsqrt %37 : vector<2x1x128xf32>
      %39 = vector.broadcast %38 : vector<2x1x128xf32> to vector<2x8x128xf32>
      %40 = arith.mulf %35, %39 : vector<2x8x128xf32>
      %41 = vector.shape_cast %40 : vector<2x8x128xf32> to vector<16x128xf32>
      %42 = vector.broadcast %20 : vector<1x128xf32> to vector<16x128xf32>
      %43 = arith.mulf %41, %42 : vector<16x128xf32>
      %44 = vector.broadcast %21 : vector<1x128xf32> to vector<16x128xf32>
      %45 = arith.addf %43, %44 : vector<16x128xf32>
      %cst_21 = arith.constant 0.000000e+00 : f32
      %46 = vector.broadcast %cst_21 : f32 to vector<16x128xf32>
      %47 = arith.maximumf %45, %46 : vector<16x128xf32>
      %48 = arith.truncf %47 : vector<16x128xf32> to vector<16x128xbf16>
      %c0_22 = arith.constant 0 : index
      %c0_23 = arith.constant 0 : index
      %49 = vector.load %arg6[%c0_22, %c0_23] : memref<128x128xbf16, #tpu.memory_space<vmem>>, vector<128x128xbf16>
      %cst_24 = arith.constant dense<0.000000e+00> : vector<16x128xf32>
      %50 = tpu.matmul %48, %49, %cst_24 {dimension_numbers = #tpu.dot_dimension_numbers<[1], [0], [0], [1], [0, 0, 1, 1], [], []>} : vector<16x128xbf16>, vector<128x128xbf16>, vector<16x128xf32> -> vector<16x128xf32>
      %c0_25 = arith.constant 0 : index
      %c0_26 = arith.constant 0 : index
      %51 = vector.load %arg7[%c0_25, %c0_26] : memref<1x128xf32, #tpu.memory_space<vmem>>, vector<1x128xf32>
      %c0_27 = arith.constant 0 : index
      %c0_28 = arith.constant 0 : index
      %52 = vector.load %arg8[%c0_27, %c0_28] : memref<1x128xf32, #tpu.memory_space<vmem>>, vector<1x128xf32>
      %53 = vector.shape_cast %50 : vector<16x128xf32> to vector<2x8x128xf32>
      %cst_29 = arith.constant dense<0.000000e+00> : vector<2x128xf32>
      %54 = vector.multi_reduction <add>, %53, %cst_29 [1] : vector<2x8x128xf32> to vector<2x128xf32>
      %55 = vector.shape_cast %54 : vector<2x128xf32> to vector<2x1x128xf32>
      %cst_30 = arith.constant 8.000000e+00 : f32
      %56 = vector.broadcast %cst_30 : f32 to vector<2x1x128xf32>
      %57 = arith.divf %55, %56 : vector<2x1x128xf32>
      %58 = vector.broadcast %57 : vector<2x1x128xf32> to vector<2x8x128xf32>
      %59 = arith.subf %53, %58 : vector<2x8x128xf32>
      %60 = arith.mulf %59, %59 : vector<2x8x128xf32>
      %cst_31 = arith.constant dense<0.000000e+00> : vector<2x128xf32>
      %61 = vector.multi_reduction <add>, %60, %cst_31 [1] : vector<2x8x128xf32> to vector<2x128xf32>
      %62 = vector.shape_cast %61 : vector<2x128xf32> to vector<2x1x128xf32>
      %cst_32 = arith.constant 8.000000e+00 : f32
      %63 = vector.broadcast %cst_32 : f32 to vector<2x1x128xf32>
      %64 = arith.divf %62, %63 : vector<2x1x128xf32>
      %65 = vector.broadcast %57 : vector<2x1x128xf32> to vector<2x8x128xf32>
      %66 = arith.subf %53, %65 : vector<2x8x128xf32>
      %cst_33 = arith.constant 9.99999974E-6 : f32
      %67 = vector.broadcast %cst_33 : f32 to vector<2x1x128xf32>
      %68 = arith.addf %64, %67 : vector<2x1x128xf32>
      %69 = math.rsqrt %68 : vector<2x1x128xf32>
      %70 = vector.broadcast %69 : vector<2x1x128xf32> to vector<2x8x128xf32>
      %71 = arith.mulf %66, %70 : vector<2x8x128xf32>
      %72 = vector.shape_cast %71 : vector<2x8x128xf32> to vector<16x128xf32>
      %73 = vector.broadcast %51 : vector<1x128xf32> to vector<16x128xf32>
      %74 = arith.mulf %72, %73 : vector<16x128xf32>
      %75 = vector.broadcast %52 : vector<1x128xf32> to vector<16x128xf32>
      %76 = arith.addf %74, %75 : vector<16x128xf32>
      %cst_34 = arith.constant 0.000000e+00 : f32
      %77 = vector.broadcast %cst_34 : f32 to vector<16x128xf32>
      %78 = arith.maximumf %76, %77 : vector<16x128xf32>
      %79 = arith.truncf %78 : vector<16x128xf32> to vector<16x128xbf16>
      %c0_35 = arith.constant 0 : index
      %c0_36 = arith.constant 0 : index
      %80 = vector.load %arg9[%c0_35, %c0_36] : memref<128x128xbf16, #tpu.memory_space<vmem>>, vector<128x128xbf16>
      %cst_37 = arith.constant dense<0.000000e+00> : vector<16x128xf32>
      %81 = tpu.matmul %79, %80, %cst_37 {dimension_numbers = #tpu.dot_dimension_numbers<[1], [0], [0], [1], [0, 0, 1, 1], [], []>} : vector<16x128xbf16>, vector<128x128xbf16>, vector<16x128xf32> -> vector<16x128xf32>
      %82 = vector.shape_cast %81 : vector<16x128xf32> to vector<2x8x128xf32>
      %cst_38 = arith.constant dense<0.000000e+00> : vector<2x128xf32>
      %83 = vector.multi_reduction <add>, %82, %cst_38 [1] : vector<2x8x128xf32> to vector<2x128xf32>
      %84 = vector.shape_cast %83 : vector<2x128xf32> to vector<2x1x128xf32>
      %cst_39 = arith.constant 8.000000e+00 : f32
      %85 = vector.broadcast %cst_39 : f32 to vector<2x1x128xf32>
      %86 = arith.divf %84, %85 : vector<2x1x128xf32>
      %87 = vector.broadcast %86 : vector<2x1x128xf32> to vector<2x8x128xf32>
      %88 = arith.subf %82, %87 : vector<2x8x128xf32>
      %89 = arith.mulf %88, %88 : vector<2x8x128xf32>
      %cst_40 = arith.constant dense<0.000000e+00> : vector<2x128xf32>
      %90 = vector.multi_reduction <add>, %89, %cst_40 [1] : vector<2x8x128xf32> to vector<2x128xf32>
      %91 = vector.shape_cast %90 : vector<2x128xf32> to vector<2x1x128xf32>
      %cst_41 = arith.constant 8.000000e+00 : f32
      %92 = vector.broadcast %cst_41 : f32 to vector<2x1x128xf32>
      %93 = arith.divf %91, %92 : vector<2x1x128xf32>
      %94 = vector.broadcast %86 : vector<2x1x128xf32> to vector<2x8x128xf32>
      %95 = arith.subf %82, %94 : vector<2x8x128xf32>
      %cst_42 = arith.constant 9.99999974E-6 : f32
      %96 = vector.broadcast %cst_42 : f32 to vector<2x1x128xf32>
      %97 = arith.addf %93, %96 : vector<2x1x128xf32>
      %98 = math.rsqrt %97 : vector<2x1x128xf32>
      %99 = vector.broadcast %98 : vector<2x1x128xf32> to vector<2x8x128xf32>
      %100 = arith.mulf %95, %99 : vector<2x8x128xf32>
      %101 = vector.shape_cast %100 : vector<2x8x128xf32> to vector<16x128xf32>
      %102 = vector.extract_strided_slice %101 {offsets = [0, 0], sizes = [8, 128], strides = [1, 1]} : vector<16x128xf32> to vector<8x128xf32>
      %cst_43 = arith.constant 1.250000e-01 : f32
      %103 = vector.broadcast %cst_43 : f32 to vector<8x128xf32>
      %104 = arith.mulf %102, %103 : vector<8x128xf32>
      %105 = vector.extract_strided_slice %101 {offsets = [8, 0], sizes = [8, 128], strides = [1, 1]} : vector<16x128xf32> to vector<8x128xf32>
      %cst_44 = arith.constant dense<0.000000e+00> : vector<128x128xf32>
      %106 = tpu.matmul %104, %105, %cst_44 {dimension_numbers = #tpu.dot_dimension_numbers<[0], [0], [1], [1], [0, 1, 1, 1], [], []>} : vector<8x128xf32>, vector<8x128xf32>, vector<128x128xf32> -> vector<128x128xf32>
      %107 = tpu.iota {dimensions = array<i32: 0>} : vector<128x128xi32>
      %108 = tpu.iota {dimensions = array<i32: 1>} : vector<128x128xi32>
      %109 = arith.cmpi eq, %107, %108 : vector<128x128xi32>
      %cst_45 = arith.constant 1.000000e+00 : f32
      %110 = vector.broadcast %cst_45 : f32 to vector<128x128xf32>
      %111 = arith.subf %106, %110 : vector<128x128xf32>
      %112 = arith.mulf %111, %111 : vector<128x128xf32>
      %cst_46 = arith.constant 5.100000e-03 : f32
      %113 = vector.broadcast %cst_46 : f32 to vector<128x128xf32>
      %114 = arith.mulf %113, %106 : vector<128x128xf32>
      %115 = arith.mulf %114, %106 : vector<128x128xf32>
      %116 = arith.select %109, %112, %115 : vector<128x128xi1>, vector<128x128xf32>
      %117 = vector.shape_cast %116 : vector<128x128xf32> to vector<1x128x128xf32>
      %cst_47 = arith.constant dense<0.000000e+00> : vector<1xf32>
      %118 = vector.multi_reduction <add>, %117, %cst_47 [1, 2] : vector<1x128x128xf32> to vector<1xf32>
      %119 = vector.shape_cast %118 : vector<1xf32> to vector<1x1x1xf32>
      %120 = vector.extract %119[0, 0, 0] : f32 from vector<1x1x1xf32>
      %c0_48 = arith.constant 0 : index
      %c0_49 = arith.constant 0 : index
      %121 = memref.load %arg10[%c0_48, %c0_49] : memref<1x1xf32, #tpu.memory_space<smem>>
      memref.store %120, %arg10[%c0_48, %c0_49] : memref<1x1xf32, #tpu.memory_space<smem>>
    } else {
    }
    return
  }
  func.func @transform_0(%arg0: i32) -> (i32, i32) {
    %c0_i32 = arith.constant 0 : i32
    %c0_i32_0 = arith.constant 0 : i32
    return %arg0, %c0_i32 : i32, i32
  }
  func.func @transform_1(%arg0: i32) -> (i32, i32) {
    %c0_i32 = arith.constant 0 : i32
    %c0_i32_0 = arith.constant 0 : i32
    %c0_i32_1 = arith.constant 0 : i32
    return %c0_i32, %c0_i32_0 : i32, i32
  }
  func.func @transform_2(%arg0: i32) -> (i32, i32) {
    %c0_i32 = arith.constant 0 : i32
    %c0_i32_0 = arith.constant 0 : i32
    %c0_i32_1 = arith.constant 0 : i32
    return %c0_i32, %c0_i32_0 : i32, i32
  }
  func.func @transform_3(%arg0: i32) -> (i32, i32) {
    %c0_i32 = arith.constant 0 : i32
    %c0_i32_0 = arith.constant 0 : i32
    %c0_i32_1 = arith.constant 0 : i32
    return %c0_i32, %c0_i32_0 : i32, i32
  }
  func.func @transform_4(%arg0: i32) -> (i32, i32) {
    %c0_i32 = arith.constant 0 : i32
    %c0_i32_0 = arith.constant 0 : i32
    %c0_i32_1 = arith.constant 0 : i32
    return %c0_i32, %c0_i32_0 : i32, i32
  }
  func.func @transform_5(%arg0: i32) -> (i32, i32) {
    %c0_i32 = arith.constant 0 : i32
    %c0_i32_0 = arith.constant 0 : i32
    %c0_i32_1 = arith.constant 0 : i32
    return %c0_i32, %c0_i32_0 : i32, i32
  }
  func.func @transform_6(%arg0: i32) -> (i32, i32) {
    %c0_i32 = arith.constant 0 : i32
    %c0_i32_0 = arith.constant 0 : i32
    %c0_i32_1 = arith.constant 0 : i32
    return %c0_i32, %c0_i32_0 : i32, i32
  }
  func.func @transform_7(%arg0: i32) -> (i32, i32) {
    %c0_i32 = arith.constant 0 : i32
    %c0_i32_0 = arith.constant 0 : i32
    %c0_i32_1 = arith.constant 0 : i32
    return %c0_i32, %c0_i32_0 : i32, i32
  }
  func.func @transform_8(%arg0: i32) -> (i32, i32) {
    %c0_i32 = arith.constant 0 : i32
    %c0_i32_0 = arith.constant 0 : i32
    %c0_i32_1 = arith.constant 0 : i32
    return %c0_i32, %c0_i32_0 : i32, i32
  }
  func.func @transform_9(%arg0: i32) -> (i32, i32) {
    %c0_i32 = arith.constant 0 : i32
    %c0_i32_0 = arith.constant 0 : i32
    %c0_i32_1 = arith.constant 0 : i32
    return %c0_i32, %c0_i32_0 : i32, i32
  }
}

</mosaic_0001>

<llo_original>
// kernel: barlow_twins_forward.1
$region0: #{barlow_twins_forward.1}
  #allocation0 [shape = 'u32[]', space=smem, size = 0x4, offset = 0x4, fixed_abs, tag = 'smem constant byte address 0x4 - core index']
  #allocation1 [shape = 'u32[144,128]{1,0:T(1,128)}', space=vmem, size = 0x12000, scoped, tag = 'internal scratch']
  #allocation2 [shape = 'f32[16,128]{1,0:T(8,128)}', space=vmem, size = 0x2000, scoped, tag = 'scratch operand']
  %s0 = inlined_call_operand.vmem [shape: bf16[4096,36], index: 0, kind: input, shape index: {}]
  %s1 = inlined_call_operand.vmem [shape: bf16[36,128], index: 1, kind: input, shape index: {}]
  %s2 = inlined_call_operand.vmem [shape: bf16[128,128], index: 2, kind: input, shape index: {}]
  %s3 = inlined_call_operand.vmem [shape: f32[1,128], index: 3, kind: input, shape index: {}]
  %s4 = inlined_call_operand.vmem [shape: f32[1,128], index: 4, kind: input, shape index: {}]
  %s5 = inlined_call_operand.vmem [shape: bf16[128,128], index: 5, kind: input, shape index: {}]
  %s6 = inlined_call_operand.vmem [shape: f32[1,128], index: 6, kind: input, shape index: {}]
  %s7 = inlined_call_operand.vmem [shape: f32[1,128], index: 7, kind: input, shape index: {}]
  %s8 = inlined_call_operand.vmem [shape: bf16[128,128], index: 8, kind: input, shape index: {}]
  %s9 = inlined_call_operand.hbm [shape: f32[1,1], index: 9, kind: output, shape index: {}]
  %s10 = sld [smem:[#allocation0]]
  $region73: #{barlow_twins_forward.1} parent=0
    _
  %s12 = ssub.s32 1, %s10
  %s13 = scalar_select 0, %s12, %s10
  $region1: #{barlow_twins_forward.1} parent=0
    #allocation3 [shape = 'u8[512]{0}', space=smem, size = 0x200, scoped, tag = 'output window, operand 0, single buffered']
    #allocation4 [shape = 's32[2]{0}', space=sflag, size = 0x8, scoped, tag = 'scoped memory for barlow_twins_forward.1']
    %14 = vsyncpa [#allocation4], 0
    loop: start=0, step=1, limit=4
    $region2: #{barlow_twins_forward.1} parent=1 // loop_pre_header
      _
    $region3: #{barlow_twins_forward.1} parent=1 // loop_header
      %s16 = sphi 0, %s20
      %p17 = scmp.ge.s32.totalorder %s16, 4
      %s26 = sphi 0, %s28
      %s29 = sphi 0, %s26
      %s30 = sphi 0, %s29
      %s46 = sphi 0, %s30
      %s50 = sphi 0, %s50
      %s52 = sphi 0, %s50
      %s53 = sphi 0, %s52
      %s67 = sphi 0, %s53
      %s71 = sphi 0, %s71
      %s73 = sphi 0, %s71
      %s74 = sphi 0, %s73
      %s88 = sphi 0, %s74
      %s92 = sphi 0, %s92
      %s94 = sphi 0, %s92
      %s95 = sphi 0, %s94
      %s109 = sphi 0, %s95
      %s113 = sphi 0, %s113
      %s115 = sphi 0, %s113
      %s116 = sphi 0, %s115
      %s130 = sphi 0, %s116
      %s134 = sphi 0, %s134
      %s136 = sphi 0, %s134
      %s137 = sphi 0, %s136
      %s151 = sphi 0, %s137
      %s155 = sphi 0, %s155
      %s157 = sphi 0, %s155
      %s158 = sphi 0, %s157
      %s172 = sphi 0, %s158
      %s176 = sphi 0, %s176
      %s178 = sphi 0, %s176
      %s179 = sphi 0, %s178
      %s193 = sphi 0, %s179
      %s197 = sphi 0, %s197
      %s199 = sphi 0, %s197
      %s200 = sphi 0, %s199
      %s214 = sphi 0, %s200
      %s218 = sphi 0, %s218
      %s220 = sphi 0, %s218
      %s221 = sphi 0, %s220
      %s235 = sphi 0, %s221
    $region4: #{barlow_twins_forward.1} parent=1 // loop_header_branch
      %19 = sbr.rel (%p17) target = $region8
    $region5: #{barlow_twins_forward.1} parent=1 // loop_body
      %s21 = ssub.s32 %s16, 1
      %s22 = ssub.s32 %s16, 2
      %s23 = sadd.s32 %s16, 1
      %s24 = ssub.s32 %s16, %s23
      %p25 = scmp.eq.s32.totalorder %s24, 0
      %s27 = sadd.s32 %s26, 1
      %s28 = scalar_select %p25, %s26, %s27
      %p31 = pneg %p25
      %p32 = scmp.eq.s32.totalorder %s16, 1
      %p33 = por %p31, %p32
      %p34 = scmp.ne.s32.totalorder %s26, %s29
      %p35 = scmp.eq.s32.totalorder %s16, 0
      %p36 = por %p34, %p35
      %p37 = scmp.ne.s32.totalorder %s26, %s29
      %p38 = scmp.eq.s32.totalorder %s21, 1
      %p39 = por %p37, %p38
      %p40 = scmp.ne.s32.totalorder %s29, %s30
      %p41 = scmp.eq.s32.totalorder %s21, 0
      %p42 = por %p40, %p41
      %p43 = scmp.ne.s32.totalorder %s29, %s30
      %p44 = scmp.eq.s32.totalorder %s22, 1
      %p45 = por %p43, %p44
      %p47 = scmp.ne.s32.totalorder %s30, %s46
      %p48 = scmp.eq.s32.totalorder %s22, 0
      %p49 = por %p47, %p48
      %s51 = sadd.s32 %s50, 1
      %p54 = scmp.eq.s32.totalorder %s16, 1
      %p55 = scmp.ne.s32.totalorder %s50, %s52
      %p56 = scmp.eq.s32.totalorder %s16, 0
      %p57 = por %p55, %p56
      %p58 = scmp.ne.s32.totalorder %s50, %s52
      %p59 = scmp.eq.s32.totalorder %s21, 1
      %p60 = por %p58, %p59
      %p61 = scmp.ne.s32.totalorder %s52, %s53
      %p62 = scmp.eq.s32.totalorder %s21, 0
      %p63 = por %p61, %p62
      %p64 = scmp.ne.s32.totalorder %s52, %s53
      %p65 = scmp.eq.s32.totalorder %s22, 1
      %p66 = por %p64, %p65
      %p68 = scmp.ne.s32.totalorder %s53, %s67
      %p69 = scmp.eq.s32.totalorder %s22, 0
      %p70 = por %p68, %p69
      %s72 = sadd.s32 %s71, 1
      %p75 = scmp.eq.s32.totalorder %s16, 1
      %p76 = scmp.ne.s32.totalorder %s71, %s73
      %p77 = scmp.eq.s32.totalorder %s16, 0
      %p78 = por %p76, %p77
      %p79 = scmp.ne.s32.totalorder %s71, %s73
      %p80 = scmp.eq.s32.totalorder %s21, 1
      %p81 = por %p79, %p80
      %p82 = scmp.ne.s32.totalorder %s73, %s74
      %p83 = scmp.eq.s32.totalorder %s21, 0
      %p84 = por %p82, %p83
      %p85 = scmp.ne.s32.totalorder %s73, %s74
      %p86 = scmp.eq.s32.totalorder %s22, 1
      %p87 = por %p85, %p86
      %p89 = scmp.ne.s32.totalorder %s74, %s88
      %p90 = scmp.eq.s32.totalorder %s22, 0
      %p91 = por %p89, %p90
      %s93 = sadd.s32 %s92, 1
      %p96 = scmp.eq.s32.totalorder %s16, 1
      %p97 = scmp.ne.s32.totalorder %s92, %s94
      %p98 = scmp.eq.s32.totalorder %s16, 0
      %p99 = por %p97, %p98
      %p100 = scmp.ne.s32.totalorder %s92, %s94
      %p101 = scmp.eq.s32.totalorder %s21, 1
      %p102 = por %p100, %p101
      %p103 = scmp.ne.s32.totalorder %s94, %s95
      %p104 = scmp.eq.s32.totalorder %s21, 0
      %p105 = por %p103, %p104
      %p106 = scmp.ne.s32.totalorder %s94, %s95
      %p107 = scmp.eq.s32.totalorder %s22, 1
      %p108 = por %p106, %p107
      %p110 = scmp.ne.s32.totalorder %s95, %s109
      %p111 = scmp.eq.s32.totalorder %s22, 0
      %p112 = por %p110, %p111
      %s114 = sadd.s32 %s113, 1
      %p117 = scmp.eq.s32.totalorder %s16, 1
      %p118 = scmp.ne.s32.totalorder %s113, %s115
      %p119 = scmp.eq.s32.totalorder %s16, 0
      %p120 = por %p118, %p119
      %p121 = scmp.ne.s32.totalorder %s113, %s115
      %p122 = scmp.eq.s32.totalorder %s21, 1
      %p123 = por %p121, %p122
      %p124 = scmp.ne.s32.totalorder %s115, %s116
      %p125 = scmp.eq.s32.totalorder %s21, 0
      %p126 = por %p124, %p125
      %p127 = scmp.ne.s32.totalorder %s115, %s116
      %p128 = scmp.eq.s32.totalorder %s22, 1
      %p129 = por %p127, %p128
      %p131 = scmp.ne.s32.totalorder %s116, %s130
      %p132 = scmp.eq.s32.totalorder %s22, 0
      %p133 = por %p131, %p132
      %s135 = sadd.s32 %s134, 1
      %p138 = scmp.eq.s32.totalorder %s16, 1
      %p139 = scmp.ne.s32.totalorder %s134, %s136
      %p140 = scmp.eq.s32.totalorder %s16, 0
      %p141 = por %p139, %p140
      %p142 = scmp.ne.s32.totalorder %s134, %s136
      %p143 = scmp.eq.s32.totalorder %s21, 1
      %p144 = por %p142, %p143
      %p145 = scmp.ne.s32.totalorder %s136, %s137
      %p146 = scmp.eq.s32.totalorder %s21, 0
      %p147 = por %p145, %p146
      %p148 = scmp.ne.s32.totalorder %s136, %s137
      %p149 = scmp.eq.s32.totalorder %s22, 1
      %p150 = por %p148, %p149
      %p152 = scmp.ne.s32.totalorder %s137, %s151
      %p153 = scmp.eq.s32.totalorder %s22, 0
      %p154 = por %p152, %p153
      %s156 = sadd.s32 %s155, 1
      %p159 = scmp.eq.s32.totalorder %s16, 1
      %p160 = scmp.ne.s32.totalorder %s155, %s157
      %p161 = scmp.eq.s32.totalorder %s16, 0
      %p162 = por %p160, %p161
      %p163 = scmp.ne.s32.totalorder %s155, %s157
      %p164 = scmp.eq.s32.totalorder %s21, 1
      %p165 = por %p163, %p164
      %p166 = scmp.ne.s32.totalorder %s157, %s158
      %p167 = scmp.eq.s32.totalorder %s21, 0
      %p168 = por %p166, %p167
      %p169 = scmp.ne.s32.totalorder %s157, %s158
      %p170 = scmp.eq.s32.totalorder %s22, 1
      %p171 = por %p169, %p170
      %p173 = scmp.ne.s32.totalorder %s158, %s172
      %p174 = scmp.eq.s32.totalorder %s22, 0
      %p175 = por %p173, %p174
      %s177 = sadd.s32 %s176, 1
      %p180 = scmp.eq.s32.totalorder %s16, 1
      %p181 = scmp.ne.s32.totalorder %s176, %s178
      %p182 = scmp.eq.s32.totalorder %s16, 0
      %p183 = por %p181, %p182
      %p184 = scmp.ne.s32.totalorder %s176, %s178
      %p185 = scmp.eq.s32.totalorder %s21, 1
      %p186 = por %p184, %p185
      %p187 = scmp.ne.s32.totalorder %s178, %s179
      %p188 = scmp.eq.s32.totalorder %s21, 0
      %p189 = por %p187, %p188
      %p190 = scmp.ne.s32.totalorder %s178, %s179
      %p191 = scmp.eq.s32.totalorder %s22, 1
      %p192 = por %p190, %p191
      %p194 = scmp.ne.s32.totalorder %s179, %s193
      %p195 = scmp.eq.s32.totalorder %s22, 0
      %p196 = por %p194, %p195
      %s198 = sadd.s32 %s197, 1
      %p201 = scmp.eq.s32.totalorder %s16, 1
      %p202 = scmp.ne.s32.totalorder %s197, %s199
      %p203 = scmp.eq.s32.totalorder %s16, 0
      %p204 = por %p202, %p203
      %p205 = scmp.ne.s32.totalorder %s197, %s199
      %p206 = scmp.eq.s32.totalorder %s21, 1
      %p207 = por %p205, %p206
      %p208 = scmp.ne.s32.totalorder %s199, %s200
      %p209 = scmp.eq.s32.totalorder %s21, 0
      %p210 = por %p208, %p209
      %p211 = scmp.ne.s32.totalorder %s199, %s200
      %p212 = scmp.eq.s32.totalorder %s22, 1
      %p213 = por %p211, %p212
      %p215 = scmp.ne.s32.totalorder %s200, %s214
      %p216 = scmp.eq.s32.totalorder %s22, 0
      %p217 = por %p215, %p216
      %s219 = sadd.s32 %s218, 1
      %p222 = scmp.eq.s32.totalorder %s16, 1
      %p223 = scmp.ne.s32.totalorder %s218, %s220
      %p224 = scmp.eq.s32.totalorder %s16, 0
      %p225 = por %p223, %p224
      %p226 = scmp.ne.s32.totalorder %s218, %s220
      %p227 = scmp.eq.s32.totalorder %s21, 1
      %p228 = por %p226, %p227
      %p229 = scmp.ne.s32.totalorder %s220, %s221
      %p230 = scmp.eq.s32.totalorder %s21, 0
      %p231 = por %p229, %p230
      %p232 = scmp.ne.s32.totalorder %s220, %s221
      %p233 = scmp.eq.s32.totalorder %s22, 1
      %p234 = por %p232, %p233
      %p236 = scmp.ne.s32.totalorder %s221, %s235
      %p237 = scmp.eq.s32.totalorder %s22, 0
      %p238 = por %p236, %p237
      %p239 = scmp.le.s32.totalorder 1, %s16
      %p240 = scmp.lt.s32.totalorder %s16, 3
      %p241 = pnand %p239, %p240
      %p242 = pneg %p241
      // Predicated region
      $region9: #{barlow_twins_forward.1} parent=5 // pred_check
        _
      $region10: #{barlow_twins_forward.1} parent=5 // pred_check_branch
        %244 = sbr.rel (%p241) target = $region12
      $region11: #{barlow_twins_forward.1} parent=5 // pred_region
        %s245 = ssub.s32 %s16, 1
        // Predicated region
        $region13: #{barlow_twins_forward.1} parent=11 // pred_check
          %p246 = pneg %p63
        $region14: #{barlow_twins_forward.1} parent=11 // pred_check_branch
          %248 = sbr.rel (%p246) target = $region16
        $region15: #{barlow_twins_forward.1} parent=11 // pred_region
          _
        $region16: #{barlow_twins_forward.1} parent=11 // pred_fallthru
          _
        // Predicated region
        $region17: #{barlow_twins_forward.1} parent=11 // pred_check
          %p249 = pneg %p84
        $region18: #{barlow_twins_forward.1} parent=11 // pred_check_branch
          %251 = sbr.rel (%p249) target = $region20
        $region19: #{barlow_twins_forward.1} parent=11 // pred_region
          _
        $region20: #{barlow_twins_forward.1} parent=11 // pred_fallthru
          _
        // Predicated region
        $region21: #{barlow_twins_forward.1} parent=11 // pred_check
          %p252 = pneg %p105
        $region22: #{barlow_twins_forward.1} parent=11 // pred_check_branch
          %254 = sbr.rel (%p252) target = $region24
        $region23: #{barlow_twins_forward.1} parent=11 // pred_region
          _
        $region24: #{barlow_twins_forward.1} parent=11 // pred_fallthru
          _
        // Predicated region
        $region25: #{barlow_twins_forward.1} parent=11 // pred_check
          %p255 = pneg %p126
        $region26: #{barlow_twins_forward.1} parent=11 // pred_check_branch
          %257 = sbr.rel (%p255) target = $region28
        $region27: #{barlow_twins_forward.1} parent=11 // pred_region
          _
        $region28: #{barlow_twins_forward.1} parent=11 // pred_fallthru
          _
        // Predicated region
        $region29: #{barlow_twins_forward.1} parent=11 // pred_check
          %p258 = pneg %p147
        $region30: #{barlow_twins_forward.1} parent=11 // pred_check_branch
          %260 = sbr.rel (%p258) target = $region32
        $region31: #{barlow_twins_forward.1} parent=11 // pred_region
          _
        $region32: #{barlow_twins_forward.1} parent=11 // pred_fallthru
          _
        // Predicated region
        $region33: #{barlow_twins_forward.1} parent=11 // pred_check
          %p261 = pneg %p168
        $region34: #{barlow_twins_forward.1} parent=11 // pred_check_branch
          %263 = sbr.rel (%p261) target = $region36
        $region35: #{barlow_twins_forward.1} parent=11 // pred_region
          _
        $region36: #{barlow_twins_forward.1} parent=11 // pred_fallthru
          _
        // Predicated region
        $region37: #{barlow_twins_forward.1} parent=11 // pred_check
          %p264 = pneg %p189
        $region38: #{barlow_twins_forward.1} parent=11 // pred_check_branch
          %266 = sbr.rel (%p264) target = $region40
        $region39: #{barlow_twins_forward.1} parent=11 // pred_region
          _
        $region40: #{barlow_twins_forward.1} parent=11 // pred_fallthru
          _
        // Predicated region
        $region41: #{barlow_twins_forward.1} parent=11 // pred_check
          %p267 = pneg %p210
        $region42: #{barlow_twins_forward.1} parent=11 // pred_check_branch
          %269 = sbr.rel (%p267) target = $region44
        $region43: #{barlow_twins_forward.1} parent=11 // pred_region
          _
        $region44: #{barlow_twins_forward.1} parent=11 // pred_fallthru
          _
      $region12: #{barlow_twins_forward.1} parent=5 // pred_fallthru
        _
      %p270 = scmp.lt.s32.totalorder %s16, 2
      // Predicated region
      $region45: #{barlow_twins_forward.1} parent=5 // pred_check
        %p271 = pneg %p270
      $region46: #{barlow_twins_forward.1} parent=5 // pred_check_branch
        %273 = sbr.rel (%p271) target = $region48
      $region47: #{barlow_twins_forward.1} parent=5 // pred_region
        // Predicated region
        $region49: #{barlow_twins_forward.1} parent=47 // pred_check
          %p274 = pneg %p36
        $region50: #{barlow_twins_forward.1} parent=47 // pred_check_branch
          %276 = sbr.rel (%p274) target = $region52
        $region51: #{barlow_twins_forward.1} parent=47 // pred_region
          %s277 = smul.u32 256, %s16
          %p278 = scmp.lt.s32.totalorder %s277, 511
          %s279 = scalar_select %p278, %s277, 511
          %s280 = smul.addr %s279, 4
          %s281 = scalar_lea.vmem %s0, %s280
          %s282 = smul.u32 256, %s16
        $region52: #{barlow_twins_forward.1} parent=47 // pred_fallthru
          _
      $region48: #{barlow_twins_forward.1} parent=5 // pred_fallthru
        _
      %p283 = scmp.le.s32.totalorder 1, %s16
      %p284 = scmp.lt.s32.totalorder %s16, 3
      %p285 = pnand %p283, %p284
      %p286 = pneg %p285
      // Predicated region
      $region53: #{barlow_twins_forward.1} parent=5 // pred_check
        _
      $region54: #{barlow_twins_forward.1} parent=5 // pred_check_branch
        %288 = sbr.rel (%p285) target = $region56
      $region55: #{barlow_twins_forward.1} parent=5 // pred_region
        %s289 = ssub.s32 %s16, 1
        %s290 = smul.u32 256, %s21
        %p291 = scmp.lt.s32.totalorder %s290, 511
        %s292 = scalar_select %p291, %s290, 511
        %s293 = smul.addr %s292, 4
        %s294 = scalar_lea.vmem %s0, %s293
        %p295 = pneg %p42
        %p296 = pneg %p39
        %p297 = pneg %p63
        %p298 = pneg %p60
        %p299 = pneg %p84
        %p300 = pneg %p81
        %p301 = pneg %p105
        %p302 = pneg %p102
        %p303 = pneg %p126
        %p304 = pneg %p123
        %p305 = pneg %p147
        %p306 = pneg %p144
        %p307 = pneg %p168
        %p308 = pneg %p165
        %p309 = pneg %p189
        %p310 = pneg %p186
        %p311 = pneg %p210
        %p312 = pneg %p207
        %p313 = pneg %p231
        %p314 = pneg %p228
        %s315 = smul.u32 256, %s21
        %p316 = scmp.lt.s32.totalorder %s315, 511
        %s317 = scalar_select %p316, %s315, 511
        %s318 = smul.addr %s317, 4
        %s319 = scalar_lea.vmem %s0, %s318
        %s320 = smul.u32 256, %s21
        %v322 = vld [vmem:[%s319] sm:$0xf]
        %v323 = vld [vmem:[%s319 + $0x4] sm:$0xf]
        %v324 = vld [vmem:[%s319 + $0x8] sm:$0xf]
        %v325 = vld [vmem:[%s319 + $0xc] sm:$0xf]
        %v326 = vld [vmem:[%s319 + $0x10] sm:$0xf]
        %v327 = vld [vmem:[%s319 + $0x14] sm:$0xf]
        %v328 = vld [vmem:[%s319 + $0x18] sm:$0xf]
        %v329 = vld [vmem:[%s319 + $0x1c] sm:$0xf]
        %v330 = vld [vmem:[%s319 + $0x20] sm:$0xf]
        %v331 = vld [vmem:[%s319 + $0x24] sm:$0xf]
        %v332 = vld [vmem:[%s319 + $0x28] sm:$0xf]
        %v333 = vld [vmem:[%s319 + $0x2c] sm:$0xf]
        %v334 = vld [vmem:[%s319 + $0x30] sm:$0xf]
        %v335 = vld [vmem:[%s319 + $0x34] sm:$0xf]
        %v336 = vld [vmem:[%s319 + $0x38] sm:$0xf]
        %v337 = vld [vmem:[%s319 + $0x3c] sm:$0xf]
        %v338 = vld [vmem:[%s319 + $0x40] sm:$0xf]
        %v339 = vld [vmem:[%s319 + $0x44] sm:$0xf]
        %v340 = vld [vmem:[%s319 + $0x48] sm:$0xf]
        %v341 = vld [vmem:[%s319 + $0x4c] sm:$0xf]
        %v342 = vld [vmem:[%s319 + $0x50] sm:$0xf]
        %v343 = vld [vmem:[%s319 + $0x54] sm:$0xf]
        %v344 = vld [vmem:[%s319 + $0x58] sm:$0xf]
        %v345 = vld [vmem:[%s319 + $0x5c] sm:$0xf]
        %v346 = vld [vmem:[%s319 + $0x60] sm:$0xf]
        %v347 = vld [vmem:[%s319 + $0x64] sm:$0xf]
        %v348 = vld [vmem:[%s319 + $0x68] sm:$0xf]
        %v349 = vld [vmem:[%s319 + $0x6c] sm:$0xf]
        %v350 = vld [vmem:[%s319 + $0x70] sm:$0xf]
        %v351 = vld [vmem:[%s319 + $0x74] sm:$0xf]
        %v352 = vld [vmem:[%s319 + $0x78] sm:$0xf]
        %v353 = vld [vmem:[%s319 + $0x7c] sm:$0xf]
        %v354 = vld [vmem:[%s319 + $0x80] sm:$0xf]
        %v355 = vld [vmem:[%s319 + $0x84] sm:$0xf]
        %v356 = vld [vmem:[%s319 + $0x88] sm:$0xf]
        %v357 = vld [vmem:[%s319 + $0x8c] sm:$0xf]
        %v358 = vld [vmem:[%s319 + $0x90] sm:$0xf]
        %v359 = vld [vmem:[%s319 + $0x94] sm:$0xf]
        %v360 = vld [vmem:[%s319 + $0x98] sm:$0xf]
        %v361 = vld [vmem:[%s319 + $0x9c] sm:$0xf]
        %v362 = vld [vmem:[%s319 + $0xa0] sm:$0xf]
        %v363 = vld [vmem:[%s319 + $0xa4] sm:$0xf]
        %v364 = vld [vmem:[%s319 + $0xa8] sm:$0xf]
        %v365 = vld [vmem:[%s319 + $0xac] sm:$0xf]
        %v366 = vld [vmem:[%s319 + $0xb0] sm:$0xf]
        %v367 = vld [vmem:[%s319 + $0xb4] sm:$0xf]
        %v368 = vld [vmem:[%s319 + $0xb8] sm:$0xf]
        %v369 = vld [vmem:[%s319 + $0xbc] sm:$0xf]
        %v370 = vld [vmem:[%s319 + $0xc0] sm:$0xf]
        %v371 = vld [vmem:[%s319 + $0xc4] sm:$0xf]
        %v372 = vld [vmem:[%s319 + $0xc8] sm:$0xf]
        %v373 = vld [vmem:[%s319 + $0xcc] sm:$0xf]
        %v374 = vld [vmem:[%s319 + $0xd0] sm:$0xf]
        %v375 = vld [vmem:[%s319 + $0xd4] sm:$0xf]
        %v376 = vld [vmem:[%s319 + $0xd8] sm:$0xf]
        %v377 = vld [vmem:[%s319 + $0xdc] sm:$0xf]
        %v378 = vld [vmem:[%s319 + $0xe0] sm:$0xf]
        %v379 = vld [vmem:[%s319 + $0xe4] sm:$0xf]
        %v380 = vld [vmem:[%s319 + $0xe8] sm:$0xf]
        %v381 = vld [vmem:[%s319 + $0xec] sm:$0xf]
        %v382 = vld [vmem:[%s319 + $0xf0] sm:$0xf]
        %v383 = vld [vmem:[%s319 + $0xf4] sm:$0xf]
        %v384 = vld [vmem:[%s319 + $0xf8] sm:$0xf]
        %v385 = vld [vmem:[%s319 + $0xfc] sm:$0xf]
        %v386 = vld [vmem:[%s319 + $0x100] sm:$0xf]
        %v387 = vld [vmem:[%s319 + $0x104] sm:$0xf]
        %v388 = vld [vmem:[%s319 + $0x108] sm:$0xf]
        %v389 = vld [vmem:[%s319 + $0x10c] sm:$0xf]
        %v390 = vld [vmem:[%s319 + $0x110] sm:$0xf]
        %v391 = vld [vmem:[%s319 + $0x114] sm:$0xf]
        %v392 = vld [vmem:[%s319 + $0x118] sm:$0xf]
        %v393 = vld [vmem:[%s319 + $0x11c] sm:$0xf]
        %v394 = vld [vmem:[%s319 + $0x120] sm:$0xf]
        %v395 = vld [vmem:[%s319 + $0x124] sm:$0xf]
        %v396 = vld [vmem:[%s319 + $0x128] sm:$0xf]
        %v397 = vld [vmem:[%s319 + $0x12c] sm:$0xf]
        %v398 = vld [vmem:[%s319 + $0x130] sm:$0xf]
        %v399 = vld [vmem:[%s319 + $0x134] sm:$0xf]
        %v400 = vld [vmem:[%s319 + $0x138] sm:$0xf]
        %v401 = vld [vmem:[%s319 + $0x13c] sm:$0xf]
        %v402 = vld [vmem:[%s319 + $0x140] sm:$0xf]
        %v403 = vld [vmem:[%s319 + $0x144] sm:$0xf]
        %v404 = vld [vmem:[%s319 + $0x148] sm:$0xf]
        %v405 = vld [vmem:[%s319 + $0x14c] sm:$0xf]
        %v406 = vld [vmem:[%s319 + $0x150] sm:$0xf]
        %v407 = vld [vmem:[%s319 + $0x154] sm:$0xf]
        %v408 = vld [vmem:[%s319 + $0x158] sm:$0xf]
        %v409 = vld [vmem:[%s319 + $0x15c] sm:$0xf]
        %v410 = vld [vmem:[%s319 + $0x160] sm:$0xf]
        %v411 = vld [vmem:[%s319 + $0x164] sm:$0xf]
        %v412 = vld [vmem:[%s319 + $0x168] sm:$0xf]
        %v413 = vld [vmem:[%s319 + $0x16c] sm:$0xf]
        %v414 = vld [vmem:[%s319 + $0x170] sm:$0xf]
        %v415 = vld [vmem:[%s319 + $0x174] sm:$0xf]
        %v416 = vld [vmem:[%s319 + $0x178] sm:$0xf]
        %v417 = vld [vmem:[%s319 + $0x17c] sm:$0xf]
        %v418 = vld [vmem:[%s319 + $0x180] sm:$0xf]
        %v419 = vld [vmem:[%s319 + $0x184] sm:$0xf]
        %v420 = vld [vmem:[%s319 + $0x188] sm:$0xf]
        %v421 = vld [vmem:[%s319 + $0x18c] sm:$0xf]
        %v422 = vld [vmem:[%s319 + $0x190] sm:$0xf]
        %v423 = vld [vmem:[%s319 + $0x194] sm:$0xf]
        %v424 = vld [vmem:[%s319 + $0x198] sm:$0xf]
        %v425 = vld [vmem:[%s319 + $0x19c] sm:$0xf]
        %v426 = vld [vmem:[%s319 + $0x1a0] sm:$0xf]
        %v427 = vld [vmem:[%s319 + $0x1a4] sm:$0xf]
        %v428 = vld [vmem:[%s319 + $0x1a8] sm:$0xf]
        %v429 = vld [vmem:[%s319 + $0x1ac] sm:$0xf]
        %v430 = vld [vmem:[%s319 + $0x1b0] sm:$0xf]
        %v431 = vld [vmem:[%s319 + $0x1b4] sm:$0xf]
        %v432 = vld [vmem:[%s319 + $0x1b8] sm:$0xf]
        %v433 = vld [vmem:[%s319 + $0x1bc] sm:$0xf]
        %v434 = vld [vmem:[%s319 + $0x1c0] sm:$0xf]
        %v435 = vld [vmem:[%s319 + $0x1c4] sm:$0xf]
        %v436 = vld [vmem:[%s319 + $0x1c8] sm:$0xf]
        %v437 = vld [vmem:[%s319 + $0x1cc] sm:$0xf]
        %v438 = vld [vmem:[%s319 + $0x1d0] sm:$0xf]
        %v439 = vld [vmem:[%s319 + $0x1d4] sm:$0xf]
        %v440 = vld [vmem:[%s319 + $0x1d8] sm:$0xf]
        %v441 = vld [vmem:[%s319 + $0x1dc] sm:$0xf]
        %v442 = vld [vmem:[%s319 + $0x1e0] sm:$0xf]
        %v443 = vld [vmem:[%s319 + $0x1e4] sm:$0xf]
        %v444 = vld [vmem:[%s319 + $0x1e8] sm:$0xf]
        %v445 = vld [vmem:[%s319 + $0x1ec] sm:$0xf]
        %v446 = vld [vmem:[%s319 + $0x1f0] sm:$0xf]
        %v447 = vld [vmem:[%s319 + $0x1f4] sm:$0xf]
        %v448 = vld [vmem:[%s319 + $0x1f8] sm:$0xf]
        %v449 = vld [vmem:[%s319 + $0x1fc] sm:$0xf]
        %v450 = vld [vmem:[%s319 + $0x200] sm:$0xf]
        %v451 = vld [vmem:[%s319 + $0x204] sm:$0xf]
        %v452 = vld [vmem:[%s319 + $0x208] sm:$0xf]
        %v453 = vld [vmem:[%s319 + $0x20c] sm:$0xf]
        %v454 = vld [vmem:[%s319 + $0x210] sm:$0xf]
        %v455 = vld [vmem:[%s319 + $0x214] sm:$0xf]
        %v456 = vld [vmem:[%s319 + $0x218] sm:$0xf]
        %v457 = vld [vmem:[%s319 + $0x21c] sm:$0xf]
        %v458 = vld [vmem:[%s319 + $0x220] sm:$0xf]
        %v459 = vld [vmem:[%s319 + $0x224] sm:$0xf]
        %v460 = vld [vmem:[%s319 + $0x228] sm:$0xf]
        %v461 = vld [vmem:[%s319 + $0x22c] sm:$0xf]
        %v462 = vld [vmem:[%s319 + $0x230] sm:$0xf]
        %v463 = vld [vmem:[%s319 + $0x234] sm:$0xf]
        %v464 = vld [vmem:[%s319 + $0x238] sm:$0xf]
        %v465 = vld [vmem:[%s319 + $0x23c] sm:$0xf]
        %v466 = vld [vmem:[%s319 + $0x240] sm:$0xf]
        %v467 = vld [vmem:[%s319 + $0x244] sm:$0xf]
        %v468 = vld [vmem:[%s319 + $0x248] sm:$0xf]
        %v469 = vld [vmem:[%s319 + $0x24c] sm:$0xf]
        %v470 = vld [vmem:[%s319 + $0x250] sm:$0xf]
        %v471 = vld [vmem:[%s319 + $0x254] sm:$0xf]
        %v472 = vld [vmem:[%s319 + $0x258] sm:$0xf]
        %v473 = vld [vmem:[%s319 + $0x25c] sm:$0xf]
        %v474 = vld [vmem:[%s319 + $0x260] sm:$0xf]
        %v475 = vld [vmem:[%s319 + $0x264] sm:$0xf]
        %v476 = vld [vmem:[%s319 + $0x268] sm:$0xf]
        %v477 = vld [vmem:[%s319 + $0x26c] sm:$0xf]
        %v478 = vld [vmem:[%s319 + $0x270] sm:$0xf]
        %v479 = vld [vmem:[%s319 + $0x274] sm:$0xf]
        %v480 = vld [vmem:[%s319 + $0x278] sm:$0xf]
        %v481 = vld [vmem:[%s319 + $0x27c] sm:$0xf]
        %v482 = vld [vmem:[%s319 + $0x280] sm:$0xf]
        %v483 = vld [vmem:[%s319 + $0x284] sm:$0xf]
        %v484 = vld [vmem:[%s319 + $0x288] sm:$0xf]
        %v485 = vld [vmem:[%s319 + $0x28c] sm:$0xf]
        %v486 = vld [vmem:[%s319 + $0x290] sm:$0xf]
        %v487 = vld [vmem:[%s319 + $0x294] sm:$0xf]
        %v488 = vld [vmem:[%s319 + $0x298] sm:$0xf]
        %v489 = vld [vmem:[%s319 + $0x29c] sm:$0xf]
        %v490 = vld [vmem:[%s319 + $0x2a0] sm:$0xf]
        %v491 = vld [vmem:[%s319 + $0x2a4] sm:$0xf]
        %v492 = vld [vmem:[%s319 + $0x2a8] sm:$0xf]
        %v493 = vld [vmem:[%s319 + $0x2ac] sm:$0xf]
        %v494 = vld [vmem:[%s319 + $0x2b0] sm:$0xf]
        %v495 = vld [vmem:[%s319 + $0x2b4] sm:$0xf]
        %v496 = vld [vmem:[%s319 + $0x2b8] sm:$0xf]
        %v497 = vld [vmem:[%s319 + $0x2bc] sm:$0xf]
        %v498 = vld [vmem:[%s319 + $0x2c0] sm:$0xf]
        %v499 = vld [vmem:[%s319 + $0x2c4] sm:$0xf]
        %v500 = vld [vmem:[%s319 + $0x2c8] sm:$0xf]
        %v501 = vld [vmem:[%s319 + $0x2cc] sm:$0xf]
        %v502 = vld [vmem:[%s319 + $0x2d0] sm:$0xf]
        %v503 = vld [vmem:[%s319 + $0x2d4] sm:$0xf]
        %v504 = vld [vmem:[%s319 + $0x2d8] sm:$0xf]
        %v505 = vld [vmem:[%s319 + $0x2dc] sm:$0xf]
        %v506 = vld [vmem:[%s319 + $0x2e0] sm:$0xf]
        %v507 = vld [vmem:[%s319 + $0x2e4] sm:$0xf]
        %v508 = vld [vmem:[%s319 + $0x2e8] sm:$0xf]
        %v509 = vld [vmem:[%s319 + $0x2ec] sm:$0xf]
        %v510 = vld [vmem:[%s319 + $0x2f0] sm:$0xf]
        %v511 = vld [vmem:[%s319 + $0x2f4] sm:$0xf]
        %v512 = vld [vmem:[%s319 + $0x2f8] sm:$0xf]
        %v513 = vld [vmem:[%s319 + $0x2fc] sm:$0xf]
        %v514 = vld [vmem:[%s319 + $0x300] sm:$0xf]
        %v515 = vld [vmem:[%s319 + $0x304] sm:$0xf]
        %v516 = vld [vmem:[%s319 + $0x308] sm:$0xf]
        %v517 = vld [vmem:[%s319 + $0x30c] sm:$0xf]
        %v518 = vld [vmem:[%s319 + $0x310] sm:$0xf]
        %v519 = vld [vmem:[%s319 + $0x314] sm:$0xf]
        %v520 = vld [vmem:[%s319 + $0x318] sm:$0xf]
        %v521 = vld [vmem:[%s319 + $0x31c] sm:$0xf]
        %v522 = vld [vmem:[%s319 + $0x320] sm:$0xf]
        %v523 = vld [vmem:[%s319 + $0x324] sm:$0xf]
        %v524 = vld [vmem:[%s319 + $0x328] sm:$0xf]
        %v525 = vld [vmem:[%s319 + $0x32c] sm:$0xf]
        %v526 = vld [vmem:[%s319 + $0x330] sm:$0xf]
        %v527 = vld [vmem:[%s319 + $0x334] sm:$0xf]
        %v528 = vld [vmem:[%s319 + $0x338] sm:$0xf]
        %v529 = vld [vmem:[%s319 + $0x33c] sm:$0xf]
        %v530 = vld [vmem:[%s319 + $0x340] sm:$0xf]
        %v531 = vld [vmem:[%s319 + $0x344] sm:$0xf]
        %v532 = vld [vmem:[%s319 + $0x348] sm:$0xf]
        %v533 = vld [vmem:[%s319 + $0x34c] sm:$0xf]
        %v534 = vld [vmem:[%s319 + $0x350] sm:$0xf]
        %v535 = vld [vmem:[%s319 + $0x354] sm:$0xf]
        %v536 = vld [vmem:[%s319 + $0x358] sm:$0xf]
        %v537 = vld [vmem:[%s319 + $0x35c] sm:$0xf]
        %v538 = vld [vmem:[%s319 + $0x360] sm:$0xf]
        %v539 = vld [vmem:[%s319 + $0x364] sm:$0xf]
        %v540 = vld [vmem:[%s319 + $0x368] sm:$0xf]
        %v541 = vld [vmem:[%s319 + $0x36c] sm:$0xf]
        %v542 = vld [vmem:[%s319 + $0x370] sm:$0xf]
        %v543 = vld [vmem:[%s319 + $0x374] sm:$0xf]
        %v544 = vld [vmem:[%s319 + $0x378] sm:$0xf]
        %v545 = vld [vmem:[%s319 + $0x37c] sm:$0xf]
        %v546 = vld [vmem:[%s319 + $0x380] sm:$0xf]
        %v547 = vld [vmem:[%s319 + $0x384] sm:$0xf]
        %v548 = vld [vmem:[%s319 + $0x388] sm:$0xf]
        %v549 = vld [vmem:[%s319 + $0x38c] sm:$0xf]
        %v550 = vld [vmem:[%s319 + $0x390] sm:$0xf]
        %v551 = vld [vmem:[%s319 + $0x394] sm:$0xf]
        %v552 = vld [vmem:[%s319 + $0x398] sm:$0xf]
        %v553 = vld [vmem:[%s319 + $0x39c] sm:$0xf]
        %v554 = vld [vmem:[%s319 + $0x3a0] sm:$0xf]
        %v555 = vld [vmem:[%s319 + $0x3a4] sm:$0xf]
        %v556 = vld [vmem:[%s319 + $0x3a8] sm:$0xf]
        %v557 = vld [vmem:[%s319 + $0x3ac] sm:$0xf]
        %v558 = vld [vmem:[%s319 + $0x3b0] sm:$0xf]
        %v559 = vld [vmem:[%s319 + $0x3b4] sm:$0xf]
        %v560 = vld [vmem:[%s319 + $0x3b8] sm:$0xf]
        %v561 = vld [vmem:[%s319 + $0x3bc] sm:$0xf]
        %v562 = vld [vmem:[%s319 + $0x3c0] sm:$0xf]
        %v563 = vld [vmem:[%s319 + $0x3c4] sm:$0xf]
        %v564 = vld [vmem:[%s319 + $0x3c8] sm:$0xf]
        %v565 = vld [vmem:[%s319 + $0x3cc] sm:$0xf]
        %v566 = vld [vmem:[%s319 + $0x3d0] sm:$0xf]
        %v567 = vld [vmem:[%s319 + $0x3d4] sm:$0xf]
        %v568 = vld [vmem:[%s319 + $0x3d8] sm:$0xf]
        %v569 = vld [vmem:[%s319 + $0x3dc] sm:$0xf]
        %v570 = vld [vmem:[%s319 + $0x3e0] sm:$0xf]
        %v571 = vld [vmem:[%s319 + $0x3e4] sm:$0xf]
        %v572 = vld [vmem:[%s319 + $0x3e8] sm:$0xf]
        %v573 = vld [vmem:[%s319 + $0x3ec] sm:$0xf]
        %v574 = vld [vmem:[%s319 + $0x3f0] sm:$0xf]
        %v575 = vld [vmem:[%s319 + $0x3f4] sm:$0xf]
        %v576 = vld [vmem:[%s319 + $0x3f8] sm:$0xf]
        %v577 = vld [vmem:[%s319 + $0x3fc] sm:$0xf]
        %v578 = vld [vmem:[%s1] sm:$0xf]
        %v579 = vld [vmem:[%s1 + $0x4] sm:$0xf]
        %v580 = vld [vmem:[%s1 + $0x8] sm:$0xf]
        %v581 = vld [vmem:[%s1 + $0xc] sm:$0xf]
        %v582 = vld [vmem:[%s1 + $0x10] sm:$0x3]
        %v839 = vunpack.c.l.b16 %v322
        %v840 = vunpack.c.l.b16 %v323
        %v841 = vunpack.c.l.b16 %v324
        %v842 = vunpack.c.l.b16 %v325
        %v843 = vunpack.c.l.b16 %v326
        %v844 = vunpack.c.l.b16 %v327
        %v845 = vunpack.c.l.b16 %v328
        %v846 = vunpack.c.l.b16 %v329
        %v847 = vunpack.c.l.b16 %v330
        %v848 = vunpack.c.l.b16 %v331
        %v849 = vunpack.c.l.b16 %v332
        %v850 = vunpack.c.l.b16 %v333
        %v851 = vunpack.c.l.b16 %v334
        %v852 = vunpack.c.l.b16 %v335
        %v853 = vunpack.c.l.b16 %v336
        %v854 = vunpack.c.l.b16 %v337
        %v855 = vunpack.c.l.b16 %v338
        %v856 = vunpack.c.l.b16 %v339
        %v857 = vunpack.c.l.b16 %v340
        %v858 = vunpack.c.l.b16 %v341
        %v859 = vunpack.c.l.b16 %v342
        %v860 = vunpack.c.l.b16 %v343
        %v861 = vunpack.c.l.b16 %v344
        %v862 = vunpack.c.l.b16 %v345
        %v863 = vunpack.c.l.b16 %v346
        %v864 = vunpack.c.l.b16 %v347
        %v865 = vunpack.c.l.b16 %v348
        %v866 = vunpack.c.l.b16 %v349
        %v867 = vunpack.c.l.b16 %v350
        %v868 = vunpack.c.l.b16 %v351
        %v869 = vunpack.c.l.b16 %v352
        %v870 = vunpack.c.l.b16 %v353
        %v871 = vunpack.c.l.b16 %v354
        %v872 = vunpack.c.l.b16 %v355
        %v873 = vunpack.c.l.b16 %v356
        %v874 = vunpack.c.l.b16 %v357
        %v875 = vunpack.c.l.b16 %v358
        %v876 = vunpack.c.l.b16 %v359
        %v877 = vunpack.c.l.b16 %v360
        %v878 = vunpack.c.l.b16 %v361
        %v879 = vunpack.c.l.b16 %v362
        %v880 = vunpack.c.l.b16 %v363
        %v881 = vunpack.c.l.b16 %v364
        %v882 = vunpack.c.l.b16 %v365
        %v883 = vunpack.c.l.b16 %v366
        %v884 = vunpack.c.l.b16 %v367
        %v885 = vunpack.c.l.b16 %v368
        %v886 = vunpack.c.l.b16 %v369
        %v887 = vunpack.c.l.b16 %v370
        %v888 = vunpack.c.l.b16 %v371
        %v889 = vunpack.c.l.b16 %v372
        %v890 = vunpack.c.l.b16 %v373
        %v891 = vunpack.c.l.b16 %v374
        %v892 = vunpack.c.l.b16 %v375
        %v893 = vunpack.c.l.b16 %v376
        %v894 = vunpack.c.l.b16 %v377
        %v895 = vunpack.c.l.b16 %v378
        %v896 = vunpack.c.l.b16 %v379
        %v897 = vunpack.c.l.b16 %v380
        %v898 = vunpack.c.l.b16 %v381
        %v899 = vunpack.c.l.b16 %v382
        %v900 = vunpack.c.l.b16 %v383
        %v901 = vunpack.c.l.b16 %v384
        %v902 = vunpack.c.l.b16 %v385
        %v903 = vunpack.c.l.b16 %v386
        %v904 = vunpack.c.l.b16 %v387
        %v905 = vunpack.c.l.b16 %v388
        %v906 = vunpack.c.l.b16 %v389
        %v907 = vunpack.c.l.b16 %v390
        %v908 = vunpack.c.l.b16 %v391
        %v909 = vunpack.c.l.b16 %v392
        %v910 = vunpack.c.l.b16 %v393
        %v911 = vunpack.c.l.b16 %v394
        %v912 = vunpack.c.l.b16 %v395
        %v913 = vunpack.c.l.b16 %v396
        %v914 = vunpack.c.l.b16 %v397
        %v915 = vunpack.c.l.b16 %v398
        %v916 = vunpack.c.l.b16 %v399
        %v917 = vunpack.c.l.b16 %v400
        %v918 = vunpack.c.l.b16 %v401
        %v919 = vunpack.c.l.b16 %v402
        %v920 = vunpack.c.l.b16 %v403
        %v921 = vunpack.c.l.b16 %v404
        %v922 = vunpack.c.l.b16 %v405
        %v923 = vunpack.c.l.b16 %v406
        %v924 = vunpack.c.l.b16 %v407
        %v925 = vunpack.c.l.b16 %v408
        %v926 = vunpack.c.l.b16 %v409
        %v927 = vunpack.c.l.b16 %v410
        %v928 = vunpack.c.l.b16 %v411
        %v929 = vunpack.c.l.b16 %v412
        %v930 = vunpack.c.l.b16 %v413
        %v931 = vunpack.c.l.b16 %v414
        %v932 = vunpack.c.l.b16 %v415
        %v933 = vunpack.c.l.b16 %v416
        %v934 = vunpack.c.l.b16 %v417
        %v935 = vunpack.c.l.b16 %v418
        %v936 = vunpack.c.l.b16 %v419
        %v937 = vunpack.c.l.b16 %v420
        %v938 = vunpack.c.l.b16 %v421
        %v939 = vunpack.c.l.b16 %v422
        %v940 = vunpack.c.l.b16 %v423
        %v941 = vunpack.c.l.b16 %v424
        %v942 = vunpack.c.l.b16 %v425
        %v943 = vunpack.c.l.b16 %v426
        %v944 = vunpack.c.l.b16 %v427
        %v945 = vunpack.c.l.b16 %v428
        %v946 = vunpack.c.l.b16 %v429
        %v947 = vunpack.c.l.b16 %v430
        %v948 = vunpack.c.l.b16 %v431
        %v949 = vunpack.c.l.b16 %v432
        %v950 = vunpack.c.l.b16 %v433
        %v951 = vunpack.c.l.b16 %v434
        %v952 = vunpack.c.l.b16 %v435
        %v953 = vunpack.c.l.b16 %v436
        %v954 = vunpack.c.l.b16 %v437
        %v955 = vunpack.c.l.b16 %v438
        %v956 = vunpack.c.l.b16 %v439
        %v957 = vunpack.c.l.b16 %v440
        %v958 = vunpack.c.l.b16 %v441
        %v959 = vunpack.c.l.b16 %v442
        %v960 = vunpack.c.l.b16 %v443
        %v961 = vunpack.c.l.b16 %v444
        %v962 = vunpack.c.l.b16 %v445
        %v963 = vunpack.c.l.b16 %v446
        %v964 = vunpack.c.l.b16 %v447
        %v965 = vunpack.c.l.b16 %v448
        %v966 = vunpack.c.l.b16 %v449
        %v967 = vunpack.c.l.b16 %v450
        %v968 = vunpack.c.l.b16 %v451
        %v969 = vunpack.c.l.b16 %v452
        %v970 = vunpack.c.l.b16 %v453
        %v971 = vunpack.c.l.b16 %v454
        %v972 = vunpack.c.l.b16 %v455
        %v973 = vunpack.c.l.b16 %v456
        %v974 = vunpack.c.l.b16 %v457
        %v975 = vunpack.c.l.b16 %v458
        %v976 = vunpack.c.l.b16 %v459
        %v977 = vunpack.c.l.b16 %v460
        %v978 = vunpack.c.l.b16 %v461
        %v979 = vunpack.c.l.b16 %v462
        %v980 = vunpack.c.l.b16 %v463
        %v981 = vunpack.c.l.b16 %v464
        %v982 = vunpack.c.l.b16 %v465
        %v983 = vunpack.c.l.b16 %v466
        %v984 = vunpack.c.l.b16 %v467
        %v985 = vunpack.c.l.b16 %v468
        %v986 = vunpack.c.l.b16 %v469
        %v987 = vunpack.c.l.b16 %v470
        %v988 = vunpack.c.l.b16 %v471
        %v989 = vunpack.c.l.b16 %v472
        %v990 = vunpack.c.l.b16 %v473
        %v991 = vunpack.c.l.b16 %v474
        %v992 = vunpack.c.l.b16 %v475
        %v993 = vunpack.c.l.b16 %v476
        %v994 = vunpack.c.l.b16 %v477
        %v995 = vunpack.c.l.b16 %v478
        %v996 = vunpack.c.l.b16 %v479
        %v997 = vunpack.c.l.b16 %v480
        %v998 = vunpack.c.l.b16 %v481
        %v999 = vunpack.c.l.b16 %v482
        %v1000 = vunpack.c.l.b16 %v483
        %v1001 = vunpack.c.l.b16 %v484
        %v1002 = vunpack.c.l.b16 %v485
        %v1003 = vunpack.c.l.b16 %v486
        %v1004 = vunpack.c.l.b16 %v487
        %v1005 = vunpack.c.l.b16 %v488
        %v1006 = vunpack.c.l.b16 %v489
        %v1007 = vunpack.c.l.b16 %v490
        %v1008 = vunpack.c.l.b16 %v491
        %v1009 = vunpack.c.l.b16 %v492
        %v1010 = vunpack.c.l.b16 %v493
        %v1011 = vunpack.c.l.b16 %v494
        %v1012 = vunpack.c.l.b16 %v495
        %v1013 = vunpack.c.l.b16 %v496
        %v1014 = vunpack.c.l.b16 %v497
        %v1015 = vunpack.c.l.b16 %v498
        %v1016 = vunpack.c.l.b16 %v499
        %v1017 = vunpack.c.l.b16 %v500
        %v1018 = vunpack.c.l.b16 %v501
        %v1019 = vunpack.c.l.b16 %v502
        %v1020 = vunpack.c.l.b16 %v503
        %v1021 = vunpack.c.l.b16 %v504
        %v1022 = vunpack.c.l.b16 %v505
        %v1023 = vunpack.c.l.b16 %v506
        %v1024 = vunpack.c.l.b16 %v507
        %v1025 = vunpack.c.l.b16 %v508
        %v1026 = vunpack.c.l.b16 %v509
        %v1027 = vunpack.c.l.b16 %v510
        %v1028 = vunpack.c.l.b16 %v511
        %v1029 = vunpack.c.l.b16 %v512
        %v1030 = vunpack.c.l.b16 %v513
        %v1031 = vunpack.c.l.b16 %v514
        %v1032 = vunpack.c.l.b16 %v515
        %v1033 = vunpack.c.l.b16 %v516
        %v1034 = vunpack.c.l.b16 %v517
        %v1035 = vunpack.c.l.b16 %v518
        %v1036 = vunpack.c.l.b16 %v519
        %v1037 = vunpack.c.l.b16 %v520
        %v1038 = vunpack.c.l.b16 %v521
        %v1039 = vunpack.c.l.b16 %v522
        %v1040 = vunpack.c.l.b16 %v523
        %v1041 = vunpack.c.l.b16 %v524
        %v1042 = vunpack.c.l.b16 %v525
        %v1043 = vunpack.c.l.b16 %v526
        %v1044 = vunpack.c.l.b16 %v527
        %v1045 = vunpack.c.l.b16 %v528
        %v1046 = vunpack.c.l.b16 %v529
        %v1047 = vunpack.c.l.b16 %v530
        %v1048 = vunpack.c.l.b16 %v531
        %v1049 = vunpack.c.l.b16 %v532
        %v1050 = vunpack.c.l.b16 %v533
        %v1051 = vunpack.c.l.b16 %v534
        %v1052 = vunpack.c.l.b16 %v535
        %v1053 = vunpack.c.l.b16 %v536
        %v1054 = vunpack.c.l.b16 %v537
        %v1055 = vunpack.c.l.b16 %v538
        %v1056 = vunpack.c.l.b16 %v539
        %v1057 = vunpack.c.l.b16 %v540
        %v1058 = vunpack.c.l.b16 %v541
        %v1059 = vunpack.c.l.b16 %v542
        %v1060 = vunpack.c.l.b16 %v543
        %v1061 = vunpack.c.l.b16 %v544
        %v1062 = vunpack.c.l.b16 %v545
        %v1063 = vunpack.c.l.b16 %v546
        %v1064 = vunpack.c.l.b16 %v547
        %v1065 = vunpack.c.l.b16 %v548
        %v1066 = vunpack.c.l.b16 %v549
        %v1067 = vunpack.c.l.b16 %v550
        %v1068 = vunpack.c.l.b16 %v551
        %v1069 = vunpack.c.l.b16 %v552
        %v1070 = vunpack.c.l.b16 %v553
        %v1071 = vunpack.c.l.b16 %v554
        %v1072 = vunpack.c.l.b16 %v555
        %v1073 = vunpack.c.l.b16 %v556
        %v1074 = vunpack.c.l.b16 %v557
        %v1075 = vunpack.c.l.b16 %v558
        %v1076 = vunpack.c.l.b16 %v559
        %v1077 = vunpack.c.l.b16 %v560
        %v1078 = vunpack.c.l.b16 %v561
        %v1079 = vunpack.c.l.b16 %v562
        %v1080 = vunpack.c.l.b16 %v563
        %v1081 = vunpack.c.l.b16 %v564
        %v1082 = vunpack.c.l.b16 %v565
        %v1083 = vunpack.c.l.b16 %v566
        %v1084 = vunpack.c.l.b16 %v567
        %v1085 = vunpack.c.l.b16 %v568
        %v1086 = vunpack.c.l.b16 %v569
        %v1087 = vunpack.c.l.b16 %v570
        %v1088 = vunpack.c.l.b16 %v571
        %v1089 = vunpack.c.l.b16 %v572
        %v1090 = vunpack.c.l.b16 %v573
        %v1091 = vunpack.c.l.b16 %v574
        %v1092 = vunpack.c.l.b16 %v575
        %v1093 = vunpack.c.l.b16 %v576
        %v1094 = vunpack.c.l.b16 %v577
        %v1095 = vpack.c.b16 %v840, %v839
        %v1096 = vpack.c.b16 %v842, %v841
        %v1097 = vpack.c.b16 %v844, %v843
        %v1098 = vpack.c.b16 %v846, %v845
        %v1099 = vpack.c.b16 %v848, %v847
        %v1100 = vpack.c.b16 %v850, %v849
        %v1101 = vpack.c.b16 %v852, %v851
        %v1102 = vpack.c.b16 %v854, %v853
        %v1103 = vpack.c.b16 %v856, %v855
        %v1104 = vpack.c.b16 %v858, %v857
        %v1105 = vpack.c.b16 %v860, %v859
        %v1106 = vpack.c.b16 %v862, %v861
        %v1107 = vpack.c.b16 %v864, %v863
        %v1108 = vpack.c.b16 %v866, %v865
        %v1109 = vpack.c.b16 %v868, %v867
        %v1110 = vpack.c.b16 %v870, %v869
        %v1111 = vpack.c.b16 %v872, %v871
        %v1112 = vpack.c.b16 %v874, %v873
        %v1113 = vpack.c.b16 %v876, %v875
        %v1114 = vpack.c.b16 %v878, %v877
        %v1115 = vpack.c.b16 %v880, %v879
        %v1116 = vpack.c.b16 %v882, %v881
        %v1117 = vpack.c.b16 %v884, %v883
        %v1118 = vpack.c.b16 %v886, %v885
        %v1119 = vpack.c.b16 %v888, %v887
        %v1120 = vpack.c.b16 %v890, %v889
        %v1121 = vpack.c.b16 %v892, %v891
        %v1122 = vpack.c.b16 %v894, %v893
        %v1123 = vpack.c.b16 %v896, %v895
        %v1124 = vpack.c.b16 %v898, %v897
        %v1125 = vpack.c.b16 %v900, %v899
        %v1126 = vpack.c.b16 %v902, %v901
        %v1127 = vpack.c.b16 %v904, %v903
        %v1128 = vpack.c.b16 %v906, %v905
        %v1129 = vpack.c.b16 %v908, %v907
        %v1130 = vpack.c.b16 %v910, %v909
        %v1131 = vpack.c.b16 %v912, %v911
        %v1132 = vpack.c.b16 %v914, %v913
        %v1133 = vpack.c.b16 %v916, %v915
        %v1134 = vpack.c.b16 %v918, %v917
        %v1135 = vpack.c.b16 %v920, %v919
        %v1136 = vpack.c.b16 %v922, %v921
        %v1137 = vpack.c.b16 %v924, %v923
        %v1138 = vpack.c.b16 %v926, %v925
        %v1139 = vpack.c.b16 %v928, %v927
        %v1140 = vpack.c.b16 %v930, %v929
        %v1141 = vpack.c.b16 %v932, %v931
        %v1142 = vpack.c.b16 %v934, %v933
        %v1143 = vpack.c.b16 %v936, %v935
        %v1144 = vpack.c.b16 %v938, %v937
        %v1145 = vpack.c.b16 %v940, %v939
        %v1146 = vpack.c.b16 %v942, %v941
        %v1147 = vpack.c.b16 %v944, %v943
        %v1148 = vpack.c.b16 %v946, %v945
        %v1149 = vpack.c.b16 %v948, %v947
        %v1150 = vpack.c.b16 %v950, %v949
        %v1151 = vpack.c.b16 %v952, %v951
        %v1152 = vpack.c.b16 %v954, %v953
        %v1153 = vpack.c.b16 %v956, %v955
        %v1154 = vpack.c.b16 %v958, %v957
        %v1155 = vpack.c.b16 %v960, %v959
        %v1156 = vpack.c.b16 %v962, %v961
        %v1157 = vpack.c.b16 %v964, %v963
        %v1158 = vpack.c.b16 %v966, %v965
        %v1159 = vpack.c.b16 %v968, %v967
        %v1160 = vpack.c.b16 %v970, %v969
        %v1161 = vpack.c.b16 %v972, %v971
        %v1162 = vpack.c.b16 %v974, %v973
        %v1163 = vpack.c.b16 %v976, %v975
        %v1164 = vpack.c.b16 %v978, %v977
        %v1165 = vpack.c.b16 %v980, %v979
        %v1166 = vpack.c.b16 %v982, %v981
        %v1167 = vpack.c.b16 %v984, %v983
        %v1168 = vpack.c.b16 %v986, %v985
        %v1169 = vpack.c.b16 %v988, %v987
        %v1170 = vpack.c.b16 %v990, %v989
        %v1171 = vpack.c.b16 %v992, %v991
        %v1172 = vpack.c.b16 %v994, %v993
        %v1173 = vpack.c.b16 %v996, %v995
        %v1174 = vpack.c.b16 %v998, %v997
        %v1175 = vpack.c.b16 %v1000, %v999
        %v1176 = vpack.c.b16 %v1002, %v1001
        %v1177 = vpack.c.b16 %v1004, %v1003
        %v1178 = vpack.c.b16 %v1006, %v1005
        %v1179 = vpack.c.b16 %v1008, %v1007
        %v1180 = vpack.c.b16 %v1010, %v1009
        %v1181 = vpack.c.b16 %v1012, %v1011
        %v1182 = vpack.c.b16 %v1014, %v1013
        %v1183 = vpack.c.b16 %v1016, %v1015
        %v1184 = vpack.c.b16 %v1018, %v1017
        %v1185 = vpack.c.b16 %v1020, %v1019
        %v1186 = vpack.c.b16 %v1022, %v1021
        %v1187 = vpack.c.b16 %v1024, %v1023
        %v1188 = vpack.c.b16 %v1026, %v1025
        %v1189 = vpack.c.b16 %v1028, %v1027
        %v1190 = vpack.c.b16 %v1030, %v1029
        %v1191 = vpack.c.b16 %v1032, %v1031
        %v1192 = vpack.c.b16 %v1034, %v1033
        %v1193 = vpack.c.b16 %v1036, %v1035
        %v1194 = vpack.c.b16 %v1038, %v1037
        %v1195 = vpack.c.b16 %v1040, %v1039
        %v1196 = vpack.c.b16 %v1042, %v1041
        %v1197 = vpack.c.b16 %v1044, %v1043
        %v1198 = vpack.c.b16 %v1046, %v1045
        %v1199 = vpack.c.b16 %v1048, %v1047
        %v1200 = vpack.c.b16 %v1050, %v1049
        %v1201 = vpack.c.b16 %v1052, %v1051
        %v1202 = vpack.c.b16 %v1054, %v1053
        %v1203 = vpack.c.b16 %v1056, %v1055
        %v1204 = vpack.c.b16 %v1058, %v1057
        %v1205 = vpack.c.b16 %v1060, %v1059
        %v1206 = vpack.c.b16 %v1062, %v1061
        %v1207 = vpack.c.b16 %v1064, %v1063
        %v1208 = vpack.c.b16 %v1066, %v1065
        %v1209 = vpack.c.b16 %v1068, %v1067
        %v1210 = vpack.c.b16 %v1070, %v1069
        %v1211 = vpack.c.b16 %v1072, %v1071
        %v1212 = vpack.c.b16 %v1074, %v1073
        %v1213 = vpack.c.b16 %v1076, %v1075
        %v1214 = vpack.c.b16 %v1078, %v1077
        %v1215 = vpack.c.b16 %v1080, %v1079
        %v1216 = vpack.c.b16 %v1082, %v1081
        %v1217 = vpack.c.b16 %v1084, %v1083
        %v1218 = vpack.c.b16 %v1086, %v1085
        %v1219 = vpack.c.b16 %v1088, %v1087
        %v1220 = vpack.c.b16 %v1090, %v1089
        %v1221 = vpack.c.b16 %v1092, %v1091
        %v1222 = vpack.c.b16 %v1094, %v1093
        %v1228 = vunpack.c.l.b16 %v578
        %v1229 = vunpack.c.l.b16 %v579
        %v1230 = vunpack.c.l.b16 %v580
        %v1231 = vunpack.c.l.b16 %v581
        %v1232 = vunpack.c.l.b16 %v582
        %v1233 = vpack.c.b16 %v1229, %v1228
        %v1234 = vpack.c.b16 %v1231, %v1230
        %v1235 = vpack.c.b16 %v1232, %v1232
        %vm1238 = vcmask 293888
        %v1240 = vsel %vm1238, %v1095, 0
        %v1243 = vsel %vm1238, %v1096, 0
        %v1246 = vsel %vm1238, %v1097, 0
        %v1249 = vsel %vm1238, %v1098, 0
        %v1252 = vsel %vm1238, %v1099, 0
        %v1255 = vsel %vm1238, %v1100, 0
        %v1258 = vsel %vm1238, %v1101, 0
        %v1261 = vsel %vm1238, %v1102, 0
        %v1264 = vsel %vm1238, %v1103, 0
        %v1267 = vsel %vm1238, %v1104, 0
        %v1270 = vsel %vm1238, %v1105, 0
        %v1273 = vsel %vm1238, %v1106, 0
        %v1276 = vsel %vm1238, %v1107, 0
        %v1279 = vsel %vm1238, %v1108, 0
        %v1282 = vsel %vm1238, %v1109, 0
        %v1285 = vsel %vm1238, %v1110, 0
        %v1288 = vsel %vm1238, %v1111, 0
        %v1291 = vsel %vm1238, %v1112, 0
        %v1294 = vsel %vm1238, %v1113, 0
        %v1297 = vsel %vm1238, %v1114, 0
        %v1300 = vsel %vm1238, %v1115, 0
        %v1303 = vsel %vm1238, %v1116, 0
        %v1306 = vsel %vm1238, %v1117, 0
        %v1309 = vsel %vm1238, %v1118, 0
        %v1312 = vsel %vm1238, %v1119, 0
        %v1315 = vsel %vm1238, %v1120, 0
        %v1318 = vsel %vm1238, %v1121, 0
        %v1321 = vsel %vm1238, %v1122, 0
        %v1324 = vsel %vm1238, %v1123, 0
        %v1327 = vsel %vm1238, %v1124, 0
        %v1330 = vsel %vm1238, %v1125, 0
        %v1333 = vsel %vm1238, %v1126, 0
        %v1336 = vsel %vm1238, %v1127, 0
        %v1339 = vsel %vm1238, %v1128, 0
        %v1342 = vsel %vm1238, %v1129, 0
        %v1345 = vsel %vm1238, %v1130, 0
        %v1348 = vsel %vm1238, %v1131, 0
        %v1351 = vsel %vm1238, %v1132, 0
        %v1354 = vsel %vm1238, %v1133, 0
        %v1357 = vsel %vm1238, %v1134, 0
        %v1360 = vsel %vm1238, %v1135, 0
        %v1363 = vsel %vm1238, %v1136, 0
        %v1366 = vsel %vm1238, %v1137, 0
        %v1369 = vsel %vm1238, %v1138, 0
        %v1372 = vsel %vm1238, %v1139, 0
        %v1375 = vsel %vm1238, %v1140, 0
        %v1378 = vsel %vm1238, %v1141, 0
        %v1381 = vsel %vm1238, %v1142, 0
        %v1384 = vsel %vm1238, %v1143, 0
        %v1387 = vsel %vm1238, %v1144, 0
        %v1390 = vsel %vm1238, %v1145, 0
        %v1393 = vsel %vm1238, %v1146, 0
        %v1396 = vsel %vm1238, %v1147, 0
        %v1399 = vsel %vm1238, %v1148, 0
        %v1402 = vsel %vm1238, %v1149, 0
        %v1405 = vsel %vm1238, %v1150, 0
        %v1408 = vsel %vm1238, %v1151, 0
        %v1411 = vsel %vm1238, %v1152, 0
        %v1414 = vsel %vm1238, %v1153, 0
        %v1417 = vsel %vm1238, %v1154, 0
        %v1420 = vsel %vm1238, %v1155, 0
        %v1423 = vsel %vm1238, %v1156, 0
        %v1426 = vsel %vm1238, %v1157, 0
        %v1429 = vsel %vm1238, %v1158, 0
        %v1432 = vsel %vm1238, %v1159, 0
        %v1435 = vsel %vm1238, %v1160, 0
        %v1438 = vsel %vm1238, %v1161, 0
        %v1441 = vsel %vm1238, %v1162, 0
        %v1444 = vsel %vm1238, %v1163, 0
        %v1447 = vsel %vm1238, %v1164, 0
        %v1450 = vsel %vm1238, %v1165, 0
        %v1453 = vsel %vm1238, %v1166, 0
        %v1456 = vsel %vm1238, %v1167, 0
        %v1459 = vsel %vm1238, %v1168, 0
        %v1462 = vsel %vm1238, %v1169, 0
        %v1465 = vsel %vm1238, %v1170, 0
        %v1468 = vsel %vm1238, %v1171, 0
        %v1471 = vsel %vm1238, %v1172, 0
        %v1474 = vsel %vm1238, %v1173, 0
        %v1477 = vsel %vm1238, %v1174, 0
        %v1480 = vsel %vm1238, %v1175, 0
        %v1483 = vsel %vm1238, %v1176, 0
        %v1486 = vsel %vm1238, %v1177, 0
        %v1489 = vsel %vm1238, %v1178, 0
        %v1492 = vsel %vm1238, %v1179, 0
        %v1495 = vsel %vm1238, %v1180, 0
        %v1498 = vsel %vm1238, %v1181, 0
        %v1501 = vsel %vm1238, %v1182, 0
        %v1504 = vsel %vm1238, %v1183, 0
        %v1507 = vsel %vm1238, %v1184, 0
        %v1510 = vsel %vm1238, %v1185, 0
        %v1513 = vsel %vm1238, %v1186, 0
        %v1516 = vsel %vm1238, %v1187, 0
        %v1519 = vsel %vm1238, %v1188, 0
        %v1522 = vsel %vm1238, %v1189, 0
        %v1525 = vsel %vm1238, %v1190, 0
        %v1528 = vsel %vm1238, %v1191, 0
        %v1531 = vsel %vm1238, %v1192, 0
        %v1534 = vsel %vm1238, %v1193, 0
        %v1537 = vsel %vm1238, %v1194, 0
        %v1540 = vsel %vm1238, %v1195, 0
        %v1543 = vsel %vm1238, %v1196, 0
        %v1546 = vsel %vm1238, %v1197, 0
        %v1549 = vsel %vm1238, %v1198, 0
        %v1552 = vsel %vm1238, %v1199, 0
        %v1555 = vsel %vm1238, %v1200, 0
        %v1558 = vsel %vm1238, %v1201, 0
        %v1561 = vsel %vm1238, %v1202, 0
        %v1564 = vsel %vm1238, %v1203, 0
        %v1567 = vsel %vm1238, %v1204, 0
        %v1570 = vsel %vm1238, %v1205, 0
        %v1573 = vsel %vm1238, %v1206, 0
        %v1576 = vsel %vm1238, %v1207, 0
        %v1579 = vsel %vm1238, %v1208, 0
        %v1582 = vsel %vm1238, %v1209, 0
        %v1585 = vsel %vm1238, %v1210, 0
        %v1588 = vsel %vm1238, %v1211, 0
        %v1591 = vsel %vm1238, %v1212, 0
        %v1594 = vsel %vm1238, %v1213, 0
        %v1597 = vsel %vm1238, %v1214, 0
        %v1600 = vsel %vm1238, %v1215, 0
        %v1603 = vsel %vm1238, %v1216, 0
        %v1606 = vsel %vm1238, %v1217, 0
        %v1609 = vsel %vm1238, %v1218, 0
        %v1612 = vsel %vm1238, %v1219, 0
        %v1615 = vsel %vm1238, %v1220, 0
        %v1618 = vsel %vm1238, %v1221, 0
        %v1621 = vsel %vm1238, %v1222, 0
        %vm1623 = vcmask 1041408
        %v1625 = vsel %vm1623, %v1235, 0
        %1627 = vmatprep.subr.bf16.mxu0 0
        %1628 = vmatpush1.bf16.msra.mxu0 %v1233
        %1629 = vmatprep.subr.bf16.mxu0 0
        %1630 = vmatpush1.bf16.msra.mxu0 %v1234
        %1631 = vmatprep.subr.bf16.mxu0 0
        %1632 = vmatpush1.bf16.msra.mxu0 %v1625
        %1633 = vmatprep.subr.bf16.mxu0 0
        %1634 = vmatpush1.bf16.msra.mxu0 0
        %1635 = vmatprep.subr.bf16.mxu0 0
        %1636 = vmatpush1.bf16.msra.mxu0 0
        %1637 = vmatprep.subr.bf16.mxu0 0
        %1638 = vmatpush1.bf16.msra.mxu0 0
        %1639 = vmatprep.subr.bf16.mxu0 0
        %1640 = vmatpush1.bf16.msra.mxu0 0
        %1641 = vmatprep.subr.bf16.mxu0 0
        %1642 = vmatpush1.bf16.msra.mxu0 0
        %1643 = vmatprep.subr.bf16.mxu0 0
        %1644 = vmatpush1.bf16.msra.mxu0 0
        %1645 = vmatprep.subr.bf16.mxu0 0
        %1646 = vmatpush1.bf16.msra.mxu0 0
        %1647 = vmatprep.subr.bf16.mxu0 0
        %1648 = vmatpush1.bf16.msra.mxu0 0
        %1649 = vmatprep.subr.bf16.mxu0 0
        %1650 = vmatpush1.bf16.msra.mxu0 0
        %1651 = vmatprep.subr.bf16.mxu0 0
        %1652 = vmatpush1.bf16.msra.mxu0 0
        %1653 = vmatprep.subr.bf16.mxu0 0
        %1654 = vmatpush1.bf16.msra.mxu0 0
        %1655 = vmatprep.subr.bf16.mxu0 0
        %1656 = vmatpush1.bf16.msra.mxu0 0
        %1657 = vmatprep.subr.bf16.mxu0 0
        %1658 = vmatpush1.bf16.msra.mxu0 0
        %1659 = vmatprep.mubr.bf16.mxu0 0
        %1660 = vmatmul.mubr.bf16.gmra.mrb[0].mxu0 %v1240
        %v1661 = vpop.f32.mrb[0].mxu0
        %v1662 = vadd.f32 0.0, %v1661
        %v1663 = vpop.f32.mrb[0].mxu0
        %v1664 = vpop.f32.mrb[0].mxu0
        %v1665 = vadd.f32 0.0, %v1664
        %v1666 = vpop.f32.mrb[0].mxu0
        %1667 = vmatprep.mubr.bf16.mxu0 0
        %1668 = vmatmul.mubr.bf16.gmra.mrb[0].mxu0 %v1243
        %v1669 = vpop.f32.mrb[0].mxu0
        %v1670 = vadd.f32 0.0, %v1669
        %v1671 = vpop.f32.mrb[0].mxu0
        %v1672 = vpop.f32.mrb[0].mxu0
        %v1673 = vadd.f32 0.0, %v1672
        %v1674 = vpop.f32.mrb[0].mxu0
        %1675 = vmatprep.mubr.bf16.mxu0 0
        %1676 = vmatmul.mubr.bf16.gmra.mrb[0].mxu0 %v1246
        %v1677 = vpop.f32.mrb[0].mxu0
        %v1678 = vadd.f32 0.0, %v1677
        %v1679 = vpop.f32.mrb[0].mxu0
        %v1680 = vpop.f32.mrb[0].mxu0
        %v1681 = vadd.f32 0.0, %v1680
        %v1682 = vpop.f32.mrb[0].mxu0
        %1683 = vmatprep.mubr.bf16.mxu0 0
        %1684 = vmatmul.mubr.bf16.gmra.mrb[0].mxu0 %v1249
        %v1685 = vpop.f32.mrb[0].mxu0
        %v1686 = vadd.f32 0.0, %v1685
        %v1687 = vpop.f32.mrb[0].mxu0
        %v1688 = vpop.f32.mrb[0].mxu0
        %v1689 = vadd.f32 0.0, %v1688
        %v1690 = vpop.f32.mrb[0].mxu0
        %1691 = vmatprep.mubr.bf16.mxu0 0
        %1692 = vmatmul.mubr.bf16.gmra.mrb[0].mxu0 %v1252
        %v1693 = vpop.f32.mrb[0].mxu0
        %v1694 = vadd.f32 0.0, %v1693
        %v1695 = vpop.f32.mrb[0].mxu0
        %v1696 = vpop.f32.mrb[0].mxu0
        %v1697 = vadd.f32 0.0, %v1696
        %v1698 = vpop.f32.mrb[0].mxu0
        %1699 = vmatprep.mubr.bf16.mxu0 0
        %1700 = vmatmul.mubr.bf16.gmra.mrb[0].mxu0 %v1255
        %v1701 = vpop.f32.mrb[0].mxu0
        %v1702 = vadd.f32 0.0, %v1701
        %v1703 = vpop.f32.mrb[0].mxu0
        %v1704 = vpop.f32.mrb[0].mxu0
        %v1705 = vadd.f32 0.0, %v1704
        %v1706 = vpop.f32.mrb[0].mxu0
        %1707 = vmatprep.mubr.bf16.mxu0 0
        %1708 = vmatmul.mubr.bf16.gmra.mrb[0].mxu0 %v1258
        %v1709 = vpop.f32.mrb[0].mxu0
        %v1710 = vadd.f32 0.0, %v1709
        %v1711 = vpop.f32.mrb[0].mxu0
        %v1712 = vpop.f32.mrb[0].mxu0
        %v1713 = vadd.f32 0.0, %v1712
        %v1714 = vpop.f32.mrb[0].mxu0
        %1715 = vmatprep.mubr.bf16.mxu0 0
        %1716 = vmatmul.mubr.bf16.gmra.mrb[0].mxu0 %v1261
        %v1717 = vpop.f32.mrb[0].mxu0
        %v1718 = vadd.f32 0.0, %v1717
        %v1719 = vpop.f32.mrb[0].mxu0
        %v1720 = vpop.f32.mrb[0].mxu0
        %v1721 = vadd.f32 0.0, %v1720
        %v1722 = vpop.f32.mrb[0].mxu0
        %1723 = vmatprep.mubr.bf16.mxu0 0
        %1724 = vmatmul.mubr.bf16.gmra.mrb[0].mxu0 %v1264
        %v1725 = vpop.f32.mrb[0].mxu0
        %v1726 = vadd.f32 0.0, %v1725
        %v1727 = vpop.f32.mrb[0].mxu0
        %v1728 = vpop.f32.mrb[0].mxu0
        %v1729 = vadd.f32 0.0, %v1728
        %v1730 = vpop.f32.mrb[0].mxu0
        %1731 = vmatprep.mubr.bf16.mxu0 0
        %1732 = vmatmul.mubr.bf16.gmra.mrb[0].mxu0 %v1267
        %v1733 = vpop.f32.mrb[0].mxu0
        %v1734 = vadd.f32 0.0, %v1733
        %v1735 = vpop.f32.mrb[0].mxu0
        %v1736 = vpop.f32.mrb[0].mxu0
        %v1737 = vadd.f32 0.0, %v1736
        %v1738 = vpop.f32.mrb[0].mxu0
        %1739 = vmatprep.mubr.bf16.mxu0 0
        %1740 = vmatmul.mubr.bf16.gmra.mrb[0].mxu0 %v1270
        %v1741 = vpop.f32.mrb[0].mxu0
        %v1742 = vadd.f32 0.0, %v1741
        %v1743 = vpop.f32.mrb[0].mxu0
        %v1744 = vpop.f32.mrb[0].mxu0
        %v1745 = vadd.f32 0.0, %v1744
        %v1746 = vpop.f32.mrb[0].mxu0
        %1747 = vmatprep.mubr.bf16.mxu0 0
        %1748 = vmatmul.mubr.bf16.gmra.mrb[0].mxu0 %v1273
        %v1749 = vpop.f32.mrb[0].mxu0
        %v1750 = vadd.f32 0.0, %v1749
        %v1751 = vpop.f32.mrb[0].mxu0
        %v1752 = vpop.f32.mrb[0].mxu0
        %v1753 = vadd.f32 0.0, %v1752
        %v1754 = vpop.f32.mrb[0].mxu0
        %1755 = vmatprep.mubr.bf16.mxu0 0
        %1756 = vmatmul.mubr.bf16.gmra.mrb[0].mxu0 %v1276
        %v1757 = vpop.f32.mrb[0].mxu0
        %v1758 = vadd.f32 0.0, %v1757
        %v1759 = vpop.f32.mrb[0].mxu0
        %v1760 = vpop.f32.mrb[0].mxu0
        %v1761 = vadd.f32 0.0, %v1760
        %v1762 = vpop.f32.mrb[0].mxu0
        %1763 = vmatprep.mubr.bf16.mxu0 0
        %1764 = vmatmul.mubr.bf16.gmra.mrb[0].mxu0 %v1279
        %v1765 = vpop.f32.mrb[0].mxu0
        %v1766 = vadd.f32 0.0, %v1765
        %v1767 = vpop.f32.mrb[0].mxu0
        %v1768 = vpop.f32.mrb[0].mxu0
        %v1769 = vadd.f32 0.0, %v1768
        %v1770 = vpop.f32.mrb[0].mxu0
        %1771 = vmatprep.mubr.bf16.mxu0 0
        %1772 = vmatmul.mubr.bf16.gmra.mrb[0].mxu0 %v1282
        %v1773 = vpop.f32.mrb[0].mxu0
        %v1774 = vadd.f32 0.0, %v1773
        %v1775 = vpop.f32.mrb[0].mxu0
        %v1776 = vpop.f32.mrb[0].mxu0
        %v1777 = vadd.f32 0.0, %v1776
        %v1778 = vpop.f32.mrb[0].mxu0
        %1779 = vmatprep.mubr.bf16.mxu0 0
        %1780 = vmatmul.mubr.bf16.gmra.mrb[0].mxu0 %v1285
        %v1781 = vpop.f32.mrb[0].mxu0
        %v1782 = vadd.f32 0.0, %v1781
        %v1783 = vpop.f32.mrb[0].mxu0
        %v1784 = vpop.f32.mrb[0].mxu0
        %v1785 = vadd.f32 0.0, %v1784
        %v1786 = vpop.f32.mrb[0].mxu0
        %1787 = vmatprep.mubr.bf16.mxu0 0
        %1788 = vmatmul.mubr.bf16.gmra.mrb[0].mxu0 %v1288
        %v1789 = vpop.f32.mrb[0].mxu0
        %v1790 = vadd.f32 0.0, %v1789
        %v1791 = vpop.f32.mrb[0].mxu0
        %v1792 = vpop.f32.mrb[0].mxu0
        %v1793 = vadd.f32 0.0, %v1792
        %v1794 = vpop.f32.mrb[0].mxu0
        %1795 = vmatprep.mubr.bf16.mxu0 0
        %1796 = vmatmul.mubr.bf16.gmra.mrb[0].mxu0 %v1291
        %v1797 = vpop.f32.mrb[0].mxu0
        %v1798 = vadd.f32 0.0, %v1797
        %v1799 = vpop.f32.mrb[0].mxu0
        %v1800 = vpop.f32.mrb[0].mxu0
        %v1801 = vadd.f32 0.0, %v1800
        %v1802 = vpop.f32.mrb[0].mxu0
        %1803 = vmatprep.mubr.bf16.mxu0 0
        %1804 = vmatmul.mubr.bf16.gmra.mrb[0].mxu0 %v1294
        %v1805 = vpop.f32.mrb[0].mxu0
        %v1806 = vadd.f32 0.0, %v1805
        %v1807 = vpop.f32.mrb[0].mxu0
        %v1808 = vpop.f32.mrb[0].mxu0
        %v1809 = vadd.f32 0.0, %v1808
        %v1810 = vpop.f32.mrb[0].mxu0
        %1811 = vmatprep.mubr.bf16.mxu0 0
        %1812 = vmatmul.mubr.bf16.gmra.mrb[0].mxu0 %v1297
        %v1813 = vpop.f32.mrb[0].mxu0
        %v1814 = vadd.f32 0.0, %v1813
        %v1815 = vpop.f32.mrb[0].mxu0
        %v1816 = vpop.f32.mrb[0].mxu0
        %v1817 = vadd.f32 0.0, %v1816
        %v1818 = vpop.f32.mrb[0].mxu0
        %1819 = vmatprep.mubr.bf16.mxu0 0
        %1820 = vmatmul.mubr.bf16.gmra.mrb[0].mxu0 %v1300
        %v1821 = vpop.f32.mrb[0].mxu0
        %v1822 = vadd.f32 0.0, %v1821
        %v1823 = vpop.f32.mrb[0].mxu0
        %v1824 = vpop.f32.mrb[0].mxu0
        %v1825 = vadd.f32 0.0, %v1824
        %v1826 = vpop.f32.mrb[0].mxu0
        %1827 = vmatprep.mubr.bf16.mxu0 0
        %1828 = vmatmul.mubr.bf16.gmra.mrb[0].mxu0 %v1303
        %v1829 = vpop.f32.mrb[0].mxu0
        %v1830 = vadd.f32 0.0, %v1829
        %v1831 = vpop.f32.mrb[0].mxu0
        %v1832 = vpop.f32.mrb[0].mxu0
        %v1833 = vadd.f32 0.0, %v1832
        %v1834 = vpop.f32.mrb[0].mxu0
        %1835 = vmatprep.mubr.bf16.mxu0 0
        %1836 = vmatmul.mubr.bf16.gmra.mrb[0].mxu0 %v1306
        %v1837 = vpop.f32.mrb[0].mxu0
        %v1838 = vadd.f32 0.0, %v1837
        %v1839 = vpop.f32.mrb[0].mxu0
        %v1840 = vpop.f32.mrb[0].mxu0
        %v1841 = vadd.f32 0.0, %v1840
        %v1842 = vpop.f32.mrb[0].mxu0
        %1843 = vmatprep.mubr.bf16.mxu0 0
        %1844 = vmatmul.mubr.bf16.gmra.mrb[0].mxu0 %v1309
        %v1845 = vpop.f32.mrb[0].mxu0
        %v1846 = vadd.f32 0.0, %v1845
        %v1847 = vpop.f32.mrb[0].mxu0
        %v1848 = vpop.f32.mrb[0].mxu0
        %v1849 = vadd.f32 0.0, %v1848
        %v1850 = vpop.f32.mrb[0].mxu0
        %1851 = vmatprep.mubr.bf16.mxu0 0
        %1852 = vmatmul.mubr.bf16.gmra.mrb[0].mxu0 %v1312
        %v1853 = vpop.f32.mrb[0].mxu0
        %v1854 = vadd.f32 0.0, %v1853
        %v1855 = vpop.f32.mrb[0].mxu0
        %v1856 = vpop.f32.mrb[0].mxu0
        %v1857 = vadd.f32 0.0, %v1856
        %v1858 = vpop.f32.mrb[0].mxu0
        %1859 = vmatprep.mubr.bf16.mxu0 0
        %1860 = vmatmul.mubr.bf16.gmra.mrb[0].mxu0 %v1315
        %v1861 = vpop.f32.mrb[0].mxu0
        %v1862 = vadd.f32 0.0, %v1861
        %v1863 = vpop.f32.mrb[0].mxu0
        %v1864 = vpop.f32.mrb[0].mxu0
        %v1865 = vadd.f32 0.0, %v1864
        %v1866 = vpop.f32.mrb[0].mxu0
        %1867 = vmatprep.mubr.bf16.mxu0 0
        %1868 = vmatmul.mubr.bf16.gmra.mrb[0].mxu0 %v1318
        %v1869 = vpop.f32.mrb[0].mxu0
        %v1870 = vadd.f32 0.0, %v1869
        %v1871 = vpop.f32.mrb[0].mxu0
        %v1872 = vpop.f32.mrb[0].mxu0
        %v1873 = vadd.f32 0.0, %v1872
        %v1874 = vpop.f32.mrb[0].mxu0
        %1875 = vmatprep.mubr.bf16.mxu0 0
        %1876 = vmatmul.mubr.bf16.gmra.mrb[0].mxu0 %v1321
        %v1877 = vpop.f32.mrb[0].mxu0
        %v1878 = vadd.f32 0.0, %v1877
        %v1879 = vpop.f32.mrb[0].mxu0
        %v1880 = vpop.f32.mrb[0].mxu0
        %v1881 = vadd.f32 0.0, %v1880
        %v1882 = vpop.f32.mrb[0].mxu0
        %1883 = vmatprep.mubr.bf16.mxu0 0
        %1884 = vmatmul.mubr.bf16.gmra.mrb[0].mxu0 %v1324
        %v1885 = vpop.f32.mrb[0].mxu0
        %v1886 = vadd.f32 0.0, %v1885
        %v1887 = vpop.f32.mrb[0].mxu0
        %v1888 = vpop.f32.mrb[0].mxu0
        %v1889 = vadd.f32 0.0, %v1888
        %v1890 = vpop.f32.mrb[0].mxu0
        %1891 = vmatprep.mubr.bf16.mxu0 0
        %1892 = vmatmul.mubr.bf16.gmra.mrb[0].mxu0 %v1327
        %v1893 = vpop.f32.mrb[0].mxu0
        %v1894 = vadd.f32 0.0, %v1893
        %v1895 = vpop.f32.mrb[0].mxu0
        %v1896 = vpop.f32.mrb[0].mxu0
        %v1897 = vadd.f32 0.0, %v1896
        %v1898 = vpop.f32.mrb[0].mxu0
        %1899 = vmatprep.mubr.bf16.mxu0 0
        %1900 = vmatmul.mubr.bf16.gmra.mrb[0].mxu0 %v1330
        %v1901 = vpop.f32.mrb[0].mxu0
        %v1902 = vadd.f32 0.0, %v1901
        %v1903 = vpop.f32.mrb[0].mxu0
        %v1904 = vpop.f32.mrb[0].mxu0
        %v1905 = vadd.f32 0.0, %v1904
        %v1906 = vpop.f32.mrb[0].mxu0
        %1907 = vmatprep.mubr.bf16.mxu0 0
        %1908 = vmatmul.mubr.bf16.gmra.mrb[0].mxu0 %v1333
        %v1909 = vpop.f32.mrb[0].mxu0
        %v1910 = vadd.f32 0.0, %v1909
        %v1911 = vpop.f32.mrb[0].mxu0
        %v1912 = vpop.f32.mrb[0].mxu0
        %v1913 = vadd.f32 0.0, %v1912
        %v1914 = vpop.f32.mrb[0].mxu0
        %1915 = vmatprep.mubr.bf16.mxu0 0
        %1916 = vmatmul.mubr.bf16.gmra.mrb[0].mxu0 %v1336
        %v1917 = vpop.f32.mrb[0].mxu0
        %v1918 = vadd.f32 0.0, %v1917
        %v1919 = vpop.f32.mrb[0].mxu0
        %v1920 = vpop.f32.mrb[0].mxu0
        %v1921 = vadd.f32 0.0, %v1920
        %v1922 = vpop.f32.mrb[0].mxu0
        %1923 = vmatprep.mubr.bf16.mxu0 0
        %1924 = vmatmul.mubr.bf16.gmra.mrb[0].mxu0 %v1339
        %v1925 = vpop.f32.mrb[0].mxu0
        %v1926 = vadd.f32 0.0, %v1925
        %v1927 = vpop.f32.mrb[0].mxu0
        %v1928 = vpop.f32.mrb[0].mxu0
        %v1929 = vadd.f32 0.0, %v1928
        %v1930 = vpop.f32.mrb[0].mxu0
        %1931 = vmatprep.mubr.bf16.mxu0 0
        %1932 = vmatmul.mubr.bf16.gmra.mrb[0].mxu0 %v1342
        %v1933 = vpop.f32.mrb[0].mxu0
        %v1934 = vadd.f32 0.0, %v1933
        %v1935 = vpop.f32.mrb[0].mxu0
        %v1936 = vpop.f32.mrb[0].mxu0
        %v1937 = vadd.f32 0.0, %v1936
        %v1938 = vpop.f32.mrb[0].mxu0
        %1939 = vmatprep.mubr.bf16.mxu0 0
        %1940 = vmatmul.mubr.bf16.gmra.mrb[0].mxu0 %v1345
        %v1941 = vpop.f32.mrb[0].mxu0
        %v1942 = vadd.f32 0.0, %v1941
        %v1943 = vpop.f32.mrb[0].mxu0
        %v1944 = vpop.f32.mrb[0].mxu0
        %v1945 = vadd.f32 0.0, %v1944
        %v1946 = vpop.f32.mrb[0].mxu0
        %1947 = vmatprep.mubr.bf16.mxu0 0
        %1948 = vmatmul.mubr.bf16.gmra.mrb[0].mxu0 %v1348
        %v1949 = vpop.f32.mrb[0].mxu0
        %v1950 = vadd.f32 0.0, %v1949
        %v1951 = vpop.f32.mrb[0].mxu0
        %v1952 = vpop.f32.mrb[0].mxu0
        %v1953 = vadd.f32 0.0, %v1952
        %v1954 = vpop.f32.mrb[0].mxu0
        %1955 = vmatprep.mubr.bf16.mxu0 0
        %1956 = vmatmul.mubr.bf16.gmra.mrb[0].mxu0 %v1351
        %v1957 = vpop.f32.mrb[0].mxu0
        %v1958 = vadd.f32 0.0, %v1957
        %v1959 = vpop.f32.mrb[0].mxu0
        %v1960 = vpop.f32.mrb[0].mxu0
        %v1961 = vadd.f32 0.0, %v1960
        %v1962 = vpop.f32.mrb[0].mxu0
        %1963 = vmatprep.mubr.bf16.mxu0 0
        %1964 = vmatmul.mubr.bf16.gmra.mrb[0].mxu0 %v1354
        %v1965 = vpop.f32.mrb[0].mxu0
        %v1966 = vadd.f32 0.0, %v1965
        %v1967 = vpop.f32.mrb[0].mxu0
        %v1968 = vpop.f32.mrb[0].mxu0
        %v1969 = vadd.f32 0.0, %v1968
        %v1970 = vpop.f32.mrb[0].mxu0
        %1971 = vmatprep.mubr.bf16.mxu0 0
        %1972 = vmatmul.mubr.bf16.gmra.mrb[0].mxu0 %v1357
        %v1973 = vpop.f32.mrb[0].mxu0
        %v1974 = vadd.f32 0.0, %v1973
        %v1975 = vpop.f32.mrb[0].mxu0
        %v1976 = vpop.f32.mrb[0].mxu0
        %v1977 = vadd.f32 0.0, %v1976
        %v1978 = vpop.f32.mrb[0].mxu0
        %1979 = vmatprep.mubr.bf16.mxu0 0
        %1980 = vmatmul.mubr.bf16.gmra.mrb[0].mxu0 %v1360
        %v1981 = vpop.f32.mrb[0].mxu0
        %v1982 = vadd.f32 0.0, %v1981
        %v1983 = vpop.f32.mrb[0].mxu0
        %v1984 = vpop.f32.mrb[0].mxu0
        %v1985 = vadd.f32 0.0, %v1984
        %v1986 = vpop.f32.mrb[0].mxu0
        %1987 = vmatprep.mubr.bf16.mxu0 0
        %1988 = vmatmul.mubr.bf16.gmra.mrb[0].mxu0 %v1363
        %v1989 = vpop.f32.mrb[0].mxu0
        %v1990 = vadd.f32 0.0, %v1989
        %v1991 = vpop.f32.mrb[0].mxu0
        %v1992 = vpop.f32.mrb[0].mxu0
        %v1993 = vadd.f32 0.0, %v1992
        %v1994 = vpop.f32.mrb[0].mxu0
        %1995 = vmatprep.mubr.bf16.mxu0 0
        %1996 = vmatmul.mubr.bf16.gmra.mrb[0].mxu0 %v1366
        %v1997 = vpop.f32.mrb[0].mxu0
        %v1998 = vadd.f32 0.0, %v1997
        %v1999 = vpop.f32.mrb[0].mxu0
        %v2000 = vpop.f32.mrb[0].mxu0
        %v2001 = vadd.f32 0.0, %v2000
        %v2002 = vpop.f32.mrb[0].mxu0
        %2003 = vmatprep.mubr.bf16.mxu0 0
        %2004 = vmatmul.mubr.bf16.gmra.mrb[0].mxu0 %v1369
        %v2005 = vpop.f32.mrb[0].mxu0
        %v2006 = vadd.f32 0.0, %v2005
        %v2007 = vpop.f32.mrb[0].mxu0
        %v2008 = vpop.f32.mrb[0].mxu0
        %v2009 = vadd.f32 0.0, %v2008
        %v2010 = vpop.f32.mrb[0].mxu0
        %2011 = vmatprep.mubr.bf16.mxu0 0
        %2012 = vmatmul.mubr.bf16.gmra.mrb[0].mxu0 %v1372
        %v2013 = vpop.f32.mrb[0].mxu0
        %v2014 = vadd.f32 0.0, %v2013
        %v2015 = vpop.f32.mrb[0].mxu0
        %v2016 = vpop.f32.mrb[0].mxu0
        %v2017 = vadd.f32 0.0, %v2016
        %v2018 = vpop.f32.mrb[0].mxu0
        %2019 = vmatprep.mubr.bf16.mxu0 0
        %2020 = vmatmul.mubr.bf16.gmra.mrb[0].mxu0 %v1375
        %v2021 = vpop.f32.mrb[0].mxu0
        %v2022 = vadd.f32 0.0, %v2021
        %v2023 = vpop.f32.mrb[0].mxu0
        %v2024 = vpop.f32.mrb[0].mxu0
        %v2025 = vadd.f32 0.0, %v2024
        %v2026 = vpop.f32.mrb[0].mxu0
        %2027 = vmatprep.mubr.bf16.mxu0 0
        %2028 = vmatmul.mubr.bf16.gmra.mrb[0].mxu0 %v1378
        %v2029 = vpop.f32.mrb[0].mxu0
        %v2030 = vadd.f32 0.0, %v2029
        %v2031 = vpop.f32.mrb[0].mxu0
        %v2032 = vpop.f32.mrb[0].mxu0
        %v2033 = vadd.f32 0.0, %v2032
        %v2034 = vpop.f32.mrb[0].mxu0
        %2035 = vmatprep.mubr.bf16.mxu0 0
        %2036 = vmatmul.mubr.bf16.gmra.mrb[0].mxu0 %v1381
        %v2037 = vpop.f32.mrb[0].mxu0
        %v2038 = vadd.f32 0.0, %v2037
        %v2039 = vpop.f32.mrb[0].mxu0
        %v2040 = vpop.f32.mrb[0].mxu0
        %v2041 = vadd.f32 0.0, %v2040
        %v2042 = vpop.f32.mrb[0].mxu0
        %2043 = vmatprep.mubr.bf16.mxu0 0
        %2044 = vmatmul.mubr.bf16.gmra.mrb[0].mxu0 %v1384
        %v2045 = vpop.f32.mrb[0].mxu0
        %v2046 = vadd.f32 0.0, %v2045
        %v2047 = vpop.f32.mrb[0].mxu0
        %v2048 = vpop.f32.mrb[0].mxu0
        %v2049 = vadd.f32 0.0, %v2048
        %v2050 = vpop.f32.mrb[0].mxu0
        %2051 = vmatprep.mubr.bf16.mxu0 0
        %2052 = vmatmul.mubr.bf16.gmra.mrb[0].mxu0 %v1387
        %v2053 = vpop.f32.mrb[0].mxu0
        %v2054 = vadd.f32 0.0, %v2053
        %v2055 = vpop.f32.mrb[0].mxu0
        %v2056 = vpop.f32.mrb[0].mxu0
        %v2057 = vadd.f32 0.0, %v2056
        %v2058 = vpop.f32.mrb[0].mxu0
        %2059 = vmatprep.mubr.bf16.mxu0 0
        %2060 = vmatmul.mubr.bf16.gmra.mrb[0].mxu0 %v1390
        %v2061 = vpop.f32.mrb[0].mxu0
        %v2062 = vadd.f32 0.0, %v2061
        %v2063 = vpop.f32.mrb[0].mxu0
        %v2064 = vpop.f32.mrb[0].mxu0
        %v2065 = vadd.f32 0.0, %v2064
        %v2066 = vpop.f32.mrb[0].mxu0
        %2067 = vmatprep.mubr.bf16.mxu0 0
        %2068 = vmatmul.mubr.bf16.gmra.mrb[0].mxu0 %v1393
        %v2069 = vpop.f32.mrb[0].mxu0
        %v2070 = vadd.f32 0.0, %v2069
        %v2071 = vpop.f32.mrb[0].mxu0
        %v2072 = vpop.f32.mrb[0].mxu0
        %v2073 = vadd.f32 0.0, %v2072
        %v2074 = vpop.f32.mrb[0].mxu0
        %2075 = vmatprep.mubr.bf16.mxu0 0
        %2076 = vmatmul.mubr.bf16.gmra.mrb[0].mxu0 %v1396
        %v2077 = vpop.f32.mrb[0].mxu0
        %v2078 = vadd.f32 0.0, %v2077
        %v2079 = vpop.f32.mrb[0].mxu0
        %v2080 = vpop.f32.mrb[0].mxu0
        %v2081 = vadd.f32 0.0, %v2080
        %v2082 = vpop.f32.mrb[0].mxu0
        %2083 = vmatprep.mubr.bf16.mxu0 0
        %2084 = vmatmul.mubr.bf16.gmra.mrb[0].mxu0 %v1399
        %v2085 = vpop.f32.mrb[0].mxu0
        %v2086 = vadd.f32 0.0, %v2085
        %v2087 = vpop.f32.mrb[0].mxu0
        %v2088 = vpop.f32.mrb[0].mxu0
        %v2089 = vadd.f32 0.0, %v2088
        %v2090 = vpop.f32.mrb[0].mxu0
        %2091 = vmatprep.mubr.bf16.mxu0 0
        %2092 = vmatmul.mubr.bf16.gmra.mrb[0].mxu0 %v1402
        %v2093 = vpop.f32.mrb[0].mxu0
        %v2094 = vadd.f32 0.0, %v2093
        %v2095 = vpop.f32.mrb[0].mxu0
        %v2096 = vpop.f32.mrb[0].mxu0
        %v2097 = vadd.f32 0.0, %v2096
        %v2098 = vpop.f32.mrb[0].mxu0
        %2099 = vmatprep.mubr.bf16.mxu0 0
        %2100 = vmatmul.mubr.bf16.gmra.mrb[0].mxu0 %v1405
        %v2101 = vpop.f32.mrb[0].mxu0
        %v2102 = vadd.f32 0.0, %v2101
        %v2103 = vpop.f32.mrb[0].mxu0
        %v2104 = vpop.f32.mrb[0].mxu0
        %v2105 = vadd.f32 0.0, %v2104
        %v2106 = vpop.f32.mrb[0].mxu0
        %2107 = vmatprep.mubr.bf16.mxu0 0
        %2108 = vmatmul.mubr.bf16.gmra.mrb[0].mxu0 %v1408
        %v2109 = vpop.f32.mrb[0].mxu0
        %v2110 = vadd.f32 0.0, %v2109
        %v2111 = vpop.f32.mrb[0].mxu0
        %v2112 = vpop.f32.mrb[0].mxu0
        %v2113 = vadd.f32 0.0, %v2112
        %v2114 = vpop.f32.mrb[0].mxu0
        %2115 = vmatprep.mubr.bf16.mxu0 0
        %2116 = vmatmul.mubr.bf16.gmra.mrb[0].mxu0 %v1411
        %v2117 = vpop.f32.mrb[0].mxu0
        %v2118 = vadd.f32 0.0, %v2117
        %v2119 = vpop.f32.mrb[0].mxu0
        %v2120 = vpop.f32.mrb[0].mxu0
        %v2121 = vadd.f32 0.0, %v2120
        %v2122 = vpop.f32.mrb[0].mxu0
        %2123 = vmatprep.mubr.bf16.mxu0 0
        %2124 = vmatmul.mubr.bf16.gmra.mrb[0].mxu0 %v1414
        %v2125 = vpop.f32.mrb[0].mxu0
        %v2126 = vadd.f32 0.0, %v2125
        %v2127 = vpop.f32.mrb[0].mxu0
        %v2128 = vpop.f32.mrb[0].mxu0
        %v2129 = vadd.f32 0.0, %v2128
        %v2130 = vpop.f32.mrb[0].mxu0
        %2131 = vmatprep.mubr.bf16.mxu0 0
        %2132 = vmatmul.mubr.bf16.gmra.mrb[0].mxu0 %v1417
        %v2133 = vpop.f32.mrb[0].mxu0
        %v2134 = vadd.f32 0.0, %v2133
        %v2135 = vpop.f32.mrb[0].mxu0
        %v2136 = vpop.f32.mrb[0].mxu0
        %v2137 = vadd.f32 0.0, %v2136
        %v2138 = vpop.f32.mrb[0].mxu0
        %2139 = vmatprep.mubr.bf16.mxu0 0
        %2140 = vmatmul.mubr.bf16.gmra.mrb[0].mxu0 %v1420
        %v2141 = vpop.f32.mrb[0].mxu0
        %v2142 = vadd.f32 0.0, %v2141
        %v2143 = vpop.f32.mrb[0].mxu0
        %v2144 = vpop.f32.mrb[0].mxu0
        %v2145 = vadd.f32 0.0, %v2144
        %v2146 = vpop.f32.mrb[0].mxu0
        %2147 = vmatprep.mubr.bf16.mxu0 0
        %2148 = vmatmul.mubr.bf16.gmra.mrb[0].mxu0 %v1423
        %v2149 = vpop.f32.mrb[0].mxu0
        %v2150 = vadd.f32 0.0, %v2149
        %v2151 = vpop.f32.mrb[0].mxu0
        %v2152 = vpop.f32.mrb[0].mxu0
        %v2153 = vadd.f32 0.0, %v2152
        %v2154 = vpop.f32.mrb[0].mxu0
        %2155 = vmatprep.mubr.bf16.mxu0 0
        %2156 = vmatmul.mubr.bf16.gmra.mrb[0].mxu0 %v1426
        %v2157 = vpop.f32.mrb[0].mxu0
        %v2158 = vadd.f32 0.0, %v2157
        %v2159 = vpop.f32.mrb[0].mxu0
        %v2160 = vpop.f32.mrb[0].mxu0
        %v2161 = vadd.f32 0.0, %v2160
        %v2162 = vpop.f32.mrb[0].mxu0
        %2163 = vmatprep.mubr.bf16.mxu0 0
        %2164 = vmatmul.mubr.bf16.gmra.mrb[0].mxu0 %v1429
        %v2165 = vpop.f32.mrb[0].mxu0
        %v2166 = vadd.f32 0.0, %v2165
        %v2167 = vpop.f32.mrb[0].mxu0
        %v2168 = vpop.f32.mrb[0].mxu0
        %v2169 = vadd.f32 0.0, %v2168
        %v2170 = vpop.f32.mrb[0].mxu0
        %2171 = vmatprep.mubr.bf16.mxu0 0
        %2172 = vmatmul.mubr.bf16.gmra.mrb[0].mxu0 %v1432
        %v2173 = vpop.f32.mrb[0].mxu0
        %v2174 = vadd.f32 0.0, %v2173
        %v2175 = vpop.f32.mrb[0].mxu0
        %v2176 = vpop.f32.mrb[0].mxu0
        %v2177 = vadd.f32 0.0, %v2176
        %v2178 = vpop.f32.mrb[0].mxu0
        %2179 = vmatprep.mubr.bf16.mxu0 0
        %2180 = vmatmul.mubr.bf16.gmra.mrb[0].mxu0 %v1435
        %v2181 = vpop.f32.mrb[0].mxu0
        %v2182 = vadd.f32 0.0, %v2181
        %v2183 = vpop.f32.mrb[0].mxu0
        %v2184 = vpop.f32.mrb[0].mxu0
        %v2185 = vadd.f32 0.0, %v2184
        %v2186 = vpop.f32.mrb[0].mxu0
        %2187 = vmatprep.mubr.bf16.mxu0 0
        %2188 = vmatmul.mubr.bf16.gmra.mrb[0].mxu0 %v1438
        %v2189 = vpop.f32.mrb[0].mxu0
        %v2190 = vadd.f32 0.0, %v2189
        %v2191 = vpop.f32.mrb[0].mxu0
        %v2192 = vpop.f32.mrb[0].mxu0
        %v2193 = vadd.f32 0.0, %v2192
        %v2194 = vpop.f32.mrb[0].mxu0
        %2195 = vmatprep.mubr.bf16.mxu0 0
        %2196 = vmatmul.mubr.bf16.gmra.mrb[0].mxu0 %v1441
        %v2197 = vpop.f32.mrb[0].mxu0
        %v2198 = vadd.f32 0.0, %v2197
        %v2199 = vpop.f32.mrb[0].mxu0
        %v2200 = vpop.f32.mrb[0].mxu0
        %v2201 = vadd.f32 0.0, %v2200
        %v2202 = vpop.f32.mrb[0].mxu0
        %2203 = vmatprep.mubr.bf16.mxu0 0
        %2204 = vmatmul.mubr.bf16.gmra.mrb[0].mxu0 %v1444
        %v2205 = vpop.f32.mrb[0].mxu0
        %v2206 = vadd.f32 0.0, %v2205
        %v2207 = vpop.f32.mrb[0].mxu0
        %v2208 = vpop.f32.mrb[0].mxu0
        %v2209 = vadd.f32 0.0, %v2208
        %v2210 = vpop.f32.mrb[0].mxu0
        %2211 = vmatprep.mubr.bf16.mxu0 0
        %2212 = vmatmul.mubr.bf16.gmra.mrb[0].mxu0 %v1447
        %v2213 = vpop.f32.mrb[0].mxu0
        %v2214 = vadd.f32 0.0, %v2213
        %v2215 = vpop.f32.mrb[0].mxu0
        %v2216 = vpop.f32.mrb[0].mxu0
        %v2217 = vadd.f32 0.0, %v2216
        %v2218 = vpop.f32.mrb[0].mxu0
        %2219 = vmatprep.mubr.bf16.mxu0 0
        %2220 = vmatmul.mubr.bf16.gmra.mrb[0].mxu0 %v1450
        %v2221 = vpop.f32.mrb[0].mxu0
        %v2222 = vadd.f32 0.0, %v2221
        %v2223 = vpop.f32.mrb[0].mxu0
        %v2224 = vpop.f32.mrb[0].mxu0
        %v2225 = vadd.f32 0.0, %v2224
        %v2226 = vpop.f32.mrb[0].mxu0
        %2227 = vmatprep.mubr.bf16.mxu0 0
        %2228 = vmatmul.mubr.bf16.gmra.mrb[0].mxu0 %v1453
        %v2229 = vpop.f32.mrb[0].mxu0
        %v2230 = vadd.f32 0.0, %v2229
        %v2231 = vpop.f32.mrb[0].mxu0
        %v2232 = vpop.f32.mrb[0].mxu0
        %v2233 = vadd.f32 0.0, %v2232
        %v2234 = vpop.f32.mrb[0].mxu0
        %2235 = vmatprep.mubr.bf16.mxu0 0
        %2236 = vmatmul.mubr.bf16.gmra.mrb[0].mxu0 %v1456
        %v2237 = vpop.f32.mrb[0].mxu0
        %v2238 = vadd.f32 0.0, %v2237
        %v2239 = vpop.f32.mrb[0].mxu0
        %v2240 = vpop.f32.mrb[0].mxu0
        %v2241 = vadd.f32 0.0, %v2240
        %v2242 = vpop.f32.mrb[0].mxu0
        %2243 = vmatprep.mubr.bf16.mxu0 0
        %2244 = vmatmul.mubr.bf16.gmra.mrb[0].mxu0 %v1459
        %v2245 = vpop.f32.mrb[0].mxu0
        %v2246 = vadd.f32 0.0, %v2245
        %v2247 = vpop.f32.mrb[0].mxu0
        %v2248 = vpop.f32.mrb[0].mxu0
        %v2249 = vadd.f32 0.0, %v2248
        %v2250 = vpop.f32.mrb[0].mxu0
        %2251 = vmatprep.mubr.bf16.mxu0 0
        %2252 = vmatmul.mubr.bf16.gmra.mrb[0].mxu0 %v1462
        %v2253 = vpop.f32.mrb[0].mxu0
        %v2254 = vadd.f32 0.0, %v2253
        %v2255 = vpop.f32.mrb[0].mxu0
        %v2256 = vpop.f32.mrb[0].mxu0
        %v2257 = vadd.f32 0.0, %v2256
        %v2258 = vpop.f32.mrb[0].mxu0
        %2259 = vmatprep.mubr.bf16.mxu0 0
        %2260 = vmatmul.mubr.bf16.gmra.mrb[0].mxu0 %v1465
        %v2261 = vpop.f32.mrb[0].mxu0
        %v2262 = vadd.f32 0.0, %v2261
        %v2263 = vpop.f32.mrb[0].mxu0
        %v2264 = vpop.f32.mrb[0].mxu0
        %v2265 = vadd.f32 0.0, %v2264
        %v2266 = vpop.f32.mrb[0].mxu0
        %2267 = vmatprep.mubr.bf16.mxu0 0
        %2268 = vmatmul.mubr.bf16.gmra.mrb[0].mxu0 %v1468
        %v2269 = vpop.f32.mrb[0].mxu0
        %v2270 = vadd.f32 0.0, %v2269
        %v2271 = vpop.f32.mrb[0].mxu0
        %v2272 = vpop.f32.mrb[0].mxu0
        %v2273 = vadd.f32 0.0, %v2272
        %v2274 = vpop.f32.mrb[0].mxu0
        %2275 = vmatprep.mubr.bf16.mxu0 0
        %2276 = vmatmul.mubr.bf16.gmra.mrb[0].mxu0 %v1471
        %v2277 = vpop.f32.mrb[0].mxu0
        %v2278 = vadd.f32 0.0, %v2277
        %v2279 = vpop.f32.mrb[0].mxu0
        %v2280 = vpop.f32.mrb[0].mxu0
        %v2281 = vadd.f32 0.0, %v2280
        %v2282 = vpop.f32.mrb[0].mxu0
        %2283 = vmatprep.mubr.bf16.mxu0 0
        %2284 = vmatmul.mubr.bf16.gmra.mrb[0].mxu0 %v1474
        %v2285 = vpop.f32.mrb[0].mxu0
        %v2286 = vadd.f32 0.0, %v2285
        %v2287 = vpop.f32.mrb[0].mxu0
        %v2288 = vpop.f32.mrb[0].mxu0
        %v2289 = vadd.f32 0.0, %v2288
        %v2290 = vpop.f32.mrb[0].mxu0
        %2291 = vmatprep.mubr.bf16.mxu0 0
        %2292 = vmatmul.mubr.bf16.gmra.mrb[0].mxu0 %v1477
        %v2293 = vpop.f32.mrb[0].mxu0
        %v2294 = vadd.f32 0.0, %v2293
        %v2295 = vpop.f32.mrb[0].mxu0
        %v2296 = vpop.f32.mrb[0].mxu0
        %v2297 = vadd.f32 0.0, %v2296
        %v2298 = vpop.f32.mrb[0].mxu0
        %2299 = vmatprep.mubr.bf16.mxu0 0
        %2300 = vmatmul.mubr.bf16.gmra.mrb[0].mxu0 %v1480
        %v2301 = vpop.f32.mrb[0].mxu0
        %v2302 = vadd.f32 0.0, %v2301
        %v2303 = vpop.f32.mrb[0].mxu0
        %v2304 = vpop.f32.mrb[0].mxu0
        %v2305 = vadd.f32 0.0, %v2304
        %v2306 = vpop.f32.mrb[0].mxu0
        %2307 = vmatprep.mubr.bf16.mxu0 0
        %2308 = vmatmul.mubr.bf16.gmra.mrb[0].mxu0 %v1483
        %v2309 = vpop.f32.mrb[0].mxu0
        %v2310 = vadd.f32 0.0, %v2309
        %v2311 = vpop.f32.mrb[0].mxu0
        %v2312 = vpop.f32.mrb[0].mxu0
        %v2313 = vadd.f32 0.0, %v2312
        %v2314 = vpop.f32.mrb[0].mxu0
        %2315 = vmatprep.mubr.bf16.mxu0 0
        %2316 = vmatmul.mubr.bf16.gmra.mrb[0].mxu0 %v1486
        %v2317 = vpop.f32.mrb[0].mxu0
        %v2318 = vadd.f32 0.0, %v2317
        %v2319 = vpop.f32.mrb[0].mxu0
        %v2320 = vpop.f32.mrb[0].mxu0
        %v2321 = vadd.f32 0.0, %v2320
        %v2322 = vpop.f32.mrb[0].mxu0
        %2323 = vmatprep.mubr.bf16.mxu0 0
        %2324 = vmatmul.mubr.bf16.gmra.mrb[0].mxu0 %v1489
        %v2325 = vpop.f32.mrb[0].mxu0
        %v2326 = vadd.f32 0.0, %v2325
        %v2327 = vpop.f32.mrb[0].mxu0
        %v2328 = vpop.f32.mrb[0].mxu0
        %v2329 = vadd.f32 0.0, %v2328
        %v2330 = vpop.f32.mrb[0].mxu0
        %2331 = vmatprep.mubr.bf16.mxu0 0
        %2332 = vmatmul.mubr.bf16.gmra.mrb[0].mxu0 %v1492
        %v2333 = vpop.f32.mrb[0].mxu0
        %v2334 = vadd.f32 0.0, %v2333
        %v2335 = vpop.f32.mrb[0].mxu0
        %v2336 = vpop.f32.mrb[0].mxu0
        %v2337 = vadd.f32 0.0, %v2336
        %v2338 = vpop.f32.mrb[0].mxu0
        %2339 = vmatprep.mubr.bf16.mxu0 0
        %2340 = vmatmul.mubr.bf16.gmra.mrb[0].mxu0 %v1495
        %v2341 = vpop.f32.mrb[0].mxu0
        %v2342 = vadd.f32 0.0, %v2341
        %v2343 = vpop.f32.mrb[0].mxu0
        %v2344 = vpop.f32.mrb[0].mxu0
        %v2345 = vadd.f32 0.0, %v2344
        %v2346 = vpop.f32.mrb[0].mxu0
        %2347 = vmatprep.mubr.bf16.mxu0 0
        %2348 = vmatmul.mubr.bf16.gmra.mrb[0].mxu0 %v1498
        %v2349 = vpop.f32.mrb[0].mxu0
        %v2350 = vadd.f32 0.0, %v2349
        %v2351 = vpop.f32.mrb[0].mxu0
        %v2352 = vpop.f32.mrb[0].mxu0
        %v2353 = vadd.f32 0.0, %v2352
        %v2354 = vpop.f32.mrb[0].mxu0
        %2355 = vmatprep.mubr.bf16.mxu0 0
        %2356 = vmatmul.mubr.bf16.gmra.mrb[0].mxu0 %v1501
        %v2357 = vpop.f32.mrb[0].mxu0
        %v2358 = vadd.f32 0.0, %v2357
        %v2359 = vpop.f32.mrb[0].mxu0
        %v2360 = vpop.f32.mrb[0].mxu0
        %v2361 = vadd.f32 0.0, %v2360
        %v2362 = vpop.f32.mrb[0].mxu0
        %2363 = vmatprep.mubr.bf16.mxu0 0
        %2364 = vmatmul.mubr.bf16.gmra.mrb[0].mxu0 %v1504
        %v2365 = vpop.f32.mrb[0].mxu0
        %v2366 = vadd.f32 0.0, %v2365
        %v2367 = vpop.f32.mrb[0].mxu0
        %v2368 = vpop.f32.mrb[0].mxu0
        %v2369 = vadd.f32 0.0, %v2368
        %v2370 = vpop.f32.mrb[0].mxu0
        %2371 = vmatprep.mubr.bf16.mxu0 0
        %2372 = vmatmul.mubr.bf16.gmra.mrb[0].mxu0 %v1507
        %v2373 = vpop.f32.mrb[0].mxu0
        %v2374 = vadd.f32 0.0, %v2373
        %v2375 = vpop.f32.mrb[0].mxu0
        %v2376 = vpop.f32.mrb[0].mxu0
        %v2377 = vadd.f32 0.0, %v2376
        %v2378 = vpop.f32.mrb[0].mxu0
        %2379 = vmatprep.mubr.bf16.mxu0 0
        %2380 = vmatmul.mubr.bf16.gmra.mrb[0].mxu0 %v1510
        %v2381 = vpop.f32.mrb[0].mxu0
        %v2382 = vadd.f32 0.0, %v2381
        %v2383 = vpop.f32.mrb[0].mxu0
        %v2384 = vpop.f32.mrb[0].mxu0
        %v2385 = vadd.f32 0.0, %v2384
        %v2386 = vpop.f32.mrb[0].mxu0
        %2387 = vmatprep.mubr.bf16.mxu0 0
        %2388 = vmatmul.mubr.bf16.gmra.mrb[0].mxu0 %v1513
        %v2389 = vpop.f32.mrb[0].mxu0
        %v2390 = vadd.f32 0.0, %v2389
        %v2391 = vpop.f32.mrb[0].mxu0
        %v2392 = vpop.f32.mrb[0].mxu0
        %v2393 = vadd.f32 0.0, %v2392
        %v2394 = vpop.f32.mrb[0].mxu0
        %2395 = vmatprep.mubr.bf16.mxu0 0
        %2396 = vmatmul.mubr.bf16.gmra.mrb[0].mxu0 %v1516
        %v2397 = vpop.f32.mrb[0].mxu0
        %v2398 = vadd.f32 0.0, %v2397
        %v2399 = vpop.f32.mrb[0].mxu0
        %v2400 = vpop.f32.mrb[0].mxu0
        %v2401 = vadd.f32 0.0, %v2400
        %v2402 = vpop.f32.mrb[0].mxu0
        %2403 = vmatprep.mubr.bf16.mxu0 0
        %2404 = vmatmul.mubr.bf16.gmra.mrb[0].mxu0 %v1519
        %v2405 = vpop.f32.mrb[0].mxu0
        %v2406 = vadd.f32 0.0, %v2405
        %v2407 = vpop.f32.mrb[0].mxu0
        %v2408 = vpop.f32.mrb[0].mxu0
        %v2409 = vadd.f32 0.0, %v2408
        %v2410 = vpop.f32.mrb[0].mxu0
        %2411 = vmatprep.mubr.bf16.mxu0 0
        %2412 = vmatmul.mubr.bf16.gmra.mrb[0].mxu0 %v1522
        %v2413 = vpop.f32.mrb[0].mxu0
        %v2414 = vadd.f32 0.0, %v2413
        %v2415 = vpop.f32.mrb[0].mxu0
        %v2416 = vpop.f32.mrb[0].mxu0
        %v2417 = vadd.f32 0.0, %v2416
        %v2418 = vpop.f32.mrb[0].mxu0
        %2419 = vmatprep.mubr.bf16.mxu0 0
        %2420 = vmatmul.mubr.bf16.gmra.mrb[0].mxu0 %v1525
        %v2421 = vpop.f32.mrb[0].mxu0
        %v2422 = vadd.f32 0.0, %v2421
        %v2423 = vpop.f32.mrb[0].mxu0
        %v2424 = vpop.f32.mrb[0].mxu0
        %v2425 = vadd.f32 0.0, %v2424
        %v2426 = vpop.f32.mrb[0].mxu0
        %2427 = vmatprep.mubr.bf16.mxu0 0
        %2428 = vmatmul.mubr.bf16.gmra.mrb[0].mxu0 %v1528
        %v2429 = vpop.f32.mrb[0].mxu0
        %v2430 = vadd.f32 0.0, %v2429
        %v2431 = vpop.f32.mrb[0].mxu0
        %v2432 = vpop.f32.mrb[0].mxu0
        %v2433 = vadd.f32 0.0, %v2432
        %v2434 = vpop.f32.mrb[0].mxu0
        %2435 = vmatprep.mubr.bf16.mxu0 0
        %2436 = vmatmul.mubr.bf16.gmra.mrb[0].mxu0 %v1531
        %v2437 = vpop.f32.mrb[0].mxu0
        %v2438 = vadd.f32 0.0, %v2437
        %v2439 = vpop.f32.mrb[0].mxu0
        %v2440 = vpop.f32.mrb[0].mxu0
        %v2441 = vadd.f32 0.0, %v2440
        %v2442 = vpop.f32.mrb[0].mxu0
        %2443 = vmatprep.mubr.bf16.mxu0 0
        %2444 = vmatmul.mubr.bf16.gmra.mrb[0].mxu0 %v1534
        %v2445 = vpop.f32.mrb[0].mxu0
        %v2446 = vadd.f32 0.0, %v2445
        %v2447 = vpop.f32.mrb[0].mxu0
        %v2448 = vpop.f32.mrb[0].mxu0
        %v2449 = vadd.f32 0.0, %v2448
        %v2450 = vpop.f32.mrb[0].mxu0
        %2451 = vmatprep.mubr.bf16.mxu0 0
        %2452 = vmatmul.mubr.bf16.gmra.mrb[0].mxu0 %v1537
        %v2453 = vpop.f32.mrb[0].mxu0
        %v2454 = vadd.f32 0.0, %v2453
        %v2455 = vpop.f32.mrb[0].mxu0
        %v2456 = vpop.f32.mrb[0].mxu0
        %v2457 = vadd.f32 0.0, %v2456
        %v2458 = vpop.f32.mrb[0].mxu0
        %2459 = vmatprep.mubr.bf16.mxu0 0
        %2460 = vmatmul.mubr.bf16.gmra.mrb[0].mxu0 %v1540
        %v2461 = vpop.f32.mrb[0].mxu0
        %v2462 = vadd.f32 0.0, %v2461
        %v2463 = vpop.f32.mrb[0].mxu0
        %v2464 = vpop.f32.mrb[0].mxu0
        %v2465 = vadd.f32 0.0, %v2464
        %v2466 = vpop.f32.mrb[0].mxu0
        %2467 = vmatprep.mubr.bf16.mxu0 0
        %2468 = vmatmul.mubr.bf16.gmra.mrb[0].mxu0 %v1543
        %v2469 = vpop.f32.mrb[0].mxu0
        %v2470 = vadd.f32 0.0, %v2469
        %v2471 = vpop.f32.mrb[0].mxu0
        %v2472 = vpop.f32.mrb[0].mxu0
        %v2473 = vadd.f32 0.0, %v2472
        %v2474 = vpop.f32.mrb[0].mxu0
        %2475 = vmatprep.mubr.bf16.mxu0 0
        %2476 = vmatmul.mubr.bf16.gmra.mrb[0].mxu0 %v1546
        %v2477 = vpop.f32.mrb[0].mxu0
        %v2478 = vadd.f32 0.0, %v2477
        %v2479 = vpop.f32.mrb[0].mxu0
        %v2480 = vpop.f32.mrb[0].mxu0
        %v2481 = vadd.f32 0.0, %v2480
        %v2482 = vpop.f32.mrb[0].mxu0
        %2483 = vmatprep.mubr.bf16.mxu0 0
        %2484 = vmatmul.mubr.bf16.gmra.mrb[0].mxu0 %v1549
        %v2485 = vpop.f32.mrb[0].mxu0
        %v2486 = vadd.f32 0.0, %v2485
        %v2487 = vpop.f32.mrb[0].mxu0
        %v2488 = vpop.f32.mrb[0].mxu0
        %v2489 = vadd.f32 0.0, %v2488
        %v2490 = vpop.f32.mrb[0].mxu0
        %2491 = vmatprep.mubr.bf16.mxu0 0
        %2492 = vmatmul.mubr.bf16.gmra.mrb[0].mxu0 %v1552
        %v2493 = vpop.f32.mrb[0].mxu0
        %v2494 = vadd.f32 0.0, %v2493
        %v2495 = vpop.f32.mrb[0].mxu0
        %v2496 = vpop.f32.mrb[0].mxu0
        %v2497 = vadd.f32 0.0, %v2496
        %v2498 = vpop.f32.mrb[0].mxu0
        %2499 = vmatprep.mubr.bf16.mxu0 0
        %2500 = vmatmul.mubr.bf16.gmra.mrb[0].mxu0 %v1555
        %v2501 = vpop.f32.mrb[0].mxu0
        %v2502 = vadd.f32 0.0, %v2501
        %v2503 = vpop.f32.mrb[0].mxu0
        %v2504 = vpop.f32.mrb[0].mxu0
        %v2505 = vadd.f32 0.0, %v2504
        %v2506 = vpop.f32.mrb[0].mxu0
        %2507 = vmatprep.mubr.bf16.mxu0 0
        %2508 = vmatmul.mubr.bf16.gmra.mrb[0].mxu0 %v1558
        %v2509 = vpop.f32.mrb[0].mxu0
        %v2510 = vadd.f32 0.0, %v2509
        %v2511 = vpop.f32.mrb[0].mxu0
        %v2512 = vpop.f32.mrb[0].mxu0
        %v2513 = vadd.f32 0.0, %v2512
        %v2514 = vpop.f32.mrb[0].mxu0
        %2515 = vmatprep.mubr.bf16.mxu0 0
        %2516 = vmatmul.mubr.bf16.gmra.mrb[0].mxu0 %v1561
        %v2517 = vpop.f32.mrb[0].mxu0
        %v2518 = vadd.f32 0.0, %v2517
        %v2519 = vpop.f32.mrb[0].mxu0
        %v2520 = vpop.f32.mrb[0].mxu0
        %v2521 = vadd.f32 0.0, %v2520
        %v2522 = vpop.f32.mrb[0].mxu0
        %2523 = vmatprep.mubr.bf16.mxu0 0
        %2524 = vmatmul.mubr.bf16.gmra.mrb[0].mxu0 %v1564
        %v2525 = vpop.f32.mrb[0].mxu0
        %v2526 = vadd.f32 0.0, %v2525
        %v2527 = vpop.f32.mrb[0].mxu0
        %v2528 = vpop.f32.mrb[0].mxu0
        %v2529 = vadd.f32 0.0, %v2528
        %v2530 = vpop.f32.mrb[0].mxu0
        %2531 = vmatprep.mubr.bf16.mxu0 0
        %2532 = vmatmul.mubr.bf16.gmra.mrb[0].mxu0 %v1567
        %v2533 = vpop.f32.mrb[0].mxu0
        %v2534 = vadd.f32 0.0, %v2533
        %v2535 = vpop.f32.mrb[0].mxu0
        %v2536 = vpop.f32.mrb[0].mxu0
        %v2537 = vadd.f32 0.0, %v2536
        %v2538 = vpop.f32.mrb[0].mxu0
        %2539 = vmatprep.mubr.bf16.mxu0 0
        %2540 = vmatmul.mubr.bf16.gmra.mrb[0].mxu0 %v1570
        %v2541 = vpop.f32.mrb[0].mxu0
        %v2542 = vadd.f32 0.0, %v2541
        %v2543 = vpop.f32.mrb[0].mxu0
        %v2544 = vpop.f32.mrb[0].mxu0
        %v2545 = vadd.f32 0.0, %v2544
        %v2546 = vpop.f32.mrb[0].mxu0
        %2547 = vmatprep.mubr.bf16.mxu0 0
        %2548 = vmatmul.mubr.bf16.gmra.mrb[0].mxu0 %v1573
        %v2549 = vpop.f32.mrb[0].mxu0
        %v2550 = vadd.f32 0.0, %v2549
        %v2551 = vpop.f32.mrb[0].mxu0
        %v2552 = vpop.f32.mrb[0].mxu0
        %v2553 = vadd.f32 0.0, %v2552
        %v2554 = vpop.f32.mrb[0].mxu0
        %2555 = vmatprep.mubr.bf16.mxu0 0
        %2556 = vmatmul.mubr.bf16.gmra.mrb[0].mxu0 %v1576
        %v2557 = vpop.f32.mrb[0].mxu0
        %v2558 = vadd.f32 0.0, %v2557
        %v2559 = vpop.f32.mrb[0].mxu0
        %v2560 = vpop.f32.mrb[0].mxu0
        %v2561 = vadd.f32 0.0, %v2560
        %v2562 = vpop.f32.mrb[0].mxu0
        %2563 = vmatprep.mubr.bf16.mxu0 0
        %2564 = vmatmul.mubr.bf16.gmra.mrb[0].mxu0 %v1579
        %v2565 = vpop.f32.mrb[0].mxu0
        %v2566 = vadd.f32 0.0, %v2565
        %v2567 = vpop.f32.mrb[0].mxu0
        %v2568 = vpop.f32.mrb[0].mxu0
        %v2569 = vadd.f32 0.0, %v2568
        %v2570 = vpop.f32.mrb[0].mxu0
        %2571 = vmatprep.mubr.bf16.mxu0 0
        %2572 = vmatmul.mubr.bf16.gmra.mrb[0].mxu0 %v1582
        %v2573 = vpop.f32.mrb[0].mxu0
        %v2574 = vadd.f32 0.0, %v2573
        %v2575 = vpop.f32.mrb[0].mxu0
        %v2576 = vpop.f32.mrb[0].mxu0
        %v2577 = vadd.f32 0.0, %v2576
        %v2578 = vpop.f32.mrb[0].mxu0
        %2579 = vmatprep.mubr.bf16.mxu0 0
        %2580 = vmatmul.mubr.bf16.gmra.mrb[0].mxu0 %v1585
        %v2581 = vpop.f32.mrb[0].mxu0
        %v2582 = vadd.f32 0.0, %v2581
        %v2583 = vpop.f32.mrb[0].mxu0
        %v2584 = vpop.f32.mrb[0].mxu0
        %v2585 = vadd.f32 0.0, %v2584
        %v2586 = vpop.f32.mrb[0].mxu0
        %2587 = vmatprep.mubr.bf16.mxu0 0
        %2588 = vmatmul.mubr.bf16.gmra.mrb[0].mxu0 %v1588
        %v2589 = vpop.f32.mrb[0].mxu0
        %v2590 = vadd.f32 0.0, %v2589
        %v2591 = vpop.f32.mrb[0].mxu0
        %v2592 = vpop.f32.mrb[0].mxu0
        %v2593 = vadd.f32 0.0, %v2592
        %v2594 = vpop.f32.mrb[0].mxu0
        %2595 = vmatprep.mubr.bf16.mxu0 0
        %2596 = vmatmul.mubr.bf16.gmra.mrb[0].mxu0 %v1591
        %v2597 = vpop.f32.mrb[0].mxu0
        %v2598 = vadd.f32 0.0, %v2597
        %v2599 = vpop.f32.mrb[0].mxu0
        %v2600 = vpop.f32.mrb[0].mxu0
        %v2601 = vadd.f32 0.0, %v2600
        %v2602 = vpop.f32.mrb[0].mxu0
        %2603 = vmatprep.mubr.bf16.mxu0 0
        %2604 = vmatmul.mubr.bf16.gmra.mrb[0].mxu0 %v1594
        %v2605 = vpop.f32.mrb[0].mxu0
        %v2606 = vadd.f32 0.0, %v2605
        %v2607 = vpop.f32.mrb[0].mxu0
        %v2608 = vpop.f32.mrb[0].mxu0
        %v2609 = vadd.f32 0.0, %v2608
        %v2610 = vpop.f32.mrb[0].mxu0
        %2611 = vmatprep.mubr.bf16.mxu0 0
        %2612 = vmatmul.mubr.bf16.gmra.mrb[0].mxu0 %v1597
        %v2613 = vpop.f32.mrb[0].mxu0
        %v2614 = vadd.f32 0.0, %v2613
        %v2615 = vpop.f32.mrb[0].mxu0
        %v2616 = vpop.f32.mrb[0].mxu0
        %v2617 = vadd.f32 0.0, %v2616
        %v2618 = vpop.f32.mrb[0].mxu0
        %2619 = vmatprep.mubr.bf16.mxu0 0
        %2620 = vmatmul.mubr.bf16.gmra.mrb[0].mxu0 %v1600
        %v2621 = vpop.f32.mrb[0].mxu0
        %v2622 = vadd.f32 0.0, %v2621
        %v2623 = vpop.f32.mrb[0].mxu0
        %v2624 = vpop.f32.mrb[0].mxu0
        %v2625 = vadd.f32 0.0, %v2624
        %v2626 = vpop.f32.mrb[0].mxu0
        %2627 = vmatprep.mubr.bf16.mxu0 0
        %2628 = vmatmul.mubr.bf16.gmra.mrb[0].mxu0 %v1603
        %v2629 = vpop.f32.mrb[0].mxu0
        %v2630 = vadd.f32 0.0, %v2629
        %v2631 = vpop.f32.mrb[0].mxu0
        %v2632 = vpop.f32.mrb[0].mxu0
        %v2633 = vadd.f32 0.0, %v2632
        %v2634 = vpop.f32.mrb[0].mxu0
        %2635 = vmatprep.mubr.bf16.mxu0 0
        %2636 = vmatmul.mubr.bf16.gmra.mrb[0].mxu0 %v1606
        %v2637 = vpop.f32.mrb[0].mxu0
        %v2638 = vadd.f32 0.0, %v2637
        %v2639 = vpop.f32.mrb[0].mxu0
        %v2640 = vpop.f32.mrb[0].mxu0
        %v2641 = vadd.f32 0.0, %v2640
        %v2642 = vpop.f32.mrb[0].mxu0
        %2643 = vmatprep.mubr.bf16.mxu0 0
        %2644 = vmatmul.mubr.bf16.gmra.mrb[0].mxu0 %v1609
        %v2645 = vpop.f32.mrb[0].mxu0
        %v2646 = vadd.f32 0.0, %v2645
        %v2647 = vpop.f32.mrb[0].mxu0
        %v2648 = vpop.f32.mrb[0].mxu0
        %v2649 = vadd.f32 0.0, %v2648
        %v2650 = vpop.f32.mrb[0].mxu0
        %2651 = vmatprep.mubr.bf16.mxu0 0
        %2652 = vmatmul.mubr.bf16.gmra.mrb[0].mxu0 %v1612
        %v2653 = vpop.f32.mrb[0].mxu0
        %v2654 = vadd.f32 0.0, %v2653
        %v2655 = vpop.f32.mrb[0].mxu0
        %v2656 = vpop.f32.mrb[0].mxu0
        %v2657 = vadd.f32 0.0, %v2656
        %v2658 = vpop.f32.mrb[0].mxu0
        %2659 = vmatprep.mubr.bf16.mxu0 0
        %2660 = vmatmul.mubr.bf16.gmra.mrb[0].mxu0 %v1615
        %v2661 = vpop.f32.mrb[0].mxu0
        %v2662 = vadd.f32 0.0, %v2661
        %v2663 = vpop.f32.mrb[0].mxu0
        %v2664 = vpop.f32.mrb[0].mxu0
        %v2665 = vadd.f32 0.0, %v2664
        %v2666 = vpop.f32.mrb[0].mxu0
        %2667 = vmatprep.mubr.bf16.mxu0 0
        %2668 = vmatmul.mubr.bf16.gmra.mrb[0].mxu0 %v1618
        %v2669 = vpop.f32.mrb[0].mxu0
        %v2670 = vadd.f32 0.0, %v2669
        %v2671 = vpop.f32.mrb[0].mxu0
        %v2672 = vpop.f32.mrb[0].mxu0
        %v2673 = vadd.f32 0.0, %v2672
        %v2674 = vpop.f32.mrb[0].mxu0
        %2675 = vmatprep.mubr.bf16.mxu0 0
        %2676 = vmatmul.mubr.bf16.gmra.mrb[0].mxu0 %v1621
        %v2677 = vpop.f32.mrb[0].mxu0
        %v2678 = vadd.f32 0.0, %v2677
        %v2679 = vpop.f32.mrb[0].mxu0
        %v2680 = vpop.f32.mrb[0].mxu0
        %v2681 = vadd.f32 0.0, %v2680
        %v2682 = vpop.f32.mrb[0].mxu0
        %2683 = vdwg.mxu0
        %v2684 = vmax.f32 %v1662, 0.0
        %v2685 = vmax.f32 %v1665, 0.0
        %v2686 = vmax.f32 %v1670, 0.0
        %v2687 = vmax.f32 %v1673, 0.0
        %v2688 = vmax.f32 %v1678, 0.0
        %v2689 = vmax.f32 %v1681, 0.0
        %v2690 = vmax.f32 %v1686, 0.0
        %v2691 = vmax.f32 %v1689, 0.0
        %v2692 = vmax.f32 %v1694, 0.0
        %v2693 = vmax.f32 %v1697, 0.0
        %v2694 = vmax.f32 %v1702, 0.0
        %v2695 = vmax.f32 %v1705, 0.0
        %v2696 = vmax.f32 %v1710, 0.0
        %v2697 = vmax.f32 %v1713, 0.0
        %v2698 = vmax.f32 %v1718, 0.0
        %v2699 = vmax.f32 %v1721, 0.0
        %v2700 = vmax.f32 %v1726, 0.0
        %v2701 = vmax.f32 %v1729, 0.0
        %v2702 = vmax.f32 %v1734, 0.0
        %v2703 = vmax.f32 %v1737, 0.0
        %v2704 = vmax.f32 %v1742, 0.0
        %v2705 = vmax.f32 %v1745, 0.0
        %v2706 = vmax.f32 %v1750, 0.0
        %v2707 = vmax.f32 %v1753, 0.0
        %v2708 = vmax.f32 %v1758, 0.0
        %v2709 = vmax.f32 %v1761, 0.0
        %v2710 = vmax.f32 %v1766, 0.0
        %v2711 = vmax.f32 %v1769, 0.0
        %v2712 = vmax.f32 %v1774, 0.0
        %v2713 = vmax.f32 %v1777, 0.0
        %v2714 = vmax.f32 %v1782, 0.0
        %v2715 = vmax.f32 %v1785, 0.0
        %v2716 = vmax.f32 %v1790, 0.0
        %v2717 = vmax.f32 %v1793, 0.0
        %v2718 = vmax.f32 %v1798, 0.0
        %v2719 = vmax.f32 %v1801, 0.0
        %v2720 = vmax.f32 %v1806, 0.0
        %v2721 = vmax.f32 %v1809, 0.0
        %v2722 = vmax.f32 %v1814, 0.0
        %v2723 = vmax.f32 %v1817, 0.0
        %v2724 = vmax.f32 %v1822, 0.0
        %v2725 = vmax.f32 %v1825, 0.0
        %v2726 = vmax.f32 %v1830, 0.0
        %v2727 = vmax.f32 %v1833, 0.0
        %v2728 = vmax.f32 %v1838, 0.0
        %v2729 = vmax.f32 %v1841, 0.0
        %v2730 = vmax.f32 %v1846, 0.0
        %v2731 = vmax.f32 %v1849, 0.0
        %v2732 = vmax.f32 %v1854, 0.0
        %v2733 = vmax.f32 %v1857, 0.0
        %v2734 = vmax.f32 %v1862, 0.0
        %v2735 = vmax.f32 %v1865, 0.0
        %v2736 = vmax.f32 %v1870, 0.0
        %v2737 = vmax.f32 %v1873, 0.0
        %v2738 = vmax.f32 %v1878, 0.0
        %v2739 = vmax.f32 %v1881, 0.0
        %v2740 = vmax.f32 %v1886, 0.0
        %v2741 = vmax.f32 %v1889, 0.0
        %v2742 = vmax.f32 %v1894, 0.0
        %v2743 = vmax.f32 %v1897, 0.0
        %v2744 = vmax.f32 %v1902, 0.0
        %v2745 = vmax.f32 %v1905, 0.0
        %v2746 = vmax.f32 %v1910, 0.0
        %v2747 = vmax.f32 %v1913, 0.0
        %v2748 = vmax.f32 %v1918, 0.0
        %v2749 = vmax.f32 %v1921, 0.0
        %v2750 = vmax.f32 %v1926, 0.0
        %v2751 = vmax.f32 %v1929, 0.0
        %v2752 = vmax.f32 %v1934, 0.0
        %v2753 = vmax.f32 %v1937, 0.0
        %v2754 = vmax.f32 %v1942, 0.0
        %v2755 = vmax.f32 %v1945, 0.0
        %v2756 = vmax.f32 %v1950, 0.0
        %v2757 = vmax.f32 %v1953, 0.0
        %v2758 = vmax.f32 %v1958, 0.0
        %v2759 = vmax.f32 %v1961, 0.0
        %v2760 = vmax.f32 %v1966, 0.0
        %v2761 = vmax.f32 %v1969, 0.0
        %v2762 = vmax.f32 %v1974, 0.0
        %v2763 = vmax.f32 %v1977, 0.0
        %v2764 = vmax.f32 %v1982, 0.0
        %v2765 = vmax.f32 %v1985, 0.0
        %v2766 = vmax.f32 %v1990, 0.0
        %v2767 = vmax.f32 %v1993, 0.0
        %v2768 = vmax.f32 %v1998, 0.0
        %v2769 = vmax.f32 %v2001, 0.0
        %v2770 = vmax.f32 %v2006, 0.0
        %v2771 = vmax.f32 %v2009, 0.0
        %v2772 = vmax.f32 %v2014, 0.0
        %v2773 = vmax.f32 %v2017, 0.0
        %v2774 = vmax.f32 %v2022, 0.0
        %v2775 = vmax.f32 %v2025, 0.0
        %v2776 = vmax.f32 %v2030, 0.0
        %v2777 = vmax.f32 %v2033, 0.0
        %v2778 = vmax.f32 %v2038, 0.0
        %v2779 = vmax.f32 %v2041, 0.0
        %v2780 = vmax.f32 %v2046, 0.0
        %v2781 = vmax.f32 %v2049, 0.0
        %v2782 = vmax.f32 %v2054, 0.0
        %v2783 = vmax.f32 %v2057, 0.0
        %v2784 = vmax.f32 %v2062, 0.0
        %v2785 = vmax.f32 %v2065, 0.0
        %v2786 = vmax.f32 %v2070, 0.0
        %v2787 = vmax.f32 %v2073, 0.0
        %v2788 = vmax.f32 %v2078, 0.0
        %v2789 = vmax.f32 %v2081, 0.0
        %v2790 = vmax.f32 %v2086, 0.0
        %v2791 = vmax.f32 %v2089, 0.0
        %v2792 = vmax.f32 %v2094, 0.0
        %v2793 = vmax.f32 %v2097, 0.0
        %v2794 = vmax.f32 %v2102, 0.0
        %v2795 = vmax.f32 %v2105, 0.0
        %v2796 = vmax.f32 %v2110, 0.0
        %v2797 = vmax.f32 %v2113, 0.0
        %v2798 = vmax.f32 %v2118, 0.0
        %v2799 = vmax.f32 %v2121, 0.0
        %v2800 = vmax.f32 %v2126, 0.0
        %v2801 = vmax.f32 %v2129, 0.0
        %v2802 = vmax.f32 %v2134, 0.0
        %v2803 = vmax.f32 %v2137, 0.0
        %v2804 = vmax.f32 %v2142, 0.0
        %v2805 = vmax.f32 %v2145, 0.0
        %v2806 = vmax.f32 %v2150, 0.0
        %v2807 = vmax.f32 %v2153, 0.0
        %v2808 = vmax.f32 %v2158, 0.0
        %v2809 = vmax.f32 %v2161, 0.0
        %v2810 = vmax.f32 %v2166, 0.0
        %v2811 = vmax.f32 %v2169, 0.0
        %v2812 = vmax.f32 %v2174, 0.0
        %v2813 = vmax.f32 %v2177, 0.0
        %v2814 = vmax.f32 %v2182, 0.0
        %v2815 = vmax.f32 %v2185, 0.0
        %v2816 = vmax.f32 %v2190, 0.0
        %v2817 = vmax.f32 %v2193, 0.0
        %v2818 = vmax.f32 %v2198, 0.0
        %v2819 = vmax.f32 %v2201, 0.0
        %v2820 = vmax.f32 %v2206, 0.0
        %v2821 = vmax.f32 %v2209, 0.0
        %v2822 = vmax.f32 %v2214, 0.0
        %v2823 = vmax.f32 %v2217, 0.0
        %v2824 = vmax.f32 %v2222, 0.0
        %v2825 = vmax.f32 %v2225, 0.0
        %v2826 = vmax.f32 %v2230, 0.0
        %v2827 = vmax.f32 %v2233, 0.0
        %v2828 = vmax.f32 %v2238, 0.0
        %v2829 = vmax.f32 %v2241, 0.0
        %v2830 = vmax.f32 %v2246, 0.0
        %v2831 = vmax.f32 %v2249, 0.0
        %v2832 = vmax.f32 %v2254, 0.0
        %v2833 = vmax.f32 %v2257, 0.0
        %v2834 = vmax.f32 %v2262, 0.0
        %v2835 = vmax.f32 %v2265, 0.0
        %v2836 = vmax.f32 %v2270, 0.0
        %v2837 = vmax.f32 %v2273, 0.0
        %v2838 = vmax.f32 %v2278, 0.0
        %v2839 = vmax.f32 %v2281, 0.0
        %v2840 = vmax.f32 %v2286, 0.0
        %v2841 = vmax.f32 %v2289, 0.0
        %v2842 = vmax.f32 %v2294, 0.0
        %v2843 = vmax.f32 %v2297, 0.0
        %v2844 = vmax.f32 %v2302, 0.0
        %v2845 = vmax.f32 %v2305, 0.0
        %v2846 = vmax.f32 %v2310, 0.0
        %v2847 = vmax.f32 %v2313, 0.0
        %v2848 = vmax.f32 %v2318, 0.0
        %v2849 = vmax.f32 %v2321, 0.0
        %v2850 = vmax.f32 %v2326, 0.0
        %v2851 = vmax.f32 %v2329, 0.0
        %v2852 = vmax.f32 %v2334, 0.0
        %v2853 = vmax.f32 %v2337, 0.0
        %v2854 = vmax.f32 %v2342, 0.0
        %v2855 = vmax.f32 %v2345, 0.0
        %v2856 = vmax.f32 %v2350, 0.0
        %v2857 = vmax.f32 %v2353, 0.0
        %v2858 = vmax.f32 %v2358, 0.0
        %v2859 = vmax.f32 %v2361, 0.0
        %v2860 = vmax.f32 %v2366, 0.0
        %v2861 = vmax.f32 %v2369, 0.0
        %v2862 = vmax.f32 %v2374, 0.0
        %v2863 = vmax.f32 %v2377, 0.0
        %v2864 = vmax.f32 %v2382, 0.0
        %v2865 = vmax.f32 %v2385, 0.0
        %v2866 = vmax.f32 %v2390, 0.0
        %v2867 = vmax.f32 %v2393, 0.0
        %v2868 = vmax.f32 %v2398, 0.0
        %v2869 = vmax.f32 %v2401, 0.0
        %v2870 = vmax.f32 %v2406, 0.0
        %v2871 = vmax.f32 %v2409, 0.0
        %v2872 = vmax.f32 %v2414, 0.0
        %v2873 = vmax.f32 %v2417, 0.0
        %v2874 = vmax.f32 %v2422, 0.0
        %v2875 = vmax.f32 %v2425, 0.0
        %v2876 = vmax.f32 %v2430, 0.0
        %v2877 = vmax.f32 %v2433, 0.0
        %v2878 = vmax.f32 %v2438, 0.0
        %v2879 = vmax.f32 %v2441, 0.0
        %v2880 = vmax.f32 %v2446, 0.0
        %v2881 = vmax.f32 %v2449, 0.0
        %v2882 = vmax.f32 %v2454, 0.0
        %v2883 = vmax.f32 %v2457, 0.0
        %v2884 = vmax.f32 %v2462, 0.0
        %v2885 = vmax.f32 %v2465, 0.0
        %v2886 = vmax.f32 %v2470, 0.0
        %v2887 = vmax.f32 %v2473, 0.0
        %v2888 = vmax.f32 %v2478, 0.0
        %v2889 = vmax.f32 %v2481, 0.0
        %v2890 = vmax.f32 %v2486, 0.0
        %v2891 = vmax.f32 %v2489, 0.0
        %v2892 = vmax.f32 %v2494, 0.0
        %v2893 = vmax.f32 %v2497, 0.0
        %v2894 = vmax.f32 %v2502, 0.0
        %v2895 = vmax.f32 %v2505, 0.0
        %v2896 = vmax.f32 %v2510, 0.0
        %v2897 = vmax.f32 %v2513, 0.0
        %v2898 = vmax.f32 %v2518, 0.0
        %v2899 = vmax.f32 %v2521, 0.0
        %v2900 = vmax.f32 %v2526, 0.0
        %v2901 = vmax.f32 %v2529, 0.0
        %v2902 = vmax.f32 %v2534, 0.0
        %v2903 = vmax.f32 %v2537, 0.0
        %v2904 = vmax.f32 %v2542, 0.0
        %v2905 = vmax.f32 %v2545, 0.0
        %v2906 = vmax.f32 %v2550, 0.0
        %v2907 = vmax.f32 %v2553, 0.0
        %v2908 = vmax.f32 %v2558, 0.0
        %v2909 = vmax.f32 %v2561, 0.0
        %v2910 = vmax.f32 %v2566, 0.0
        %v2911 = vmax.f32 %v2569, 0.0
        %v2912 = vmax.f32 %v2574, 0.0
        %v2913 = vmax.f32 %v2577, 0.0
        %v2914 = vmax.f32 %v2582, 0.0
        %v2915 = vmax.f32 %v2585, 0.0
        %v2916 = vmax.f32 %v2590, 0.0
        %v2917 = vmax.f32 %v2593, 0.0
        %v2918 = vmax.f32 %v2598, 0.0
        %v2919 = vmax.f32 %v2601, 0.0
        %v2920 = vmax.f32 %v2606, 0.0
        %v2921 = vmax.f32 %v2609, 0.0
        %v2922 = vmax.f32 %v2614, 0.0
        %v2923 = vmax.f32 %v2617, 0.0
        %v2924 = vmax.f32 %v2622, 0.0
        %v2925 = vmax.f32 %v2625, 0.0
        %v2926 = vmax.f32 %v2630, 0.0
        %v2927 = vmax.f32 %v2633, 0.0
        %v2928 = vmax.f32 %v2638, 0.0
        %v2929 = vmax.f32 %v2641, 0.0
        %v2930 = vmax.f32 %v2646, 0.0
        %v2931 = vmax.f32 %v2649, 0.0
        %v2932 = vmax.f32 %v2654, 0.0
        %v2933 = vmax.f32 %v2657, 0.0
        %v2934 = vmax.f32 %v2662, 0.0
        %v2935 = vmax.f32 %v2665, 0.0
        %v2936 = vmax.f32 %v2670, 0.0
        %v2937 = vmax.f32 %v2673, 0.0
        %v2938 = vmax.f32 %v2678, 0.0
        %v2939 = vmax.f32 %v2681, 0.0
        %v2940 = vadd.f32 %v2684, %v2685
        %v2941 = vadd.f32 %v2940, %v2686
        %v2942 = vadd.f32 %v2941, %v2687
        %v2943 = vadd.f32 %v2942, %v2688
        %v2944 = vadd.f32 %v2943, %v2689
        %v2945 = vadd.f32 %v2944, %v2690
        %v2946 = vadd.f32 %v2945, %v2691
        %v2947 = vadd.f32 %v2946, %v2692
        %v2948 = vadd.f32 %v2947, %v2693
        %v2949 = vadd.f32 %v2948, %v2694
        %v2950 = vadd.f32 %v2949, %v2695
        %v2951 = vadd.f32 %v2950, %v2696
        %v2952 = vadd.f32 %v2951, %v2697
        %v2953 = vadd.f32 %v2952, %v2698
        %v2954 = vadd.f32 %v2953, %v2699
        %v2955 = vadd.f32 %v2954, %v2700
        %v2956 = vadd.f32 %v2955, %v2701
        %v2957 = vadd.f32 %v2956, %v2702
        %v2958 = vadd.f32 %v2957, %v2703
        %v2959 = vadd.f32 %v2958, %v2704
        %v2960 = vadd.f32 %v2959, %v2705
        %v2961 = vadd.f32 %v2960, %v2706
        %v2962 = vadd.f32 %v2961, %v2707
        %v2963 = vadd.f32 %v2962, %v2708
        %v2964 = vadd.f32 %v2963, %v2709
        %v2965 = vadd.f32 %v2964, %v2710
        %v2966 = vadd.f32 %v2965, %v2711
        %v2967 = vadd.f32 %v2966, %v2712
        %v2968 = vadd.f32 %v2967, %v2713
        %v2969 = vadd.f32 %v2968, %v2714
        %v2970 = vadd.f32 %v2969, %v2715
        %v2971 = vrot.slane %v2970, 4
        %v2972 = vadd.f32 %v2970, %v2971
        %v2973 = vrot.slane %v2972, 2
        %v2974 = vadd.f32 %v2972, %v2973
        %v2975 = vrot.slane %v2974, 1
        %v2976 = vadd.f32 %v2974, %v2975
        %v2977 = vadd.f32 %v2716, %v2717
        %v2978 = vadd.f32 %v2977, %v2718
        %v2979 = vadd.f32 %v2978, %v2719
        %v2980 = vadd.f32 %v2979, %v2720
        %v2981 = vadd.f32 %v2980, %v2721
        %v2982 = vadd.f32 %v2981, %v2722
        %v2983 = vadd.f32 %v2982, %v2723
        %v2984 = vadd.f32 %v2983, %v2724
        %v2985 = vadd.f32 %v2984, %v2725
        %v2986 = vadd.f32 %v2985, %v2726
        %v2987 = vadd.f32 %v2986, %v2727
        %v2988 = vadd.f32 %v2987, %v2728
        %v2989 = vadd.f32 %v2988, %v2729
        %v2990 = vadd.f32 %v2989, %v2730
        %v2991 = vadd.f32 %v2990, %v2731
        %v2992 = vadd.f32 %v2991, %v2732
        %v2993 = vadd.f32 %v2992, %v2733
        %v2994 = vadd.f32 %v2993, %v2734
        %v2995 = vadd.f32 %v2994, %v2735
        %v2996 = vadd.f32 %v2995, %v2736
        %v2997 = vadd.f32 %v2996, %v2737
        %v2998 = vadd.f32 %v2997, %v2738
        %v2999 = vadd.f32 %v2998, %v2739
        %v3000 = vadd.f32 %v2999, %v2740
        %v3001 = vadd.f32 %v3000, %v2741
        %v3002 = vadd.f32 %v3001, %v2742
        %v3003 = vadd.f32 %v3002, %v2743
        %v3004 = vadd.f32 %v3003, %v2744
        %v3005 = vadd.f32 %v3004, %v2745
        %v3006 = vadd.f32 %v3005, %v2746
        %v3007 = vadd.f32 %v3006, %v2747
        %v3008 = vrot.slane %v3007, 4
        %v3009 = vadd.f32 %v3007, %v3008
        %v3010 = vrot.slane %v3009, 2
        %v3011 = vadd.f32 %v3009, %v3010
        %v3012 = vrot.slane %v3011, 1
        %v3013 = vadd.f32 %v3011, %v3012
        %v3014 = vadd.f32 %v2748, %v2749
        %v3015 = vadd.f32 %v3014, %v2750
        %v3016 = vadd.f32 %v3015, %v2751
        %v3017 = vadd.f32 %v3016, %v2752
        %v3018 = vadd.f32 %v3017, %v2753
        %v3019 = vadd.f32 %v3018, %v2754
        %v3020 = vadd.f32 %v3019, %v2755
        %v3021 = vadd.f32 %v3020, %v2756
        %v3022 = vadd.f32 %v3021, %v2757
        %v3023 = vadd.f32 %v3022, %v2758
        %v3024 = vadd.f32 %v3023, %v2759
        %v3025 = vadd.f32 %v3024, %v2760
        %v3026 = vadd.f32 %v3025, %v2761
        %v3027 = vadd.f32 %v3026, %v2762
        %v3028 = vadd.f32 %v3027, %v2763
        %v3029 = vadd.f32 %v3028, %v2764
        %v3030 = vadd.f32 %v3029, %v2765
        %v3031 = vadd.f32 %v3030, %v2766
        %v3032 = vadd.f32 %v3031, %v2767
        %v3033 = vadd.f32 %v3032, %v2768
        %v3034 = vadd.f32 %v3033, %v2769
        %v3035 = vadd.f32 %v3034, %v2770
        %v3036 = vadd.f32 %v3035, %v2771
        %v3037 = vadd.f32 %v3036, %v2772
        %v3038 = vadd.f32 %v3037, %v2773
        %v3039 = vadd.f32 %v3038, %v2774
        %v3040 = vadd.f32 %v3039, %v2775
        %v3041 = vadd.f32 %v3040, %v2776
        %v3042 = vadd.f32 %v3041, %v2777
        %v3043 = vadd.f32 %v3042, %v2778
        %v3044 = vadd.f32 %v3043, %v2779
        %v3045 = vrot.slane %v3044, 4
        %v3046 = vadd.f32 %v3044, %v3045
        %v3047 = vrot.slane %v3046, 2
        %v3048 = vadd.f32 %v3046, %v3047
        %v3049 = vrot.slane %v3048, 1
        %v3050 = vadd.f32 %v3048, %v3049
        %v3051 = vadd.f32 %v2780, %v2781
        %v3052 = vadd.f32 %v3051, %v2782
        %v3053 = vadd.f32 %v3052, %v2783
        %v3054 = vadd.f32 %v3053, %v2784
        %v3055 = vadd.f32 %v3054, %v2785
        %v3056 = vadd.f32 %v3055, %v2786
        %v3057 = vadd.f32 %v3056, %v2787
        %v3058 = vadd.f32 %v3057, %v2788
        %v3059 = vadd.f32 %v3058, %v2789
        %v3060 = vadd.f32 %v3059, %v2790
        %v3061 = vadd.f32 %v3060, %v2791
        %v3062 = vadd.f32 %v3061, %v2792
        %v3063 = vadd.f32 %v3062, %v2793
        %v3064 = vadd.f32 %v3063, %v2794
        %v3065 = vadd.f32 %v3064, %v2795
        %v3066 = vadd.f32 %v3065, %v2796
        %v3067 = vadd.f32 %v3066, %v2797
        %v3068 = vadd.f32 %v3067, %v2798
        %v3069 = vadd.f32 %v3068, %v2799
        %v3070 = vadd.f32 %v3069, %v2800
        %v3071 = vadd.f32 %v3070, %v2801
        %v3072 = vadd.f32 %v3071, %v2802
        %v3073 = vadd.f32 %v3072, %v2803
        %v3074 = vadd.f32 %v3073, %v2804
        %v3075 = vadd.f32 %v3074, %v2805
        %v3076 = vadd.f32 %v3075, %v2806
        %v3077 = vadd.f32 %v3076, %v2807
        %v3078 = vadd.f32 %v3077, %v2808
        %v3079 = vadd.f32 %v3078, %v2809
        %v3080 = vadd.f32 %v3079, %v2810
        %v3081 = vadd.f32 %v3080, %v2811
        %v3082 = vrot.slane %v3081, 4
        %v3083 = vadd.f32 %v3081, %v3082
        %v3084 = vrot.slane %v3083, 2
        %v3085 = vadd.f32 %v3083, %v3084
        %v3086 = vrot.slane %v3085, 1
        %v3087 = vadd.f32 %v3085, %v3086
        %v3088 = vadd.f32 %v2812, %v2813
        %v3089 = vadd.f32 %v3088, %v2814
        %v3090 = vadd.f32 %v3089, %v2815
        %v3091 = vadd.f32 %v3090, %v2816
        %v3092 = vadd.f32 %v3091, %v2817
        %v3093 = vadd.f32 %v3092, %v2818
        %v3094 = vadd.f32 %v3093, %v2819
        %v3095 = vadd.f32 %v3094, %v2820
        %v3096 = vadd.f32 %v3095, %v2821
        %v3097 = vadd.f32 %v3096, %v2822
        %v3098 = vadd.f32 %v3097, %v2823
        %v3099 = vadd.f32 %v3098, %v2824
        %v3100 = vadd.f32 %v3099, %v2825
        %v3101 = vadd.f32 %v3100, %v2826
        %v3102 = vadd.f32 %v3101, %v2827
        %v3103 = vadd.f32 %v3102, %v2828
        %v3104 = vadd.f32 %v3103, %v2829
        %v3105 = vadd.f32 %v3104, %v2830
        %v3106 = vadd.f32 %v3105, %v2831
        %v3107 = vadd.f32 %v3106, %v2832
        %v3108 = vadd.f32 %v3107, %v2833
        %v3109 = vadd.f32 %v3108, %v2834
        %v3110 = vadd.f32 %v3109, %v2835
        %v3111 = vadd.f32 %v3110, %v2836
        %v3112 = vadd.f32 %v3111, %v2837
        %v3113 = vadd.f32 %v3112, %v2838
        %v3114 = vadd.f32 %v3113, %v2839
        %v3115 = vadd.f32 %v3114, %v2840
        %v3116 = vadd.f32 %v3115, %v2841
        %v3117 = vadd.f32 %v3116, %v2842
        %v3118 = vadd.f32 %v3117, %v2843
        %v3119 = vrot.slane %v3118, 4
        %v3120 = vadd.f32 %v3118, %v3119
        %v3121 = vrot.slane %v3120, 2
        %v3122 = vadd.f32 %v3120, %v3121
        %v3123 = vrot.slane %v3122, 1
        %v3124 = vadd.f32 %v3122, %v3123
        %v3125 = vadd.f32 %v2844, %v2845
        %v3126 = vadd.f32 %v3125, %v2846
        %v3127 = vadd.f32 %v3126, %v2847
        %v3128 = vadd.f32 %v3127, %v2848
        %v3129 = vadd.f32 %v3128, %v2849
        %v3130 = vadd.f32 %v3129, %v2850
        %v3131 = vadd.f32 %v3130, %v2851
        %v3132 = vadd.f32 %v3131, %v2852
        %v3133 = vadd.f32 %v3132, %v2853
        %v3134 = vadd.f32 %v3133, %v2854
        %v3135 = vadd.f32 %v3134, %v2855
        %v3136 = vadd.f32 %v3135, %v2856
        %v3137 = vadd.f32 %v3136, %v2857
        %v3138 = vadd.f32 %v3137, %v2858
        %v3139 = vadd.f32 %v3138, %v2859
        %v3140 = vadd.f32 %v3139, %v2860
        %v3141 = vadd.f32 %v3140, %v2861
        %v3142 = vadd.f32 %v3141, %v2862
        %v3143 = vadd.f32 %v3142, %v2863
        %v3144 = vadd.f32 %v3143, %v2864
        %v3145 = vadd.f32 %v3144, %v2865
        %v3146 = vadd.f32 %v3145, %v2866
        %v3147 = vadd.f32 %v3146, %v2867
        %v3148 = vadd.f32 %v3147, %v2868
        %v3149 = vadd.f32 %v3148, %v2869
        %v3150 = vadd.f32 %v3149, %v2870
        %v3151 = vadd.f32 %v3150, %v2871
        %v3152 = vadd.f32 %v3151, %v2872
        %v3153 = vadd.f32 %v3152, %v2873
        %v3154 = vadd.f32 %v3153, %v2874
        %v3155 = vadd.f32 %v3154, %v2875
        %v3156 = vrot.slane %v3155, 4
        %v3157 = vadd.f32 %v3155, %v3156
        %v3158 = vrot.slane %v3157, 2
        %v3159 = vadd.f32 %v3157, %v3158
        %v3160 = vrot.slane %v3159, 1
        %v3161 = vadd.f32 %v3159, %v3160
        %v3162 = vadd.f32 %v2876, %v2877
        %v3163 = vadd.f32 %v3162, %v2878
        %v3164 = vadd.f32 %v3163, %v2879
        %v3165 = vadd.f32 %v3164, %v2880
        %v3166 = vadd.f32 %v3165, %v2881
        %v3167 = vadd.f32 %v3166, %v2882
        %v3168 = vadd.f32 %v3167, %v2883
        %v3169 = vadd.f32 %v3168, %v2884
        %v3170 = vadd.f32 %v3169, %v2885
        %v3171 = vadd.f32 %v3170, %v2886
        %v3172 = vadd.f32 %v3171, %v2887
        %v3173 = vadd.f32 %v3172, %v2888
        %v3174 = vadd.f32 %v3173, %v2889
        %v3175 = vadd.f32 %v3174, %v2890
        %v3176 = vadd.f32 %v3175, %v2891
        %v3177 = vadd.f32 %v3176, %v2892
        %v3178 = vadd.f32 %v3177, %v2893
        %v3179 = vadd.f32 %v3178, %v2894
        %v3180 = vadd.f32 %v3179, %v2895
        %v3181 = vadd.f32 %v3180, %v2896
        %v3182 = vadd.f32 %v3181, %v2897
        %v3183 = vadd.f32 %v3182, %v2898
        %v3184 = vadd.f32 %v3183, %v2899
        %v3185 = vadd.f32 %v3184, %v2900
        %v3186 = vadd.f32 %v3185, %v2901
        %v3187 = vadd.f32 %v3186, %v2902
        %v3188 = vadd.f32 %v3187, %v2903
        %v3189 = vadd.f32 %v3188, %v2904
        %v3190 = vadd.f32 %v3189, %v2905
        %v3191 = vadd.f32 %v3190, %v2906
        %v3192 = vadd.f32 %v3191, %v2907
        %v3193 = vrot.slane %v3192, 4
        %v3194 = vadd.f32 %v3192, %v3193
        %v3195 = vrot.slane %v3194, 2
        %v3196 = vadd.f32 %v3194, %v3195
        %v3197 = vrot.slane %v3196, 1
        %v3198 = vadd.f32 %v3196, %v3197
        %v3199 = vadd.f32 %v2908, %v2909
        %v3200 = vadd.f32 %v3199, %v2910
        %v3201 = vadd.f32 %v3200, %v2911
        %v3202 = vadd.f32 %v3201, %v2912
        %v3203 = vadd.f32 %v3202, %v2913
        %v3204 = vadd.f32 %v3203, %v2914
        %v3205 = vadd.f32 %v3204, %v2915
        %v3206 = vadd.f32 %v3205, %v2916
        %v3207 = vadd.f32 %v3206, %v2917
        %v3208 = vadd.f32 %v3207, %v2918
        %v3209 = vadd.f32 %v3208, %v2919
        %v3210 = vadd.f32 %v3209, %v2920
        %v3211 = vadd.f32 %v3210, %v2921
        %v3212 = vadd.f32 %v3211, %v2922
        %v3213 = vadd.f32 %v3212, %v2923
        %v3214 = vadd.f32 %v3213, %v2924
        %v3215 = vadd.f32 %v3214, %v2925
        %v3216 = vadd.f32 %v3215, %v2926
        %v3217 = vadd.f32 %v3216, %v2927
        %v3218 = vadd.f32 %v3217, %v2928
        %v3219 = vadd.f32 %v3218, %v2929
        %v3220 = vadd.f32 %v3219, %v2930
        %v3221 = vadd.f32 %v3220, %v2931
        %v3222 = vadd.f32 %v3221, %v2932
        %v3223 = vadd.f32 %v3222, %v2933
        %v3224 = vadd.f32 %v3223, %v2934
        %v3225 = vadd.f32 %v3224, %v2935
        %v3226 = vadd.f32 %v3225, %v2936
        %v3227 = vadd.f32 %v3226, %v2937
        %v3228 = vadd.f32 %v3227, %v2938
        %v3229 = vadd.f32 %v3228, %v2939
        %v3230 = vrot.slane %v3229, 4
        %v3231 = vadd.f32 %v3229, %v3230
        %v3232 = vrot.slane %v3231, 2
        %v3233 = vadd.f32 %v3231, %v3232
        %v3234 = vrot.slane %v3233, 1
        %v3235 = vadd.f32 %v3233, %v3234
        %s3236 = smul.u32 %s21, 8
        %vm3245 = vcmask 1041409
        %v3246 = vsel %vm3245, %v3013, %v2976
        %vm3247 = vcmask 1042434
        %v3248 = vsel %vm3247, %v3050, %v3246
        %vm3249 = vcmask 1043459
        %v3250 = vsel %vm3249, %v3087, %v3248
        %vm3251 = vcmask 1044484
        %v3252 = vsel %vm3251, %v3124, %v3250
        %vm3253 = vcmask 1045509
        %v3254 = vsel %vm3253, %v3161, %v3252
        %vm3255 = vcmask 1046534
        %v3256 = vsel %vm3255, %v3198, %v3254
        %vm3257 = vcmask 1047559
        %v3258 = vsel %vm3257, %v3235, %v3256
        %s3260 = scalar_lea.vmem [#allocation2], %s3236
        %3261 = vst [vmem:[%s3260] sm:$0xff] %v3258
        %p3262 = scmp.eq.s32.totalorder %s21, 1
        // Predicated region
        $region57: #{barlow_twins_forward.1} parent=55 // pred_check
          %p3263 = pneg %p3262
        $region58: #{barlow_twins_forward.1} parent=55 // pred_check_branch
          %3265 = sbr.rel (%p3263) target = $region60
        $region59: #{barlow_twins_forward.1} parent=55 // pred_region
          %v3266 = vld [vmem:[#allocation2] sm:$0xff]
          %v3267 = vld [vmem:[#allocation2 + $0x8] sm:$0xff]
          %v3268 = vmul.f32 %v3266, 0.00390625
          %v3269 = vmul.f32 %v3267, 0.00390625
          %v3270 = vpack.c.bf16 %v3269, %v3268
          %v3271 = vld [vmem:[%s2] sm:$0xf]
          %v3272 = vld [vmem:[%s2 + $0x4] sm:$0xf]
          %v3273 = vld [vmem:[%s2 + $0x8] sm:$0xf]
          %v3274 = vld [vmem:[%s2 + $0xc] sm:$0xf]
          %v3275 = vld [vmem:[%s2 + $0x10] sm:$0xf]
          %v3276 = vld [vmem:[%s2 + $0x14] sm:$0xf]
          %v3277 = vld [vmem:[%s2 + $0x18] sm:$0xf]
          %v3278 = vld [vmem:[%s2 + $0x1c] sm:$0xf]
          %v3279 = vld [vmem:[%s2 + $0x20] sm:$0xf]
          %v3280 = vld [vmem:[%s2 + $0x24] sm:$0xf]
          %v3281 = vld [vmem:[%s2 + $0x28] sm:$0xf]
          %v3282 = vld [vmem:[%s2 + $0x2c] sm:$0xf]
          %v3283 = vld [vmem:[%s2 + $0x30] sm:$0xf]
          %v3284 = vld [vmem:[%s2 + $0x34] sm:$0xf]
          %v3285 = vld [vmem:[%s2 + $0x38] sm:$0xf]
          %v3286 = vld [vmem:[%s2 + $0x3c] sm:$0xf]
          %v3303 = vunpack.c.l.b16 %v3271
          %v3304 = vunpack.c.l.b16 %v3272
          %v3305 = vunpack.c.l.b16 %v3273
          %v3306 = vunpack.c.l.b16 %v3274
          %v3307 = vunpack.c.l.b16 %v3275
          %v3308 = vunpack.c.l.b16 %v3276
          %v3309 = vunpack.c.l.b16 %v3277
          %v3310 = vunpack.c.l.b16 %v3278
          %v3311 = vunpack.c.l.b16 %v3279
          %v3312 = vunpack.c.l.b16 %v3280
          %v3313 = vunpack.c.l.b16 %v3281
          %v3314 = vunpack.c.l.b16 %v3282
          %v3315 = vunpack.c.l.b16 %v3283
          %v3316 = vunpack.c.l.b16 %v3284
          %v3317 = vunpack.c.l.b16 %v3285
          %v3318 = vunpack.c.l.b16 %v3286
          %v3319 = vpack.c.b16 %v3304, %v3303
          %v3320 = vpack.c.b16 %v3306, %v3305
          %v3321 = vpack.c.b16 %v3308, %v3307
          %v3322 = vpack.c.b16 %v3310, %v3309
          %v3323 = vpack.c.b16 %v3312, %v3311
          %v3324 = vpack.c.b16 %v3314, %v3313
          %v3325 = vpack.c.b16 %v3316, %v3315
          %v3326 = vpack.c.b16 %v3318, %v3317
          %3335 = vmatprep.subr.bf16.mxu0 0
          %3336 = vmatpush1.bf16.msra.mxu0 %v3319
          %3337 = vmatprep.subr.bf16.mxu0 0
          %3338 = vmatpush1.bf16.msra.mxu0 %v3320
          %3339 = vmatprep.subr.bf16.mxu0 0
          %3340 = vmatpush1.bf16.msra.mxu0 %v3321
          %3341 = vmatprep.subr.bf16.mxu0 0
          %3342 = vmatpush1.bf16.msra.mxu0 %v3322
          %3343 = vmatprep.subr.bf16.mxu0 0
          %3344 = vmatpush1.bf16.msra.mxu0 %v3323
          %3345 = vmatprep.subr.bf16.mxu0 0
          %3346 = vmatpush1.bf16.msra.mxu0 %v3324
          %3347 = vmatprep.subr.bf16.mxu0 0
          %3348 = vmatpush1.bf16.msra.mxu0 %v3325
          %3349 = vmatprep.subr.bf16.mxu0 0
          %3350 = vmatpush1.bf16.msra.mxu0 %v3326
          %3351 = vmatprep.subr.bf16.mxu0 0
          %3352 = vmatpush1.bf16.msra.mxu0 0
          %3353 = vmatprep.subr.bf16.mxu0 0
          %3354 = vmatpush1.bf16.msra.mxu0 0
          %3355 = vmatprep.subr.bf16.mxu0 0
          %3356 = vmatpush1.bf16.msra.mxu0 0
          %3357 = vmatprep.subr.bf16.mxu0 0
          %3358 = vmatpush1.bf16.msra.mxu0 0
          %3359 = vmatprep.subr.bf16.mxu0 0
          %3360 = vmatpush1.bf16.msra.mxu0 0
          %3361 = vmatprep.subr.bf16.mxu0 0
          %3362 = vmatpush1.bf16.msra.mxu0 0
          %3363 = vmatprep.subr.bf16.mxu0 0
          %3364 = vmatpush1.bf16.msra.mxu0 0
          %3365 = vmatprep.subr.bf16.mxu0 0
          %3366 = vmatpush1.bf16.msra.mxu0 0
          %3367 = vmatprep.mubr.bf16.mxu0 0
          %3368 = vmatmul.mubr.bf16.gmra.mrb[0].mxu0 %v3270
          %v3369 = vpop.f32.mrb[0].mxu0
          %v3370 = vadd.f32 0.0, %v3369
          %v3371 = vpop.f32.mrb[0].mxu0
          %v3372 = vpop.f32.mrb[0].mxu0
          %v3373 = vadd.f32 0.0, %v3372
          %v3374 = vpop.f32.mrb[0].mxu0
          %3375 = vdwg.mxu0
          %v3376 = vld [vmem:[%s3] sm:$0x1]
          %v3377 = vld [vmem:[%s4] sm:$0x1]
          %v3378 = vrot.slane %v3370, 4
          %v3379 = vadd.f32 %v3370, %v3378
          %v3380 = vrot.slane %v3379, 2
          %v3381 = vadd.f32 %v3379, %v3380
          %v3382 = vrot.slane %v3381, 1
          %v3383 = vadd.f32 %v3381, %v3382
          %v3384 = vrot.slane %v3373, 4
          %v3385 = vadd.f32 %v3373, %v3384
          %v3386 = vrot.slane %v3385, 2
          %v3387 = vadd.f32 %v3385, %v3386
          %v3388 = vrot.slane %v3387, 1
          %v3389 = vadd.f32 %v3387, %v3388
          %v3390 = vrcp.pop 8.0
          %v3391 = vmul.f32 %v3383, %v3390
          %v3392 = vmul.f32 %v3389, %v3390
          %v3393 = vsub.f32 %v3370, %v3391
          %v3394 = vsub.f32 %v3373, %v3392
          %v3395 = vmul.f32 %v3393, %v3393
          %v3396 = vmul.f32 %v3394, %v3394
          %v3397 = vrot.slane %v3395, 4
          %v3398 = vadd.f32 %v3395, %v3397
          %v3399 = vrot.slane %v3398, 2
          %v3400 = vadd.f32 %v3398, %v3399
          %v3401 = vrot.slane %v3400, 1
          %v3402 = vadd.f32 %v3400, %v3401
          %v3403 = vrot.slane %v3396, 4
          %v3404 = vadd.f32 %v3396, %v3403
          %v3405 = vrot.slane %v3404, 2
          %v3406 = vadd.f32 %v3404, %v3405
          %v3407 = vrot.slane %v3406, 1
          %v3408 = vadd.f32 %v3406, %v3407
          %v3409 = vmul.f32 %v3402, %v3390
          %v3410 = vmul.f32 %v3408, %v3390
          %v3411 = vadd.f32 %v3409, 1e-05
          %v3412 = vadd.f32 %v3410, 1e-05
          %v3413 = vrsqrt.pop %v3411
          %v3414 = vrsqrt.pop %v3412
          %v3415 = vmul.f32 %v3393, %v3413
          %v3416 = vmul.f32 %v3394, %v3414
          %v3418 = vlaneseq
          %v3419 = vshrl.u32 %v3418, 7
          %v3420 = vsub.s32 0, %v3419
          %v3421 = vrot.slane %v3376, %v3420
          %v3423 = vmul.f32 %v3415, %v3421
          %v3424 = vmul.f32 %v3416, %v3421
          %v3426 = vlaneseq
          %v3427 = vshrl.u32 %v3426, 7
          %v3428 = vsub.s32 0, %v3427
          %v3429 = vrot.slane %v3377, %v3428
          %v3431 = vadd.f32 %v3423, %v3429
          %v3432 = vadd.f32 %v3424, %v3429
          %v3433 = vmax.f32 %v3431, 0.0
          %v3434 = vmax.f32 %v3432, 0.0
          %v3435 = vpack.c.bf16 %v3434, %v3433
          %v3436 = vld [vmem:[%s5] sm:$0xf]
          %v3437 = vld [vmem:[%s5 + $0x4] sm:$0xf]
          %v3438 = vld [vmem:[%s5 + $0x8] sm:$0xf]
          %v3439 = vld [vmem:[%s5 + $0xc] sm:$0xf]
          %v3440 = vld [vmem:[%s5 + $0x10] sm:$0xf]
          %v3441 = vld [vmem:[%s5 + $0x14] sm:$0xf]
          %v3442 = vld [vmem:[%s5 + $0x18] sm:$0xf]
          %v3443 = vld [vmem:[%s5 + $0x1c] sm:$0xf]
          %v3444 = vld [vmem:[%s5 + $0x20] sm:$0xf]
          %v3445 = vld [vmem:[%s5 + $0x24] sm:$0xf]
          %v3446 = vld [vmem:[%s5 + $0x28] sm:$0xf]
          %v3447 = vld [vmem:[%s5 + $0x2c] sm:$0xf]
          %v3448 = vld [vmem:[%s5 + $0x30] sm:$0xf]
          %v3449 = vld [vmem:[%s5 + $0x34] sm:$0xf]
          %v3450 = vld [vmem:[%s5 + $0x38] sm:$0xf]
          %v3451 = vld [vmem:[%s5 + $0x3c] sm:$0xf]
          %v3468 = vunpack.c.l.b16 %v3436
          %v3469 = vunpack.c.l.b16 %v3437
          %v3470 = vunpack.c.l.b16 %v3438
          %v3471 = vunpack.c.l.b16 %v3439
          %v3472 = vunpack.c.l.b16 %v3440
          %v3473 = vunpack.c.l.b16 %v3441
          %v3474 = vunpack.c.l.b16 %v3442
          %v3475 = vunpack.c.l.b16 %v3443
          %v3476 = vunpack.c.l.b16 %v3444
          %v3477 = vunpack.c.l.b16 %v3445
          %v3478 = vunpack.c.l.b16 %v3446
          %v3479 = vunpack.c.l.b16 %v3447
          %v3480 = vunpack.c.l.b16 %v3448
          %v3481 = vunpack.c.l.b16 %v3449
          %v3482 = vunpack.c.l.b16 %v3450
          %v3483 = vunpack.c.l.b16 %v3451
          %v3484 = vpack.c.b16 %v3469, %v3468
          %v3485 = vpack.c.b16 %v3471, %v3470
          %v3486 = vpack.c.b16 %v3473, %v3472
          %v3487 = vpack.c.b16 %v3475, %v3474
          %v3488 = vpack.c.b16 %v3477, %v3476
          %v3489 = vpack.c.b16 %v3479, %v3478
          %v3490 = vpack.c.b16 %v3481, %v3480
          %v3491 = vpack.c.b16 %v3483, %v3482
          %3500 = vmatprep.subr.bf16.mxu0 0
          %3501 = vmatpush1.bf16.msra.mxu0 %v3484
          %3502 = vmatprep.subr.bf16.mxu0 0
          %3503 = vmatpush1.bf16.msra.mxu0 %v3485
          %3504 = vmatprep.subr.bf16.mxu0 0
          %3505 = vmatpush1.bf16.msra.mxu0 %v3486
          %3506 = vmatprep.subr.bf16.mxu0 0
          %3507 = vmatpush1.bf16.msra.mxu0 %v3487
          %3508 = vmatprep.subr.bf16.mxu0 0
          %3509 = vmatpush1.bf16.msra.mxu0 %v3488
          %3510 = vmatprep.subr.bf16.mxu0 0
          %3511 = vmatpush1.bf16.msra.mxu0 %v3489
          %3512 = vmatprep.subr.bf16.mxu0 0
          %3513 = vmatpush1.bf16.msra.mxu0 %v3490
          %3514 = vmatprep.subr.bf16.mxu0 0
          %3515 = vmatpush1.bf16.msra.mxu0 %v3491
          %3516 = vmatprep.subr.bf16.mxu0 0
          %3517 = vmatpush1.bf16.msra.mxu0 0
          %3518 = vmatprep.subr.bf16.mxu0 0
          %3519 = vmatpush1.bf16.msra.mxu0 0
          %3520 = vmatprep.subr.bf16.mxu0 0
          %3521 = vmatpush1.bf16.msra.mxu0 0
          %3522 = vmatprep.subr.bf16.mxu0 0
          %3523 = vmatpush1.bf16.msra.mxu0 0
          %3524 = vmatprep.subr.bf16.mxu0 0
          %3525 = vmatpush1.bf16.msra.mxu0 0
          %3526 = vmatprep.subr.bf16.mxu0 0
          %3527 = vmatpush1.bf16.msra.mxu0 0
          %3528 = vmatprep.subr.bf16.mxu0 0
          %3529 = vmatpush1.bf16.msra.mxu0 0
          %3530 = vmatprep.subr.bf16.mxu0 0
          %3531 = vmatpush1.bf16.msra.mxu0 0
          %3532 = vmatprep.mubr.bf16.mxu0 0
          %3533 = vmatmul.mubr.bf16.gmra.mrb[0].mxu0 %v3435
          %v3534 = vpop.f32.mrb[0].mxu0
          %v3535 = vadd.f32 0.0, %v3534
          %v3536 = vpop.f32.mrb[0].mxu0
          %v3537 = vpop.f32.mrb[0].mxu0
          %v3538 = vadd.f32 0.0, %v3537
          %v3539 = vpop.f32.mrb[0].mxu0
          %3540 = vdwg.mxu0
          %v3541 = vld [vmem:[%s6] sm:$0x1]
          %v3542 = vld [vmem:[%s7] sm:$0x1]
          %v3543 = vrot.slane %v3535, 4
          %v3544 = vadd.f32 %v3535, %v3543
          %v3545 = vrot.slane %v3544, 2
          %v3546 = vadd.f32 %v3544, %v3545
          %v3547 = vrot.slane %v3546, 1
          %v3548 = vadd.f32 %v3546, %v3547
          %v3549 = vrot.slane %v3538, 4
          %v3550 = vadd.f32 %v3538, %v3549
          %v3551 = vrot.slane %v3550, 2
          %v3552 = vadd.f32 %v3550, %v3551
          %v3553 = vrot.slane %v3552, 1
          %v3554 = vadd.f32 %v3552, %v3553
          %v3555 = vmul.f32 %v3548, %v3390
          %v3556 = vmul.f32 %v3554, %v3390
          %v3557 = vsub.f32 %v3535, %v3555
          %v3558 = vsub.f32 %v3538, %v3556
          %v3559 = vmul.f32 %v3557, %v3557
          %v3560 = vmul.f32 %v3558, %v3558
          %v3561 = vrot.slane %v3559, 4
          %v3562 = vadd.f32 %v3559, %v3561
          %v3563 = vrot.slane %v3562, 2
          %v3564 = vadd.f32 %v3562, %v3563
          %v3565 = vrot.slane %v3564, 1
          %v3566 = vadd.f32 %v3564, %v3565
          %v3567 = vrot.slane %v3560, 4
          %v3568 = vadd.f32 %v3560, %v3567
          %v3569 = vrot.slane %v3568, 2
          %v3570 = vadd.f32 %v3568, %v3569
          %v3571 = vrot.slane %v3570, 1
          %v3572 = vadd.f32 %v3570, %v3571
          %v3573 = vmul.f32 %v3566, %v3390
          %v3574 = vmul.f32 %v3572, %v3390
          %v3575 = vadd.f32 %v3573, 1e-05
          %v3576 = vadd.f32 %v3574, 1e-05
          %v3577 = vrsqrt.pop %v3575
          %v3578 = vrsqrt.pop %v3576
          %v3579 = vmul.f32 %v3557, %v3577
          %v3580 = vmul.f32 %v3558, %v3578
          %v3582 = vlaneseq
          %v3583 = vshrl.u32 %v3582, 7
          %v3584 = vsub.s32 0, %v3583
          %v3585 = vrot.slane %v3541, %v3584
          %v3587 = vmul.f32 %v3579, %v3585
          %v3588 = vmul.f32 %v3580, %v3585
          %v3590 = vlaneseq
          %v3591 = vshrl.u32 %v3590, 7
          %v3592 = vsub.s32 0, %v3591
          %v3593 = vrot.slane %v3542, %v3592
          %v3595 = vadd.f32 %v3587, %v3593
          %v3596 = vadd.f32 %v3588, %v3593
          %v3597 = vmax.f32 %v3595, 0.0
          %v3598 = vmax.f32 %v3596, 0.0
          %v3599 = vpack.c.bf16 %v3598, %v3597
          %v3600 = vld [vmem:[%s8] sm:$0xf]
          %v3601 = vld [vmem:[%s8 + $0x4] sm:$0xf]
          %v3602 = vld [vmem:[%s8 + $0x8] sm:$0xf]
          %v3603 = vld [vmem:[%s8 + $0xc] sm:$0xf]
          %v3604 = vld [vmem:[%s8 + $0x10] sm:$0xf]
          %v3605 = vld [vmem:[%s8 + $0x14] sm:$0xf]
          %v3606 = vld [vmem:[%s8 + $0x18] sm:$0xf]
          %v3607 = vld [vmem:[%s8 + $0x1c] sm:$0xf]
          %v3608 = vld [vmem:[%s8 + $0x20] sm:$0xf]
          %v3609 = vld [vmem:[%s8 + $0x24] sm:$0xf]
          %v3610 = vld [vmem:[%s8 + $0x28] sm:$0xf]
          %v3611 = vld [vmem:[%s8 + $0x2c] sm:$0xf]
          %v3612 = vld [vmem:[%s8 + $0x30] sm:$0xf]
          %v3613 = vld [vmem:[%s8 + $0x34] sm:$0xf]
          %v3614 = vld [vmem:[%s8 + $0x38] sm:$0xf]
          %v3615 = vld [vmem:[%s8 + $0x3c] sm:$0xf]
          %v3632 = vunpack.c.l.b16 %v3600
          %v3633 = vunpack.c.l.b16 %v3601
          %v3634 = vunpack.c.l.b16 %v3602
          %v3635 = vunpack.c.l.b16 %v3603
          %v3636 = vunpack.c.l.b16 %v3604
          %v3637 = vunpack.c.l.b16 %v3605
          %v3638 = vunpack.c.l.b16 %v3606
          %v3639 = vunpack.c.l.b16 %v3607
          %v3640 = vunpack.c.l.b16 %v3608
          %v3641 = vunpack.c.l.b16 %v3609
          %v3642 = vunpack.c.l.b16 %v3610
          %v3643 = vunpack.c.l.b16 %v3611
          %v3644 = vunpack.c.l.b16 %v3612
          %v3645 = vunpack.c.l.b16 %v3613
          %v3646 = vunpack.c.l.b16 %v3614
          %v3647 = vunpack.c.l.b16 %v3615
          %v3648 = vpack.c.b16 %v3633, %v3632
          %v3649 = vpack.c.b16 %v3635, %v3634
          %v3650 = vpack.c.b16 %v3637, %v3636
          %v3651 = vpack.c.b16 %v3639, %v3638
          %v3652 = vpack.c.b16 %v3641, %v3640
          %v3653 = vpack.c.b16 %v3643, %v3642
          %v3654 = vpack.c.b16 %v3645, %v3644
          %v3655 = vpack.c.b16 %v3647, %v3646
          %3664 = vmatprep.subr.bf16.mxu0 0
          %3665 = vmatpush1.bf16.msra.mxu0 %v3648
          %3666 = vmatprep.subr.bf16.mxu0 0
          %3667 = vmatpush1.bf16.msra.mxu0 %v3649
          %3668 = vmatprep.subr.bf16.mxu0 0
          %3669 = vmatpush1.bf16.msra.mxu0 %v3650
          %3670 = vmatprep.subr.bf16.mxu0 0
          %3671 = vmatpush1.bf16.msra.mxu0 %v3651
          %3672 = vmatprep.subr.bf16.mxu0 0
          %3673 = vmatpush1.bf16.msra.mxu0 %v3652
          %3674 = vmatprep.subr.bf16.mxu0 0
          %3675 = vmatpush1.bf16.msra.mxu0 %v3653
          %3676 = vmatprep.subr.bf16.mxu0 0
          %3677 = vmatpush1.bf16.msra.mxu0 %v3654
          %3678 = vmatprep.subr.bf16.mxu0 0
          %3679 = vmatpush1.bf16.msra.mxu0 %v3655
          %3680 = vmatprep.subr.bf16.mxu0 0
          %3681 = vmatpush1.bf16.msra.mxu0 0
          %3682 = vmatprep.subr.bf16.mxu0 0
          %3683 = vmatpush1.bf16.msra.mxu0 0
          %3684 = vmatprep.subr.bf16.mxu0 0
          %3685 = vmatpush1.bf16.msra.mxu0 0
          %3686 = vmatprep.subr.bf16.mxu0 0
          %3687 = vmatpush1.bf16.msra.mxu0 0
          %3688 = vmatprep.subr.bf16.mxu0 0
          %3689 = vmatpush1.bf16.msra.mxu0 0
          %3690 = vmatprep.subr.bf16.mxu0 0
          %3691 = vmatpush1.bf16.msra.mxu0 0
          %3692 = vmatprep.subr.bf16.mxu0 0
          %3693 = vmatpush1.bf16.msra.mxu0 0
          %3694 = vmatprep.subr.bf16.mxu0 0
          %3695 = vmatpush1.bf16.msra.mxu0 0
          %3696 = vmatprep.mubr.bf16.mxu0 0
          %3697 = vmatmul.mubr.bf16.gmra.mrb[0].mxu0 %v3599
          %v3698 = vpop.f32.mrb[0].mxu0
          %v3699 = vadd.f32 0.0, %v3698
          %v3700 = vpop.f32.mrb[0].mxu0
          %v3701 = vpop.f32.mrb[0].mxu0
          %v3702 = vadd.f32 0.0, %v3701
          %v3703 = vpop.f32.mrb[0].mxu0
          %3704 = vdwg.mxu0
          %v3705 = vrot.slane %v3699, 4
          %v3706 = vadd.f32 %v3699, %v3705
          %v3707 = vrot.slane %v3706, 2
          %v3708 = vadd.f32 %v3706, %v3707
          %v3709 = vrot.slane %v3708, 1
          %v3710 = vadd.f32 %v3708, %v3709
          %v3711 = vrot.slane %v3702, 4
          %v3712 = vadd.f32 %v3702, %v3711
          %v3713 = vrot.slane %v3712, 2
          %v3714 = vadd.f32 %v3712, %v3713
          %v3715 = vrot.slane %v3714, 1
          %v3716 = vadd.f32 %v3714, %v3715
          %v3717 = vmul.f32 %v3710, %v3390
          %v3718 = vmul.f32 %v3716, %v3390
          %v3719 = vsub.f32 %v3699, %v3717
          %v3720 = vsub.f32 %v3702, %v3718
          %v3721 = vmul.f32 %v3719, %v3719
          %v3722 = vmul.f32 %v3720, %v3720
          %v3723 = vrot.slane %v3721, 4
          %v3724 = vadd.f32 %v3721, %v3723
          %v3725 = vrot.slane %v3724, 2
          %v3726 = vadd.f32 %v3724, %v3725
          %v3727 = vrot.slane %v3726, 1
          %v3728 = vadd.f32 %v3726, %v3727
          %v3729 = vrot.slane %v3722, 4
          %v3730 = vadd.f32 %v3722, %v3729
          %v3731 = vrot.slane %v3730, 2
          %v3732 = vadd.f32 %v3730, %v3731
          %v3733 = vrot.slane %v3732, 1
          %v3734 = vadd.f32 %v3732, %v3733
          %v3735 = vmul.f32 %v3728, %v3390
          %v3736 = vmul.f32 %v3734, %v3390
          %v3737 = vadd.f32 %v3735, 1e-05
          %v3738 = vadd.f32 %v3736, 1e-05
          %v3739 = vrsqrt.pop %v3737
          %v3740 = vrsqrt.pop %v3738
          %v3741 = vmul.f32 %v3719, %v3739
          %v3742 = vmul.f32 %v3720, %v3740
          %v3743 = vmul.f32 %v3741, 0.125
          %3744 = vxpose.xlu0.b32.start [1/16] %v3743, 128
          %3745 = vxpose.xlu0.b32.cont [2/16] 0.0, 128
          %3746 = vxpose.xlu0.b32.cont [3/16] 0.0, 128
          %3747 = vxpose.xlu0.b32.cont [4/16] 0.0, 128
          %3748 = vxpose.xlu0.b32.cont [5/16] 0.0, 128
          %3749 = vxpose.xlu0.b32.cont [6/16] 0.0, 128
          %3750 = vxpose.xlu0.b32.cont [7/16] 0.0, 128
          %3751 = vxpose.xlu0.b32.cont [8/16] 0.0, 128
          %3752 = vxpose.xlu0.b32.cont [9/16] 0.0, 128
          %3753 = vxpose.xlu0.b32.cont [10/16] 0.0, 128
          %3754 = vxpose.xlu0.b32.cont [11/16] 0.0, 128
          %3755 = vxpose.xlu0.b32.cont [12/16] 0.0, 128
          %3756 = vxpose.xlu0.b32.cont [13/16] 0.0, 128
          %3757 = vxpose.xlu0.b32.cont [14/16] 0.0, 128
          %3758 = vxpose.xlu0.b32.cont [15/16] 0.0, 128
          %3759 = vxpose.xlu0.b32.end [16/16] 0.0, 128
          %v3760 = vpop.trf.xlu0
          %v3761 = vpop.trf.xlu0
          %v3762 = vpop.trf.xlu0
          %v3763 = vpop.trf.xlu0
          %v3764 = vpop.trf.xlu0
          %v3765 = vpop.trf.xlu0
          %v3766 = vpop.trf.xlu0
          %v3767 = vpop.trf.xlu0
          %v3768 = vpop.trf.xlu0
          %v3769 = vpop.trf.xlu0
          %v3770 = vpop.trf.xlu0
          %v3771 = vpop.trf.xlu0
          %v3772 = vpop.trf.xlu0
          %v3773 = vpop.trf.xlu0
          %v3774 = vpop.trf.xlu0
          %v3775 = vpop.trf.xlu0
          %vm3776 = vcmask 64512
          %v3778 = vsel %vm3776, %v3760, 0
          %v3781 = vsel %vm3776, %v3761, 0
          %v3784 = vsel %vm3776, %v3762, 0
          %v3787 = vsel %vm3776, %v3763, 0
          %v3790 = vsel %vm3776, %v3764, 0
          %v3793 = vsel %vm3776, %v3765, 0
          %v3796 = vsel %vm3776, %v3766, 0
          %v3799 = vsel %vm3776, %v3767, 0
          %v3802 = vsel %vm3776, %v3768, 0
          %v3805 = vsel %vm3776, %v3769, 0
          %v3808 = vsel %vm3776, %v3770, 0
          %v3811 = vsel %vm3776, %v3771, 0
          %v3814 = vsel %vm3776, %v3772, 0
          %v3817 = vsel %vm3776, %v3773, 0
          %v3820 = vsel %vm3776, %v3774, 0
          %v3823 = vsel %vm3776, %v3775, 0
          %3825 = vmatprep.subr.mxu0 0.0
          %3826 = vmatpush1.msra.mxu0 %v3742
          %3827 = vmatprep.subr.mxu0 0.0
          %3828 = vmatpush1.msra.mxu0 0.0
          %3829 = vmatprep.subr.mxu0 0.0
          %3830 = vmatpush1.msra.mxu0 0.0
          %3831 = vmatprep.subr.mxu0 0.0
          %3832 = vmatpush1.msra.mxu0 0.0
          %3833 = vmatprep.subr.mxu0 0.0
          %3834 = vmatpush1.msra.mxu0 0.0
          %3835 = vmatprep.subr.mxu0 0.0
          %3836 = vmatpush1.msra.mxu0 0.0
          %3837 = vmatprep.subr.mxu0 0.0
          %3838 = vmatpush1.msra.mxu0 0.0
          %3839 = vmatprep.subr.mxu0 0.0
          %3840 = vmatpush1.msra.mxu0 0.0
          %3841 = vmatprep.subr.mxu0 0.0
          %3842 = vmatpush1.msra.mxu0 0.0
          %3843 = vmatprep.subr.mxu0 0.0
          %3844 = vmatpush1.msra.mxu0 0.0
          %3845 = vmatprep.subr.mxu0 0.0
          %3846 = vmatpush1.msra.mxu0 0.0
          %3847 = vmatprep.subr.mxu0 0.0
          %3848 = vmatpush1.msra.mxu0 0.0
          %3849 = vmatprep.subr.mxu0 0.0
          %3850 = vmatpush1.msra.mxu0 0.0
          %3851 = vmatprep.subr.mxu0 0.0
          %3852 = vmatpush1.msra.mxu0 0.0
          %3853 = vmatprep.subr.mxu0 0.0
          %3854 = vmatpush1.msra.mxu0 0.0
          %3855 = vmatprep.subr.mxu0 0.0
          %3856 = vmatpush1.msra.mxu0 0.0
          %3857 = vmatprep.subr.mxu0 0.0
          %3858 = vmatpush1.msra.mxu0 0.0
          %3859 = vmatprep.subr.mxu0 0.0
          %3860 = vmatpush1.msra.mxu0 0.0
          %3861 = vmatprep.subr.mxu0 0.0
          %3862 = vmatpush1.msra.mxu0 0.0
          %3863 = vmatprep.subr.mxu0 0.0
          %3864 = vmatpush1.msra.mxu0 0.0
          %3865 = vmatprep.subr.mxu0 0.0
          %3866 = vmatpush1.msra.mxu0 0.0
          %3867 = vmatprep.subr.mxu0 0.0
          %3868 = vmatpush1.msra.mxu0 0.0
          %3869 = vmatprep.subr.mxu0 0.0
          %3870 = vmatpush1.msra.mxu0 0.0
          %3871 = vmatprep.subr.mxu0 0.0
          %3872 = vmatpush1.msra.mxu0 0.0
          %3873 = vmatprep.subr.mxu0 0.0
          %3874 = vmatpush1.msra.mxu0 0.0
          %3875 = vmatprep.subr.mxu0 0.0
          %3876 = vmatpush1.msra.mxu0 0.0
          %3877 = vmatprep.subr.mxu0 0.0
          %3878 = vmatpush1.msra.mxu0 0.0
          %3879 = vmatprep.subr.mxu0 0.0
          %3880 = vmatpush1.msra.mxu0 0.0
          %3881 = vmatprep.subr.mxu0 0.0
          %3882 = vmatpush1.msra.mxu0 0.0
          %3883 = vmatprep.subr.mxu0 0.0
          %3884 = vmatpush1.msra.mxu0 0.0
          %3885 = vmatprep.subr.mxu0 0.0
          %3886 = vmatpush1.msra.mxu0 0.0
          %3887 = vmatprep.subr.mxu0 0.0
          %3888 = vmatpush1.msra.mxu0 0.0
          %3889 = vmatprep.mubr.f32.mxu0 0.0
          %3890 = vmatmul.mubr.f32.gmra.mrb[0].mxu0 %v3778
          %v3891 = vpop.f32.mrb[0].mxu0
          %v3892 = vadd.f32 0.0, %v3891
          %v3893 = vpop.f32.mrb[0].mxu0
          %3894 = vmatprep.mubr.f32.mxu0 0.0
          %3895 = vmatmul.mubr.f32.gmra.mrb[0].mxu0 %v3781
          %v3896 = vpop.f32.mrb[0].mxu0
          %v3897 = vadd.f32 0.0, %v3896
          %v3898 = vpop.f32.mrb[0].mxu0
          %3899 = vmatprep.mubr.f32.mxu0 0.0
          %3900 = vmatmul.mubr.f32.gmra.mrb[0].mxu0 %v3784
          %v3901 = vpop.f32.mrb[0].mxu0
          %v3902 = vadd.f32 0.0, %v3901
          %v3903 = vpop.f32.mrb[0].mxu0
          %3904 = vmatprep.mubr.f32.mxu0 0.0
          %3905 = vmatmul.mubr.f32.gmra.mrb[0].mxu0 %v3787
          %v3906 = vpop.f32.mrb[0].mxu0
          %v3907 = vadd.f32 0.0, %v3906
          %v3908 = vpop.f32.mrb[0].mxu0
          %3909 = vmatprep.mubr.f32.mxu0 0.0
          %3910 = vmatmul.mubr.f32.gmra.mrb[0].mxu0 %v3790
          %v3911 = vpop.f32.mrb[0].mxu0
          %v3912 = vadd.f32 0.0, %v3911
          %v3913 = vpop.f32.mrb[0].mxu0
          %3914 = vmatprep.mubr.f32.mxu0 0.0
          %3915 = vmatmul.mubr.f32.gmra.mrb[0].mxu0 %v3793
          %v3916 = vpop.f32.mrb[0].mxu0
          %v3917 = vadd.f32 0.0, %v3916
          %v3918 = vpop.f32.mrb[0].mxu0
          %3919 = vmatprep.mubr.f32.mxu0 0.0
          %3920 = vmatmul.mubr.f32.gmra.mrb[0].mxu0 %v3796
          %v3921 = vpop.f32.mrb[0].mxu0
          %v3922 = vadd.f32 0.0, %v3921
          %v3923 = vpop.f32.mrb[0].mxu0
          %3924 = vmatprep.mubr.f32.mxu0 0.0
          %3925 = vmatmul.mubr.f32.gmra.mrb[0].mxu0 %v3799
          %v3926 = vpop.f32.mrb[0].mxu0
          %v3927 = vadd.f32 0.0, %v3926
          %v3928 = vpop.f32.mrb[0].mxu0
          %3929 = vmatprep.mubr.f32.mxu0 0.0
          %3930 = vmatmul.mubr.f32.gmra.mrb[0].mxu0 %v3802
          %v3931 = vpop.f32.mrb[0].mxu0
          %v3932 = vadd.f32 0.0, %v3931
          %v3933 = vpop.f32.mrb[0].mxu0
          %3934 = vmatprep.mubr.f32.mxu0 0.0
          %3935 = vmatmul.mubr.f32.gmra.mrb[0].mxu0 %v3805
          %v3936 = vpop.f32.mrb[0].mxu0
          %v3937 = vadd.f32 0.0, %v3936
          %v3938 = vpop.f32.mrb[0].mxu0
          %3939 = vmatprep.mubr.f32.mxu0 0.0
          %3940 = vmatmul.mubr.f32.gmra.mrb[0].mxu0 %v3808
          %v3941 = vpop.f32.mrb[0].mxu0
          %v3942 = vadd.f32 0.0, %v3941
          %v3943 = vpop.f32.mrb[0].mxu0
          %3944 = vmatprep.mubr.f32.mxu0 0.0
          %3945 = vmatmul.mubr.f32.gmra.mrb[0].mxu0 %v3811
          %v3946 = vpop.f32.mrb[0].mxu0
          %v3947 = vadd.f32 0.0, %v3946
          %v3948 = vpop.f32.mrb[0].mxu0
          %3949 = vmatprep.mubr.f32.mxu0 0.0
          %3950 = vmatmul.mubr.f32.gmra.mrb[0].mxu0 %v3814
          %v3951 = vpop.f32.mrb[0].mxu0
          %v3952 = vadd.f32 0.0, %v3951
          %v3953 = vpop.f32.mrb[0].mxu0
          %3954 = vmatprep.mubr.f32.mxu0 0.0
          %3955 = vmatmul.mubr.f32.gmra.mrb[0].mxu0 %v3817
          %v3956 = vpop.f32.mrb[0].mxu0
          %v3957 = vadd.f32 0.0, %v3956
          %v3958 = vpop.f32.mrb[0].mxu0
          %3959 = vmatprep.mubr.f32.mxu0 0.0
          %3960 = vmatmul.mubr.f32.gmra.mrb[0].mxu0 %v3820
          %v3961 = vpop.f32.mrb[0].mxu0
          %v3962 = vadd.f32 0.0, %v3961
          %v3963 = vpop.f32.mrb[0].mxu0
          %3964 = vmatprep.mubr.f32.mxu0 0.0
          %3965 = vmatmul.mubr.f32.gmra.mrb[0].mxu0 %v3823
          %v3966 = vpop.f32.mrb[0].mxu0
          %v3967 = vadd.f32 0.0, %v3966
          %v3968 = vpop.f32.mrb[0].mxu0
          %3969 = vdwg.mxu0
          %v3970 = vlaneseq
          %v3971 = vshrl.u32 %v3970, 7
          %v3972 = vadd.s32 %v3971, 8
          %v3973 = vadd.s32 %v3971, 16
          %v3974 = vadd.s32 %v3971, 24
          %v3975 = vadd.s32 %v3971, 32
          %v3976 = vadd.s32 %v3971, 40
          %v3977 = vadd.s32 %v3971, 48
          %v3978 = vadd.s32 %v3971, 56
          %v3979 = vadd.s32 %v3971, 64
          %v3980 = vadd.s32 %v3971, 72
          %v3981 = vadd.s32 %v3971, 80
          %v3982 = vadd.s32 %v3971, 88
          %v3983 = vadd.s32 %v3971, 96
          %v3984 = vadd.s32 %v3971, 104
          %v3985 = vadd.s32 %v3971, 112
          %v3986 = vadd.s32 %v3971, 120
          %v3987 = vlaneseq
          %v3988 = vand.u32 %v3987, 127
          %vm3989 = vcmp.eq.s32.totalorder %v3971, %v3988
          %vm3990 = vcmp.eq.s32.totalorder %v3972, %v3988
          %vm3991 = vcmp.eq.s32.totalorder %v3973, %v3988
          %vm3992 = vcmp.eq.s32.totalorder %v3974, %v3988
          %vm3993 = vcmp.eq.s32.totalorder %v3975, %v3988
          %vm3994 = vcmp.eq.s32.totalorder %v3976, %v3988
          %vm3995 = vcmp.eq.s32.totalorder %v3977, %v3988
          %vm3996 = vcmp.eq.s32.totalorder %v3978, %v3988
          %vm3997 = vcmp.eq.s32.totalorder %v3979, %v3988
          %vm3998 = vcmp.eq.s32.totalorder %v3980, %v3988
          %vm3999 = vcmp.eq.s32.totalorder %v3981, %v3988
          %vm4000 = vcmp.eq.s32.totalorder %v3982, %v3988
          %vm4001 = vcmp.eq.s32.totalorder %v3983, %v3988
          %vm4002 = vcmp.eq.s32.totalorder %v3984, %v3988
          %vm4003 = vcmp.eq.s32.totalorder %v3985, %v3988
          %vm4004 = vcmp.eq.s32.totalorder %v3986, %v3988
          %v4005 = vsub.f32 %v3892, 1.0
          %v4006 = vsub.f32 %v3897, 1.0
          %v4007 = vsub.f32 %v3902, 1.0
          %v4008 = vsub.f32 %v3907, 1.0
          %v4009 = vsub.f32 %v3912, 1.0
          %v4010 = vsub.f32 %v3917, 1.0
          %v4011 = vsub.f32 %v3922, 1.0
          %v4012 = vsub.f32 %v3927, 1.0
          %v4013 = vsub.f32 %v3932, 1.0
          %v4014 = vsub.f32 %v3937, 1.0
          %v4015 = vsub.f32 %v3942, 1.0
          %v4016 = vsub.f32 %v3947, 1.0
          %v4017 = vsub.f32 %v3952, 1.0
          %v4018 = vsub.f32 %v3957, 1.0
          %v4019 = vsub.f32 %v3962, 1.0
          %v4020 = vsub.f32 %v3967, 1.0
          %v4021 = vmul.f32 %v4005, %v4005
          %v4022 = vmul.f32 %v4006, %v4006
          %v4023 = vmul.f32 %v4007, %v4007
          %v4024 = vmul.f32 %v4008, %v4008
          %v4025 = vmul.f32 %v4009, %v4009
          %v4026 = vmul.f32 %v4010, %v4010
          %v4027 = vmul.f32 %v4011, %v4011
          %v4028 = vmul.f32 %v4012, %v4012
          %v4029 = vmul.f32 %v4013, %v4013
          %v4030 = vmul.f32 %v4014, %v4014
          %v4031 = vmul.f32 %v4015, %v4015
          %v4032 = vmul.f32 %v4016, %v4016
          %v4033 = vmul.f32 %v4017, %v4017
          %v4034 = vmul.f32 %v4018, %v4018
          %v4035 = vmul.f32 %v4019, %v4019
          %v4036 = vmul.f32 %v4020, %v4020
          %v4037 = vmul.f32 %v3892, 0.0051
          %v4038 = vmul.f32 %v3897, 0.0051
          %v4039 = vmul.f32 %v3902, 0.0051
          %v4040 = vmul.f32 %v3907, 0.0051
          %v4041 = vmul.f32 %v3912, 0.0051
          %v4042 = vmul.f32 %v3917, 0.0051
          %v4043 = vmul.f32 %v3922, 0.0051
          %v4044 = vmul.f32 %v3927, 0.0051
          %v4045 = vmul.f32 %v3932, 0.0051
          %v4046 = vmul.f32 %v3937, 0.0051
          %v4047 = vmul.f32 %v3942, 0.0051
          %v4048 = vmul.f32 %v3947, 0.0051
          %v4049 = vmul.f32 %v3952, 0.0051
          %v4050 = vmul.f32 %v3957, 0.0051
          %v4051 = vmul.f32 %v3962, 0.0051
          %v4052 = vmul.f32 %v3967, 0.0051
          %v4053 = vmul.f32 %v4037, %v3892
          %v4054 = vmul.f32 %v4038, %v3897
          %v4055 = vmul.f32 %v4039, %v3902
          %v4056 = vmul.f32 %v4040, %v3907
          %v4057 = vmul.f32 %v4041, %v3912
          %v4058 = vmul.f32 %v4042, %v3917
          %v4059 = vmul.f32 %v4043, %v3922
          %v4060 = vmul.f32 %v4044, %v3927
          %v4061 = vmul.f32 %v4045, %v3932
          %v4062 = vmul.f32 %v4046, %v3937
          %v4063 = vmul.f32 %v4047, %v3942
          %v4064 = vmul.f32 %v4048, %v3947
          %v4065 = vmul.f32 %v4049, %v3952
          %v4066 = vmul.f32 %v4050, %v3957
          %v4067 = vmul.f32 %v4051, %v3962
          %v4068 = vmul.f32 %v4052, %v3967
          %v4069 = vsel %vm3989, %v4021, %v4053
          %v4070 = vsel %vm3990, %v4022, %v4054
          %v4071 = vsel %vm3991, %v4023, %v4055
          %v4072 = vsel %vm3992, %v4024, %v4056
          %v4073 = vsel %vm3993, %v4025, %v4057
          %v4074 = vsel %vm3994, %v4026, %v4058
          %v4075 = vsel %vm3995, %v4027, %v4059
          %v4076 = vsel %vm3996, %v4028, %v4060
          %v4077 = vsel %vm3997, %v4029, %v4061
          %v4078 = vsel %vm3998, %v4030, %v4062
          %v4079 = vsel %vm3999, %v4031, %v4063
          %v4080 = vsel %vm4000, %v4032, %v4064
          %v4081 = vsel %vm4001, %v4033, %v4065
          %v4082 = vsel %vm4002, %v4034, %v4066
          %v4083 = vsel %vm4003, %v4035, %v4067
          %v4084 = vsel %vm4004, %v4036, %v4068
          %v4085 = vadd.f32 %v4069, %v4070
          %v4086 = vadd.f32 %v4085, %v4071
          %v4087 = vadd.f32 %v4086, %v4072
          %v4088 = vadd.f32 %v4087, %v4073
          %v4089 = vadd.f32 %v4088, %v4074
          %v4090 = vadd.f32 %v4089, %v4075
          %v4091 = vadd.f32 %v4090, %v4076
          %v4092 = vadd.f32 %v4091, %v4077
          %v4093 = vadd.f32 %v4092, %v4078
          %v4094 = vadd.f32 %v4093, %v4079
          %v4095 = vadd.f32 %v4094, %v4080
          %v4096 = vadd.f32 %v4095, %v4081
          %v4097 = vadd.f32 %v4096, %v4082
          %v4098 = vadd.f32 %v4097, %v4083
          %v4099 = vadd.f32 %v4098, %v4084
          %4100 = vadd.xlane.f32.xlu0 %v4099
          %v4101 = vpop.xlane.xlu0 %4100
          %v4102 = vrot.slane %v4101, 4
          %v4103 = vadd.f32 %v4101, %v4102
          %v4104 = vrot.slane %v4103, 2
          %v4105 = vadd.f32 %v4103, %v4104
          %v4106 = vrot.slane %v4105, 1
          %v4107 = vadd.f32 %v4105, %v4106
          %s4108 = vtos %v4107
          %s4109 = scalar_lea.smem [#allocation3], 0
          %4110 = sst [smem:[%s4109]] %s4108
        $region60: #{barlow_twins_forward.1} parent=55 // pred_fallthru
          _
        // Predicated region
        $region61: #{barlow_twins_forward.1} parent=55 // pred_check
          %p4111 = pneg %p228
        $region62: #{barlow_twins_forward.1} parent=55 // pred_check_branch
          %4113 = sbr.rel (%p4111) target = $region64
        $region63: #{barlow_twins_forward.1} parent=55 // pred_region
          %s4115 = ssub.s32 16, 16
          %4116 = vsyncadd [#allocation4], %s4115
          %4119 = dma.smem_to_hbm [#allocation3], 16, %s9, [#allocation4]
        $region64: #{barlow_twins_forward.1} parent=55 // pred_fallthru
          _
        // Predicated region
        $region65: #{barlow_twins_forward.1} parent=55 // pred_check
          %p4120 = pneg %p228
        $region66: #{barlow_twins_forward.1} parent=55 // pred_check_branch
          %4122 = sbr.rel (%p4120) target = $region68
        $region67: #{barlow_twins_forward.1} parent=55 // pred_region
          %4123 = dma.done [#allocation4], 16
        $region68: #{barlow_twins_forward.1} parent=55 // pred_fallthru
          _
        %4124 = sfence
      $region56: #{barlow_twins_forward.1} parent=5 // pred_fallthru
        _
      %p4125 = scmp.le.s32.totalorder 2, %s16
      // Predicated region
      $region69: #{barlow_twins_forward.1} parent=5 // pred_check
        %p4126 = pneg %p4125
      $region70: #{barlow_twins_forward.1} parent=5 // pred_check_branch
        %4128 = sbr.rel (%p4126) target = $region72
      $region71: #{barlow_twins_forward.1} parent=5 // pred_region
        %s4129 = ssub.s32 %s16, 2
      $region72: #{barlow_twins_forward.1} parent=5 // pred_fallthru
        _
    $region6: #{barlow_twins_forward.1} parent=1 // loop_footer
      %s20 = sadd.s32 1, %s16
    $region7: #{barlow_twins_forward.1} parent=1 // loop_footer_branch
      %15 = sbr.rel target = $region3
    $region8: #{barlow_twins_forward.1} parent=1 // loop_exit
      _
    %4130 = vsyncpa [#allocation4], 1
    %s4131 = scalar_lea.sflag [#allocation4], 1
    %4132 = vsyncpa %s4131, 1

</llo_original>
